<compile_context>
chip_gen: v7x
topology: tpu7x:2x2x1
jax: 0.10.0
libtpu: 0.0.40
codegen_flags: <defaults>
</compile_context>

<pallas_src>
import functools

import jax
import jax.numpy as jnp
from jax.experimental import pallas as pl
from jax.experimental.pallas import tpu as pltpu


def _round_up(x, m):
    return (x + m - 1) // m * m


# ----------------------------------------------------------------------------
# Per-generation VMEM budget helpers
# ----------------------------------------------------------------------------
def _vmem_capacity_bytes():
    try:
        return int(pltpu.get_tpu_info().vmem_capacity_bytes)
    except Exception:
        return 64 * 1024 * 1024          # conservative (v7x-sized) fallback


def _vmem_limit(need_bytes):
    cap = _vmem_capacity_bytes()
    return int(max(32 * 1024 * 1024, min(need_bytes, cap - 2 * 1024 * 1024)))


@functools.lru_cache(maxsize=None)
def _resident_mode():
    """pl.Buffered(1) if this Pallas build supports it, else None.

    Probed once with a tiny *eager* pallas_call so an unsupported
    pipeline_mode can never take down the real kernels.  Must be warmed up
    outside jit (see __main__) so the probe never gets staged into a trace.
    """
    if not hasattr(pl, "Buffered"):
        return None
    try:
        mode = pl.Buffered(1)

        def _k(x_ref, o_ref):
            o_ref[...] = x_ref[...] + 1.0

        x = jnp.zeros((16, 128), jnp.float32)
        pl.pallas_call(
            _k,
            out_shape=jax.ShapeDtypeStruct((16, 128), jnp.float32),
            grid=(2,),
            in_specs=[pl.BlockSpec((8, 128), lambda i: (0, 0),
                                   pipeline_mode=mode)],
            out_specs=pl.BlockSpec((8, 128), lambda i: (i, 0)),
        )(x)
        return mode
    except Exception:
        return None


def _resident_spec(block_shape, index_map):
    """BlockSpec for a grid-invariant block: fetched once, single buffer."""
    mode = _resident_mode()
    if mode is not None:
        return pl.BlockSpec(block_shape, index_map, pipeline_mode=mode)
    return pl.BlockSpec(block_shape, index_map)


# ----------------------------------------------------------------------------
# Pallas kernels
# ----------------------------------------------------------------------------
def _pw_bn_kernel(x_ref, w_ref, scale_ref, bias_ref, o_ref, *, relu):
    """1x1 conv (channel matmul) + BN (f32 scale/bias on the f32 acc) (+ReLU)."""
    acc = jnp.dot(x_ref[...], w_ref[...], preferred_element_type=jnp.float32)
    acc = acc * scale_ref[...] + bias_ref[...]
    if relu:
        acc = jnp.maximum(acc, 0.0)
    o_ref[...] = acc.astype(o_ref.dtype)


def _pw_bn_add_relu_kernel(x_ref, w_ref, scale_ref, bias_ref, idn_ref, o_ref):
    """1x1 conv + BN + residual add + ReLU (final bottleneck step, fused)."""
    acc = jnp.dot(x_ref[...], w_ref[...], preferred_element_type=jnp.float32)
    acc = acc * scale_ref[...] + bias_ref[...] + idn_ref[...].astype(jnp.float32)
    o_ref[...] = jnp.maximum(acc, 0.0).astype(o_ref.dtype)


def _conv3x3_bn_relu_kernel(x_ref, wk_ref, scale_ref, bias_ref, o_ref, *,
                            TH, W, dilation):
    """3x3 (dilated) conv + BN + ReLU on a TH-row output tile.

    x_ref    : (1, H + 2d, W + 2d, Cin)  whole padded image (bf16, resident)
    wk_ref   : (3, 3*Cin, Cout)          kx taps concatenated along Cin, bf16
    scale_ref: (1, Cout) f32             BN scale (applied to the f32 acc)
    bias_ref : (1, Cout) f32
    o_ref    : (1, TH * W, Cout)         one row tile of the flattened output

    Register accumulation (no scratch RMW, no zero-init); one full-width halo
    row-slab load per step; 3 deep (K = 3*Cin) matmuls instead of 9 shallow.
    """
    Cin = x_ref.shape[-1]
    d = dilation
    row0 = pl.multiple_of(pl.program_id(1) * TH, TH)

    # Full-width halo slab: H is an outer (un-tiled) dim, so this slice and
    # the per-ky row slices below are alignment-free and cheap.
    slab = x_ref[0, pl.ds(row0, TH + 2 * d), :, :]            # (TH+2d, Wp, Cin)

    acc = None
    for ky in range(3):
        rows = slab[ky * d:ky * d + TH]                       # (TH, Wp, Cin)
        # TODO(synk): replace these sublane-offset kx value-slices with
        # pltpu.roll shifts + full-width matmul to avoid the relayout copies.
        xcat = jnp.concatenate(
            [rows[:, kx * d:kx * d + W, :] for kx in range(3)],
            axis=-1).reshape(TH * W, 3 * Cin)
        part = jnp.dot(xcat, wk_ref[ky], preferred_element_type=jnp.float32)
        acc = part if acc is None else acc + part             # register acc
    out = jnp.maximum(acc * scale_ref[...] + bias_ref[...], 0.0)
    o_ref[0] = out.astype(o_ref.dtype)


# ----------------------------------------------------------------------------
# Wrappers around pallas_call
# ----------------------------------------------------------------------------
def pointwise_conv_bn(x2d, w, scale, bias, *, relu, identity=None,
                      out_dtype=jnp.bfloat16, tm=None):
    """x2d: (M, Cin) bf16 flattened spatial view; w: (Cin, Cout) f32."""
    M, Cin = x2d.shape
    Cout = w.shape[1]
    has_idn = identity is not None
    out_isz = jnp.dtype(out_dtype).itemsize

    # Per-M-tile bytes (input + output + optional residual), x2 for the
    # default double buffering of the streamed blocks.
    def _tiles_bytes(t):
        return 2 * t * (Cin * 2 + Cout * out_isz + (Cout * 2 if has_idn else 0))

    cap = _vmem_capacity_bytes()
    if tm is None:
        # Largest lane-dense M tile whose pipelined blocks stay within ~half
        # of this chip's VMEM (headroom for weights + compiler scratch).
        tm = 2048
        while tm > 256 and _tiles_bytes(tm) > cap // 2:
            tm //= 2
    tm = min(tm, _round_up(M, 8))
    grid = (pl.cdiv(M, tm),)

    w_bf = w.astype(jnp.bfloat16)                 # BN scale stays f32 in-kernel
    scale2 = scale.reshape(1, Cout).astype(jnp.float32)
    bias2 = bias.reshape(1, Cout).astype(jnp.float32)

    # Weight / scale / bias have constant block indices -> fetched once and,
    # when supported, held in a single (non-double-buffered) VMEM buffer.
    in_specs = [
        pl.BlockSpec((tm, Cin), lambda i: (i, 0)),
        _resident_spec((Cin, Cout), lambda i: (0, 0)),
        _resident_spec((1, Cout), lambda i: (0, 0)),
        _resident_spec((1, Cout), lambda i: (0, 0)),
    ]
    args = [x2d, w_bf, scale2, bias2]
    if has_idn:
        in_specs.append(pl.BlockSpec((tm, Cout), lambda i: (i, 0)))
        args.append(identity)
        kernel = _pw_bn_add_relu_kernel
    else:
        kernel = functools.partial(_pw_bn_kernel, relu=relu)

    need = _tiles_bytes(tm) + Cin * Cout * 2 + 8 * Cout + (8 << 20)
    return pl.pallas_call(
        kernel,
        out_shape=jax.ShapeDtypeStruct((M, Cout), out_dtype),
        grid=grid,
        in_specs=in_specs,
        out_specs=pl.BlockSpec((tm, Cout), lambda i: (i, 0)),
        compiler_params=pltpu.CompilerParams(
            dimension_semantics=("parallel",),
            vmem_limit_bytes=_vmem_limit(need)),
    )(*args)


def conv3x3_bn_relu(x, w, scale, bias, *, dilation, out_dtype=jnp.bfloat16,
                    th=8):
    """x: (N, H, W, Cin) NHWC bf16; w: (3, 3, Cin, Cout) HWIO f32.

    Row-tiled: grid = (N, H // TH), both axes "parallel" (megacore-friendly).
    Each step computes a TH-row output tile from the resident padded image
    with register accumulation of 3 channel-merged (K = 3*Cin) matmuls.
    """
    N, H, W, Cin = x.shape
    Cout = w.shape[-1]
    d = dilation

    # TODO(synk): drop this pad (one extra HBM pass) by zero-masking the
    # boundary taps inside the kernel instead.
    xp = jnp.pad(x, ((0, 0), (d, d), (d, d), (0, 0)))
    Hp, Wp = H + 2 * d, W + 2 * d

    # Largest row tile <= th that divides H and keeps the flattened output
    # tile 8-row aligned on the sublane axis.
    TH = 0
    for cand in range(min(th, H), 0, -1):
        if H % cand == 0 and (cand * W) % 8 == 0:
            TH = cand
            break
    if TH == 0:
        # TODO(synk): masked tail tiles instead of this degenerate (N, 1)
        # grid (it drops the second megacore axis for e.g. H = 14).
        TH = H

    # kx taps concatenated along the input-channel axis -> (3, 3*Cin, Cout);
    # BN scale stays f32 and is applied to the accumulator in-kernel.
    wk = jnp.concatenate([w[:, 0], w[:, 1], w[:, 2]], axis=1).astype(jnp.bfloat16)
    scale2 = scale.reshape(1, Cout).astype(jnp.float32)
    bias2 = bias.reshape(1, Cout).astype(jnp.float32)

    # Whole padded image resident per batch element; if its double-buffered
    # footprint is large relative to this chip's VMEM (v7x: 64 MiB), fall back
    # to a single buffer.
    # TODO(synk): for very large H*W*Cin, feed a (TH + 2d)-row halo slab per
    # grid step via manual DMA instead of keeping the whole image resident.
    img_bytes = Hp * Wp * Cin * 2
    img_spec = pl.BlockSpec((1, Hp, Wp, Cin), lambda n, i: (n, 0, 0, 0))
    if _resident_mode() is not None and 2 * img_bytes > _vmem_capacity_bytes() // 4:
        img_spec = pl.BlockSpec((1, Hp, Wp, Cin), lambda n, i: (n, 0, 0, 0),
                                pipeline_mode=_resident_mode())

    kernel = functools.partial(_conv3x3_bn_relu_kernel, TH=TH, W=W, dilation=d)
    need = (2 * img_bytes + 3 * 3 * Cin * Cout * 2
            + 2 * TH * W * Cout * 2 + TH * W * Cout * 4 + (8 << 20))
    out = pl.pallas_call(
        kernel,
        out_shape=jax.ShapeDtypeStruct((N, H * W, Cout), out_dtype),
        grid=(N, H // TH),
        in_specs=[
            img_spec,
            _resident_spec((3, 3 * Cin, Cout), lambda n, i: (0, 0, 0)),
            _resident_spec((1, Cout), lambda n, i: (0, 0)),
            _resident_spec((1, Cout), lambda n, i: (0, 0)),
        ],
        out_specs=pl.BlockSpec((1, TH * W, Cout), lambda n, i: (n, i, 0)),
        compiler_params=pltpu.CompilerParams(
            dimension_semantics=("parallel", "parallel"),
            vmem_limit_bytes=_vmem_limit(need)),
    )(xp, wk, scale2, bias2)
    return out.reshape(N, H, W, Cout)


def avg_pool_nhwc(x, s):
    # TODO(synk): fuse AvgPool2d(stride) into the consuming 1x1-conv kernels
    # (strided-read input blocks) to remove this extra HBM round trip.
    if s == 1:
        return x
    N, H, W, C = x.shape
    pooled = x.astype(jnp.float32).reshape(N, H // s, s, W // s, s, C)
    return pooled.mean(axis=(2, 4)).astype(x.dtype)


# ----------------------------------------------------------------------------
# Bottleneck forward
# ----------------------------------------------------------------------------
def _fold_bn(gamma, beta, mean, var, eps=1e-5):
    scale = gamma / jnp.sqrt(var + eps)
    return scale, beta - mean * scale


def bottleneck_forward(x_nchw, p, *, stride, dilation):
    # TODO(synk): fuse the NCHW<->NHWC transposes into the first/last kernels.
    x = jnp.transpose(x_nchw, (0, 2, 3, 1)).astype(jnp.bfloat16)  # NHWC bf16
    N, H, W, Cin = x.shape
    planes = p["w1"].shape[1]
    Cexp = p["w3"].shape[1]

    s1, b1 = _fold_bn(*p["bn1"])
    s2, b2 = _fold_bn(*p["bn2"])
    s3, b3 = _fold_bn(*p["bn3"])

    # conv1 (1x1) + bn1 + relu  -> bf16
    out = pointwise_conv_bn(x.reshape(N * H * W, Cin), p["w1"], s1, b1,
                            relu=True)
    out = out.reshape(N, H, W, planes)

    # conv2 (3x3, dilated) + bn2 + relu  (row-tiled) -> bf16
    out = conv3x3_bn_relu(out, p["w2"], s2, b2, dilation=dilation)

    # avgpool (Identity if stride == 1)
    out = avg_pool_nhwc(out, stride)
    Ho, Wo = out.shape[1], out.shape[2]

    # identity branch (downsample if present) -> bf16
    if "wd" in p:
        sd, bd = _fold_bn(*p["bnd"])
        idn = avg_pool_nhwc(x, stride)
        idn = pointwise_conv_bn(idn.reshape(N * Ho * Wo, Cin), p["wd"], sd, bd,
                                relu=False)
    else:
        idn = x.reshape(N * Ho * Wo, Cexp)

    # conv3 (1x1) + bn3 + residual add + relu, fused in one kernel; f32 out.
    out = pointwise_conv_bn(out.reshape(N * Ho * Wo, planes), p["w3"], s3, b3,
                            relu=True, identity=idn, out_dtype=jnp.float32)
    out = out.reshape(N, Ho, Wo, Cexp)
    # TODO(synk): keep the block NHWC end-to-end (or emit bf16 + bf16
    # transpose) to avoid this full-width f32 transpose HBM pass.
    return jnp.transpose(out, (0, 3, 1, 2))  # NHWC -> NCHW


# ----------------------------------------------------------------------------
# Deterministic parameter init + pure-JAX f32 reference
# ----------------------------------------------------------------------------
def init_params(key, inplanes, planes, stride):
    exp = 4
    ks = list(jax.random.split(key, 12))

    def bn_params(k, c):
        k1, k2, k3, k4 = jax.random.split(k, 4)
        gamma = jax.random.uniform(k1, (c,), jnp.float32, 0.5, 1.5)
        beta = jax.random.normal(k2, (c,), jnp.float32) * 0.1
        mean = jax.random.normal(k3, (c,), jnp.float32) * 0.1
        var = jax.random.uniform(k4, (c,), jnp.float32, 0.5, 1.5)
        return (gamma, beta, mean, var)

    p = {
        "w1": jax.random.normal(ks[0], (inplanes, planes), jnp.float32) * 0.1,
        "bn1": bn_params(ks[1], planes),
        "w2": jax.random.normal(ks[2], (3, 3, planes, planes),
                                jnp.float32) * 0.1,
        "bn2": bn_params(ks[3], planes),
        "w3": jax.random.normal(ks[4], (planes, planes * exp),
                                jnp.float32) * 0.1,
        "bn3": bn_params(ks[5], planes * exp),
    }
    if stride > 1 or inplanes != planes * exp:
        p["wd"] = jax.random.normal(ks[6], (inplanes, planes * exp),
                                    jnp.float32) * 0.1
        p["bnd"] = bn_params(ks[7], planes * exp)
    return p


def ref_bottleneck_nhwc(x, p, *, stride, dilation):
    eps = 1e-5

    def bn(z, stats):
        g, b, m, v = stats
        return (z - m) / jnp.sqrt(v + eps) * g + b

    def conv1x1(z, w):
        return jnp.einsum("nhwc,cd->nhwd", z, w)

    def conv3x3(z, w, d):
        return jax.lax.conv_general_dilated(
            z, w, window_strides=(1, 1), padding=[(d, d), (d, d)],
            rhs_dilation=(d, d), dimension_numbers=("NHWC", "HWIO", "NHWC"))

    out = jax.nn.relu(bn(conv1x1(x, p["w1"]), p["bn1"]))
    out = jax.nn.relu(bn(conv3x3(out, p["w2"], dilation), p["bn2"]))
    out = avg_pool_nhwc(out, stride)
    idn = x
    if "wd" in p:
        idn = bn(conv1x1(avg_pool_nhwc(x, stride), p["wd"]), p["bnd"])
    out = bn(conv1x1(out, p["w3"]), p["bn3"]) + idn
    return jax.nn.relu(out)


# ----------------------------------------------------------------------------
if __name__ == "__main__":
    _resident_mode()   # probe optional Pallas features eagerly (outside jit)

    key = jax.random.PRNGKey(0)
    N, H, W = 2, 16, 16
    configs = [
        # (inplanes, planes, stride, dilation)
        (16, 8, 2, 1),   # downsample branch active (stride 2)
        (32, 8, 1, 2),   # plain identity branch, dilated 3x3
    ]

    for inplanes, planes, stride, dilation in configs:
        key, kx, kp = jax.random.split(key, 3)
        x_nchw = jax.random.normal(kx, (N, inplanes, H, W), jnp.float32)
        params = init_params(kp, inplanes, planes, stride)

        fwd = jax.jit(functools.partial(bottleneck_forward, stride=stride,
                                        dilation=dilation))
        out = jax.block_until_ready(fwd(x_nchw, params))

        ref = ref_bottleneck_nhwc(jnp.transpose(x_nchw, (0, 2, 3, 1)), params,
                                  stride=stride, dilation=dilation)
        ref = jnp.transpose(ref, (0, 3, 1, 2))  # back to NCHW

        assert out.shape == (N, planes * 4, H // stride, W // stride), out.shape
        # bf16 activations/weights (f32 accumulation) -> relaxed tolerance.
        err = float(jnp.max(jnp.abs(out - ref)))
        assert jnp.allclose(out, ref, atol=3e-2, rtol=3e-2), err

    print("KERNEL_OK")
</pallas_src>

<mosaic_0001>
module attributes {stable_mosaic.version = 11 : i64} {
  func.func @_k(%arg0: i32, %arg1: memref<8x128xf32, #tpu.memory_space<vmem>>, %arg2: memref<8x128xf32, #tpu.memory_space<vmem>>) attributes {dimension_semantics = [#tpu.dimension_semantics<arbitrary>], iteration_bounds = array<i64: 2>, scalar_prefetch = 0 : i64, scratch_operands = 0 : i64, tpu.core_type = #tpu.core_type<tc>, window_params = [{pipeline_mode = #tpu.pipeline_mode<synchronous>, transform_indices = @transform_0, window_bounds = array<i64: 8, 128>}, {transform_indices = @transform_1, window_bounds = array<i64: 8, 128>}]} {
    %c0 = arith.constant 0 : index
    %c0_0 = arith.constant 0 : index
    %0 = vector.load %arg1[%c0, %c0_0] : memref<8x128xf32, #tpu.memory_space<vmem>>, vector<8x128xf32>
    %cst = arith.constant 1.000000e+00 : f32
    %1 = vector.broadcast %cst : f32 to vector<8x128xf32>
    %2 = arith.addf %0, %1 : vector<8x128xf32>
    %c0_1 = arith.constant 0 : index
    %c0_2 = arith.constant 0 : index
    %3 = vector.load %arg2[%c0_1, %c0_2] : memref<8x128xf32, #tpu.memory_space<vmem>>, vector<8x128xf32>
    tpu.vector_store %arg2[%c0_1, %c0_2], %2 {strides = array<i32>} : memref<8x128xf32, #tpu.memory_space<vmem>>, vector<8x128xf32>,
    return
  }
  func.func @transform_0(%arg0: i32) -> (i32, i32) {
    %c0_i32 = arith.constant 0 : i32
    %c0_i32_0 = arith.constant 0 : i32
    %c0_i32_1 = arith.constant 0 : i32
    return %c0_i32, %c0_i32_0 : i32, i32
  }
  func.func @transform_1(%arg0: i32) -> (i32, i32) {
    %c0_i32 = arith.constant 0 : i32
    %c0_i32_0 = arith.constant 0 : i32
    return %arg0, %c0_i32 : i32, i32
  }
}

module attributes {stable_mosaic.version = 11 : i64} {
  func.func @_conv3x3_bn_relu_kernel(%arg0: i32, %arg1: i32, %arg2: memref<1x18x18x8xbf16, #tpu.memory_space<vmem>>, %arg3: memref<3x24x8xbf16, #tpu.memory_space<vmem>>, %arg4: memref<1x8xf32, #tpu.memory_space<vmem>>, %arg5: memref<1x8xf32, #tpu.memory_space<vmem>>, %arg6: memref<1x128x8xbf16, #tpu.memory_space<vmem>>) attributes {dimension_semantics = [#tpu.dimension_semantics<parallel>, #tpu.dimension_semantics<parallel>], iteration_bounds = array<i64: 2, 2>, scalar_prefetch = 0 : i64, scratch_operands = 0 : i64, tpu.core_type = #tpu.core_type<tc>, window_params = [{transform_indices = @transform_0, window_bounds = array<i64: 1, 18, 18, 8>}, {pipeline_mode = #tpu.pipeline_mode<synchronous>, transform_indices = @transform_1, window_bounds = array<i64: 3, 24, 8>}, {pipeline_mode = #tpu.pipeline_mode<synchronous>, transform_indices = @transform_2, window_bounds = array<i64: 1, 8>}, {pipeline_mode = #tpu.pipeline_mode<synchronous>, transform_indices = @transform_3, window_bounds = array<i64: 1, 8>}, {transform_indices = @transform_4, window_bounds = array<i64: 1, 128, 8>}]} {
    %c8_i32 = arith.constant 8 : i32
    %0 = arith.muli %arg1, %c8_i32 : i32
    %1 = tpu.assume_multiple %0, 8 : i32
    %c0 = arith.constant 0 : index
    %2 = arith.index_cast %1 : i32 to index
    %c0_0 = arith.constant 0 : index
    %c0_1 = arith.constant 0 : index
    %3 = vector.load %arg2[%c0, %2, %c0_0, %c0_1] : memref<1x18x18x8xbf16, #tpu.memory_space<vmem>>, vector<1x10x18x8xbf16>
    %4 = vector.shape_cast %3 : vector<1x10x18x8xbf16> to vector<10x18x8xbf16>
    %5 = vector.extract_strided_slice %4 {offsets = [0, 0, 0], sizes = [8, 18, 8], strides = [1, 1, 1]} : vector<10x18x8xbf16> to vector<8x18x8xbf16>
    %6 = vector.extract_strided_slice %5 {offsets = [0, 0, 0], sizes = [8, 16, 8], strides = [1, 1, 1]} : vector<8x18x8xbf16> to vector<8x16x8xbf16>
    %7 = vector.extract_strided_slice %5 {offsets = [0, 1, 0], sizes = [8, 16, 8], strides = [1, 1, 1]} : vector<8x18x8xbf16> to vector<8x16x8xbf16>
    %8 = vector.extract_strided_slice %5 {offsets = [0, 2, 0], sizes = [8, 16, 8], strides = [1, 1, 1]} : vector<8x18x8xbf16> to vector<8x16x8xbf16>
    %9 = tpu.concatenate %6, %7, %8 in 2 : vector<8x16x8xbf16>, vector<8x16x8xbf16>, vector<8x16x8xbf16> -> vector<8x16x24xbf16>
    %10 = vector.shape_cast %9 : vector<8x16x24xbf16> to vector<128x24xbf16>
    %c0_2 = arith.constant 0 : index
    %c0_3 = arith.constant 0 : index
    %c0_4 = arith.constant 0 : index
    %11 = vector.load %arg3[%c0_2, %c0_3, %c0_4] : memref<3x24x8xbf16, #tpu.memory_space<vmem>>, vector<1x24x8xbf16>
    %12 = vector.shape_cast %11 : vector<1x24x8xbf16> to vector<24x8xbf16>
    %cst = arith.constant dense<0.000000e+00> : vector<128x8xf32>
    %13 = tpu.matmul %10, %12, %cst {dimension_numbers = #tpu.dot_dimension_numbers<[1], [0], [0], [1], [0, 0, 1, 1], [], []>} : vector<128x24xbf16>, vector<24x8xbf16>, vector<128x8xf32> -> vector<128x8xf32>
    %14 = vector.extract_strided_slice %4 {offsets = [1, 0, 0], sizes = [8, 18, 8], strides = [1, 1, 1]} : vector<10x18x8xbf16> to vector<8x18x8xbf16>
    %15 = vector.extract_strided_slice %14 {offsets = [0, 0, 0], sizes = [8, 16, 8], strides = [1, 1, 1]} : vector<8x18x8xbf16> to vector<8x16x8xbf16>
    %16 = vector.extract_strided_slice %14 {offsets = [0, 1, 0], sizes = [8, 16, 8], strides = [1, 1, 1]} : vector<8x18x8xbf16> to vector<8x16x8xbf16>
    %17 = vector.extract_strided_slice %14 {offsets = [0, 2, 0], sizes = [8, 16, 8], strides = [1, 1, 1]} : vector<8x18x8xbf16> to vector<8x16x8xbf16>
    %18 = tpu.concatenate %15, %16, %17 in 2 : vector<8x16x8xbf16>, vector<8x16x8xbf16>, vector<8x16x8xbf16> -> vector<8x16x24xbf16>
    %19 = vector.shape_cast %18 : vector<8x16x24xbf16> to vector<128x24xbf16>
    %c1 = arith.constant 1 : index
    %c0_5 = arith.constant 0 : index
    %c0_6 = arith.constant 0 : index
    %20 = vector.load %arg3[%c1, %c0_5, %c0_6] : memref<3x24x8xbf16, #tpu.memory_space<vmem>>, vector<1x24x8xbf16>
    %21 = vector.shape_cast %20 : vector<1x24x8xbf16> to vector<24x8xbf16>
    %cst_7 = arith.constant dense<0.000000e+00> : vector<128x8xf32>
    %22 = tpu.matmul %19, %21, %cst_7 {dimension_numbers = #tpu.dot_dimension_numbers<[1], [0], [0], [1], [0, 0, 1, 1], [], []>} : vector<128x24xbf16>, vector<24x8xbf16>, vector<128x8xf32> -> vector<128x8xf32>
    %23 = arith.addf %13, %22 : vector<128x8xf32>
    %24 = vector.extract_strided_slice %4 {offsets = [2, 0, 0], sizes = [8, 18, 8], strides = [1, 1, 1]} : vector<10x18x8xbf16> to vector<8x18x8xbf16>
    %25 = vector.extract_strided_slice %24 {offsets = [0, 0, 0], sizes = [8, 16, 8], strides = [1, 1, 1]} : vector<8x18x8xbf16> to vector<8x16x8xbf16>
    %26 = vector.extract_strided_slice %24 {offsets = [0, 1, 0], sizes = [8, 16, 8], strides = [1, 1, 1]} : vector<8x18x8xbf16> to vector<8x16x8xbf16>
    %27 = vector.extract_strided_slice %24 {offsets = [0, 2, 0], sizes = [8, 16, 8], strides = [1, 1, 1]} : vector<8x18x8xbf16> to vector<8x16x8xbf16>
    %28 = tpu.concatenate %25, %26, %27 in 2 : vector<8x16x8xbf16>, vector<8x16x8xbf16>, vector<8x16x8xbf16> -> vector<8x16x24xbf16>
    %29 = vector.shape_cast %28 : vector<8x16x24xbf16> to vector<128x24xbf16>
    %c2 = arith.constant 2 : index
    %c0_8 = arith.constant 0 : index
    %c0_9 = arith.constant 0 : index
    %30 = vector.load %arg3[%c2, %c0_8, %c0_9] : memref<3x24x8xbf16, #tpu.memory_space<vmem>>, vector<1x24x8xbf16>
    %31 = vector.shape_cast %30 : vector<1x24x8xbf16> to vector<24x8xbf16>
    %cst_10 = arith.constant dense<0.000000e+00> : vector<128x8xf32>
    %32 = tpu.matmul %29, %31, %cst_10 {dimension_numbers = #tpu.dot_dimension_numbers<[1], [0], [0], [1], [0, 0, 1, 1], [], []>} : vector<128x24xbf16>, vector<24x8xbf16>, vector<128x8xf32> -> vector<128x8xf32>
    %33 = arith.addf %23, %32 : vector<128x8xf32>
    %c0_11 = arith.constant 0 : index
    %c0_12 = arith.constant 0 : index
    %34 = vector.load %arg4[%c0_11, %c0_12] : memref<1x8xf32, #tpu.memory_space<vmem>>, vector<1x8xf32>
    %35 = vector.broadcast %34 : vector<1x8xf32> to vector<128x8xf32>
    %36 = arith.mulf %33, %35 : vector<128x8xf32>
    %c0_13 = arith.constant 0 : index
    %c0_14 = arith.constant 0 : index
    %37 = vector.load %arg5[%c0_13, %c0_14] : memref<1x8xf32, #tpu.memory_space<vmem>>, vector<1x8xf32>
    %38 = vector.broadcast %37 : vector<1x8xf32> to vector<128x8xf32>
    %39 = arith.addf %36, %38 : vector<128x8xf32>
    %cst_15 = arith.constant 0.000000e+00 : f32
    %40 = vector.broadcast %cst_15 : f32 to vector<128x8xf32>
    %41 = arith.maximumf %39, %40 : vector<128x8xf32>
    %42 = arith.truncf %41 : vector<128x8xf32> to vector<128x8xbf16>
    %c0_16 = arith.constant 0 : index
    %c0_17 = arith.constant 0 : index
    %c0_18 = arith.constant 0 : index
    %43 = vector.load %arg6[%c0_16, %c0_17, %c0_18] : memref<1x128x8xbf16, #tpu.memory_space<vmem>>, vector<1x128x8xbf16>
    %44 = vector.shape_cast %43 : vector<1x128x8xbf16> to vector<128x8xbf16>
    %45 = vector.shape_cast %42 : vector<128x8xbf16> to vector<1x128x8xbf16>
    tpu.vector_store %arg6[%c0_16, %c0_17, %c0_18], %45 {strides = array<i32>} : memref<1x128x8xbf16, #tpu.memory_space<vmem>>, vector<1x128x8xbf16>,
    return
  }
  func.func @transform_0(%arg0: i32, %arg1: i32) -> (i32, i32, i32, i32) {
    %c0_i32 = arith.constant 0 : i32
    %c0_i32_0 = arith.constant 0 : i32
    %c0_i32_1 = arith.constant 0 : i32
    %c0_i32_2 = arith.constant 0 : i32
    return %arg0, %c0_i32, %c0_i32_0, %c0_i32_1 : i32, i32, i32, i32
  }
  func.func @transform_1(%arg0: i32, %arg1: i32) -> (i32, i32, i32) {
    %c0_i32 = arith.constant 0 : i32
    %c0_i32_0 = arith.constant 0 : i32
    %c0_i32_1 = arith.constant 0 : i32
    %c0_i32_2 = arith.constant 0 : i32
    return %c0_i32, %c0_i32_0, %c0_i32_1 : i32, i32, i32
  }
  func.func @transform_2(%arg0: i32, %arg1: i32) -> (i32, i32) {
    %c0_i32 = arith.constant 0 : i32
    %c0_i32_0 = arith.constant 0 : i32
    %c0_i32_1 = arith.constant 0 : i32
    return %c0_i32, %c0_i32_0 : i32, i32
  }
  func.func @transform_3(%arg0: i32, %arg1: i32) -> (i32, i32) {
    %c0_i32 = arith.constant 0 : i32
    %c0_i32_0 = arith.constant 0 : i32
    %c0_i32_1 = arith.constant 0 : i32
    return %c0_i32, %c0_i32_0 : i32, i32
  }
  func.func @transform_4(%arg0: i32, %arg1: i32) -> (i32, i32, i32) {
    %c0_i32 = arith.constant 0 : i32
    %c0_i32_0 = arith.constant 0 : i32
    return %arg0, %arg1, %c0_i32 : i32, i32, i32
  }
}

module attributes {stable_mosaic.version = 11 : i64} {
  func.func @_pw_bn_kernel(%arg0: i32, %arg1: memref<512x16xbf16, #tpu.memory_space<vmem>>, %arg2: memref<16x8xbf16, #tpu.memory_space<vmem>>, %arg3: memref<1x8xf32, #tpu.memory_space<vmem>>, %arg4: memref<1x8xf32, #tpu.memory_space<vmem>>, %arg5: memref<512x8xbf16, #tpu.memory_space<vmem>>) attributes {dimension_semantics = [#tpu.dimension_semantics<parallel>], iteration_bounds = array<i64: 1>, scalar_prefetch = 0 : i64, scratch_operands = 0 : i64, tpu.core_type = #tpu.core_type<tc>, window_params = [{transform_indices = @transform_0, window_bounds = array<i64: 512, 16>}, {pipeline_mode = #tpu.pipeline_mode<synchronous>, transform_indices = @transform_1, window_bounds = array<i64: 16, 8>}, {pipeline_mode = #tpu.pipeline_mode<synchronous>, transform_indices = @transform_2, window_bounds = array<i64: 1, 8>}, {pipeline_mode = #tpu.pipeline_mode<synchronous>, transform_indices = @transform_3, window_bounds = array<i64: 1, 8>}, {transform_indices = @transform_4, window_bounds = array<i64: 512, 8>}]} {
    %c0 = arith.constant 0 : index
    %c0_0 = arith.constant 0 : index
    %0 = vector.load %arg1[%c0, %c0_0] : memref<512x16xbf16, #tpu.memory_space<vmem>>, vector<512x16xbf16>
    %c0_1 = arith.constant 0 : index
    %c0_2 = arith.constant 0 : index
    %1 = vector.load %arg2[%c0_1, %c0_2] : memref<16x8xbf16, #tpu.memory_space<vmem>>, vector<16x8xbf16>
    %cst = arith.constant dense<0.000000e+00> : vector<512x8xf32>
    %2 = tpu.matmul %0, %1, %cst {dimension_numbers = #tpu.dot_dimension_numbers<[1], [0], [0], [1], [0, 0, 1, 1], [], []>} : vector<512x16xbf16>, vector<16x8xbf16>, vector<512x8xf32> -> vector<512x8xf32>
    %c0_3 = arith.constant 0 : index
    %c0_4 = arith.constant 0 : index
    %3 = vector.load %arg3[%c0_3, %c0_4] : memref<1x8xf32, #tpu.memory_space<vmem>>, vector<1x8xf32>
    %4 = vector.broadcast %3 : vector<1x8xf32> to vector<512x8xf32>
    %5 = arith.mulf %2, %4 : vector<512x8xf32>
    %c0_5 = arith.constant 0 : index
    %c0_6 = arith.constant 0 : index
    %6 = vector.load %arg4[%c0_5, %c0_6] : memref<1x8xf32, #tpu.memory_space<vmem>>, vector<1x8xf32>
    %7 = vector.broadcast %6 : vector<1x8xf32> to vector<512x8xf32>
    %8 = arith.addf %5, %7 : vector<512x8xf32>
    %cst_7 = arith.constant 0.000000e+00 : f32
    %9 = vector.broadcast %cst_7 : f32 to vector<512x8xf32>
    %10 = arith.maximumf %8, %9 : vector<512x8xf32>
    %11 = arith.truncf %10 : vector<512x8xf32> to vector<512x8xbf16>
    %c0_8 = arith.constant 0 : index
    %c0_9 = arith.constant 0 : index
    %12 = vector.load %arg5[%c0_8, %c0_9] : memref<512x8xbf16, #tpu.memory_space<vmem>>, vector<512x8xbf16>
    tpu.vector_store %arg5[%c0_8, %c0_9], %11 {strides = array<i32>} : memref<512x8xbf16, #tpu.memory_space<vmem>>, vector<512x8xbf16>,
    return
  }
  func.func @transform_0(%arg0: i32) -> (i32, i32) {
    %c0_i32 = arith.constant 0 : i32
    %c0_i32_0 = arith.constant 0 : i32
    return %arg0, %c0_i32 : i32, i32
  }
  func.func @transform_1(%arg0: i32) -> (i32, i32) {
    %c0_i32 = arith.constant 0 : i32
    %c0_i32_0 = arith.constant 0 : i32
    %c0_i32_1 = arith.constant 0 : i32
    return %c0_i32, %c0_i32_0 : i32, i32
  }
  func.func @transform_2(%arg0: i32) -> (i32, i32) {
    %c0_i32 = arith.constant 0 : i32
    %c0_i32_0 = arith.constant 0 : i32
    %c0_i32_1 = arith.constant 0 : i32
    return %c0_i32, %c0_i32_0 : i32, i32
  }
  func.func @transform_3(%arg0: i32) -> (i32, i32) {
    %c0_i32 = arith.constant 0 : i32
    %c0_i32_0 = arith.constant 0 : i32
    %c0_i32_1 = arith.constant 0 : i32
    return %c0_i32, %c0_i32_0 : i32, i32
  }
  func.func @transform_4(%arg0: i32) -> (i32, i32) {
    %c0_i32 = arith.constant 0 : i32
    %c0_i32_0 = arith.constant 0 : i32
    return %arg0, %c0_i32 : i32, i32
  }
}

module attributes {stable_mosaic.version = 11 : i64} {
  func.func @_pw_bn_kernel(%arg0: i32, %arg1: memref<128x16xbf16, #tpu.memory_space<vmem>>, %arg2: memref<16x32xbf16, #tpu.memory_space<vmem>>, %arg3: memref<1x32xf32, #tpu.memory_space<vmem>>, %arg4: memref<1x32xf32, #tpu.memory_space<vmem>>, %arg5: memref<128x32xbf16, #tpu.memory_space<vmem>>) attributes {dimension_semantics = [#tpu.dimension_semantics<parallel>], iteration_bounds = array<i64: 1>, scalar_prefetch = 0 : i64, scratch_operands = 0 : i64, tpu.core_type = #tpu.core_type<tc>, window_params = [{transform_indices = @transform_0, window_bounds = array<i64: 128, 16>}, {pipeline_mode = #tpu.pipeline_mode<synchronous>, transform_indices = @transform_1, window_bounds = array<i64: 16, 32>}, {pipeline_mode = #tpu.pipeline_mode<synchronous>, transform_indices = @transform_2, window_bounds = array<i64: 1, 32>}, {pipeline_mode = #tpu.pipeline_mode<synchronous>, transform_indices = @transform_3, window_bounds = array<i64: 1, 32>}, {transform_indices = @transform_4, window_bounds = array<i64: 128, 32>}]} {
    %c0 = arith.constant 0 : index
    %c0_0 = arith.constant 0 : index
    %0 = vector.load %arg1[%c0, %c0_0] : memref<128x16xbf16, #tpu.memory_space<vmem>>, vector<128x16xbf16>
    %c0_1 = arith.constant 0 : index
    %c0_2 = arith.constant 0 : index
    %1 = vector.load %arg2[%c0_1, %c0_2] : memref<16x32xbf16, #tpu.memory_space<vmem>>, vector<16x32xbf16>
    %cst = arith.constant dense<0.000000e+00> : vector<128x32xf32>
    %2 = tpu.matmul %0, %1, %cst {dimension_numbers = #tpu.dot_dimension_numbers<[1], [0], [0], [1], [0, 0, 1, 1], [], []>} : vector<128x16xbf16>, vector<16x32xbf16>, vector<128x32xf32> -> vector<128x32xf32>
    %c0_3 = arith.constant 0 : index
    %c0_4 = arith.constant 0 : index
    %3 = vector.load %arg3[%c0_3, %c0_4] : memref<1x32xf32, #tpu.memory_space<vmem>>, vector<1x32xf32>
    %4 = vector.broadcast %3 : vector<1x32xf32> to vector<128x32xf32>
    %5 = arith.mulf %2, %4 : vector<128x32xf32>
    %c0_5 = arith.constant 0 : index
    %c0_6 = arith.constant 0 : index
    %6 = vector.load %arg4[%c0_5, %c0_6] : memref<1x32xf32, #tpu.memory_space<vmem>>, vector<1x32xf32>
    %7 = vector.broadcast %6 : vector<1x32xf32> to vector<128x32xf32>
    %8 = arith.addf %5, %7 : vector<128x32xf32>
    %9 = arith.truncf %8 : vector<128x32xf32> to vector<128x32xbf16>
    %c0_7 = arith.constant 0 : index
    %c0_8 = arith.constant 0 : index
    %10 = vector.load %arg5[%c0_7, %c0_8] : memref<128x32xbf16, #tpu.memory_space<vmem>>, vector<128x32xbf16>
    tpu.vector_store %arg5[%c0_7, %c0_8], %9 {strides = array<i32>} : memref<128x32xbf16, #tpu.memory_space<vmem>>, vector<128x32xbf16>,
    return
  }
  func.func @transform_0(%arg0: i32) -> (i32, i32) {
    %c0_i32 = arith.constant 0 : i32
    %c0_i32_0 = arith.constant 0 : i32
    return %arg0, %c0_i32 : i32, i32
  }
  func.func @transform_1(%arg0: i32) -> (i32, i32) {
    %c0_i32 = arith.constant 0 : i32
    %c0_i32_0 = arith.constant 0 : i32
    %c0_i32_1 = arith.constant 0 : i32
    return %c0_i32, %c0_i32_0 : i32, i32
  }
  func.func @transform_2(%arg0: i32) -> (i32, i32) {
    %c0_i32 = arith.constant 0 : i32
    %c0_i32_0 = arith.constant 0 : i32
    %c0_i32_1 = arith.constant 0 : i32
    return %c0_i32, %c0_i32_0 : i32, i32
  }
  func.func @transform_3(%arg0: i32) -> (i32, i32) {
    %c0_i32 = arith.constant 0 : i32
    %c0_i32_0 = arith.constant 0 : i32
    %c0_i32_1 = arith.constant 0 : i32
    return %c0_i32, %c0_i32_0 : i32, i32
  }
  func.func @transform_4(%arg0: i32) -> (i32, i32) {
    %c0_i32 = arith.constant 0 : i32
    %c0_i32_0 = arith.constant 0 : i32
    return %arg0, %c0_i32 : i32, i32
  }
}

module attributes {stable_mosaic.version = 11 : i64} {
  func.func @_pw_bn_add_relu_kernel(%arg0: i32, %arg1: memref<128x8xbf16, #tpu.memory_space<vmem>>, %arg2: memref<8x32xbf16, #tpu.memory_space<vmem>>, %arg3: memref<1x32xf32, #tpu.memory_space<vmem>>, %arg4: memref<1x32xf32, #tpu.memory_space<vmem>>, %arg5: memref<128x32xbf16, #tpu.memory_space<vmem>>, %arg6: memref<128x32xf32, #tpu.memory_space<vmem>>) attributes {dimension_semantics = [#tpu.dimension_semantics<parallel>], iteration_bounds = array<i64: 1>, scalar_prefetch = 0 : i64, scratch_operands = 0 : i64, tpu.core_type = #tpu.core_type<tc>, window_params = [{transform_indices = @transform_0, window_bounds = array<i64: 128, 8>}, {pipeline_mode = #tpu.pipeline_mode<synchronous>, transform_indices = @transform_1, window_bounds = array<i64: 8, 32>}, {pipeline_mode = #tpu.pipeline_mode<synchronous>, transform_indices = @transform_2, window_bounds = array<i64: 1, 32>}, {pipeline_mode = #tpu.pipeline_mode<synchronous>, transform_indices = @transform_3, window_bounds = array<i64: 1, 32>}, {transform_indices = @transform_4, window_bounds = array<i64: 128, 32>}, {transform_indices = @transform_5, window_bounds = array<i64: 128, 32>}]} {
    %c0 = arith.constant 0 : index
    %c0_0 = arith.constant 0 : index
    %0 = vector.load %arg1[%c0, %c0_0] : memref<128x8xbf16, #tpu.memory_space<vmem>>, vector<128x8xbf16>
    %c0_1 = arith.constant 0 : index
    %c0_2 = arith.constant 0 : index
    %1 = vector.load %arg2[%c0_1, %c0_2] : memref<8x32xbf16, #tpu.memory_space<vmem>>, vector<8x32xbf16>
    %cst = arith.constant dense<0.000000e+00> : vector<128x32xf32>
    %2 = tpu.matmul %0, %1, %cst {dimension_numbers = #tpu.dot_dimension_numbers<[1], [0], [0], [1], [0, 0, 1, 1], [], []>} : vector<128x8xbf16>, vector<8x32xbf16>, vector<128x32xf32> -> vector<128x32xf32>
    %c0_3 = arith.constant 0 : index
    %c0_4 = arith.constant 0 : index
    %3 = vector.load %arg3[%c0_3, %c0_4] : memref<1x32xf32, #tpu.memory_space<vmem>>, vector<1x32xf32>
    %4 = vector.broadcast %3 : vector<1x32xf32> to vector<128x32xf32>
    %5 = arith.mulf %2, %4 : vector<128x32xf32>
    %c0_5 = arith.constant 0 : index
    %c0_6 = arith.constant 0 : index
    %6 = vector.load %arg4[%c0_5, %c0_6] : memref<1x32xf32, #tpu.memory_space<vmem>>, vector<1x32xf32>
    %7 = vector.broadcast %6 : vector<1x32xf32> to vector<128x32xf32>
    %8 = arith.addf %5, %7 : vector<128x32xf32>
    %c0_7 = arith.constant 0 : index
    %c0_8 = arith.constant 0 : index
    %9 = vector.load %arg5[%c0_7, %c0_8] : memref<128x32xbf16, #tpu.memory_space<vmem>>, vector<128x32xbf16>
    %10 = arith.extf %9 : vector<128x32xbf16> to vector<128x32xf32>
    %11 = arith.addf %8, %10 : vector<128x32xf32>
    %cst_9 = arith.constant 0.000000e+00 : f32
    %12 = vector.broadcast %cst_9 : f32 to vector<128x32xf32>
    %13 = arith.maximumf %11, %12 : vector<128x32xf32>
    %c0_10 = arith.constant 0 : index
    %c0_11 = arith.constant 0 : index
    %14 = vector.load %arg6[%c0_10, %c0_11] : memref<128x32xf32, #tpu.memory_space<vmem>>, vector<128x32xf32>
    tpu.vector_store %arg6[%c0_10, %c0_11], %13 {strides = array<i32>} : memref<128x32xf32, #tpu.memory_space<vmem>>, vector<128x32xf32>,
    return
  }
  func.func @transform_0(%arg0: i32) -> (i32, i32) {
    %c0_i32 = arith.constant 0 : i32
    %c0_i32_0 = arith.constant 0 : i32
    return %arg0, %c0_i32 : i32, i32
  }
  func.func @transform_1(%arg0: i32) -> (i32, i32) {
    %c0_i32 = arith.constant 0 : i32
    %c0_i32_0 = arith.constant 0 : i32
    %c0_i32_1 = arith.constant 0 : i32
    return %c0_i32, %c0_i32_0 : i32, i32
  }
  func.func @transform_2(%arg0: i32) -> (i32, i32) {
    %c0_i32 = arith.constant 0 : i32
    %c0_i32_0 = arith.constant 0 : i32
    %c0_i32_1 = arith.constant 0 : i32
    return %c0_i32, %c0_i32_0 : i32, i32
  }
  func.func @transform_3(%arg0: i32) -> (i32, i32) {
    %c0_i32 = arith.constant 0 : i32
    %c0_i32_0 = arith.constant 0 : i32
    %c0_i32_1 = arith.constant 0 : i32
    return %c0_i32, %c0_i32_0 : i32, i32
  }
  func.func @transform_4(%arg0: i32) -> (i32, i32) {
    %c0_i32 = arith.constant 0 : i32
    %c0_i32_0 = arith.constant 0 : i32
    return %arg0, %c0_i32 : i32, i32
  }
  func.func @transform_5(%arg0: i32) -> (i32, i32) {
    %c0_i32 = arith.constant 0 : i32
    %c0_i32_0 = arith.constant 0 : i32
    return %arg0, %c0_i32 : i32, i32
  }
}

</mosaic_0001>

<llo_original>
// kernel: tpu_custom_call.1
$region0: #{tpu_custom_call.1}
  #allocation0 [shape = 'u32[]', space=smem, size = 0x4, offset = 0x4, fixed_abs, tag = 'smem constant byte address 0x4 - core index']
  #allocation1 [shape = 'u32[144,128]{1,0:T(1,128)}', space=vmem, size = 0x12000, scoped, tag = 'internal scratch']
  %s0 = inlined_call_operand.hbm [shape: f32[16,128], index: 0, kind: input, shape index: {}]
  %s1 = inlined_call_operand.hbm [shape: f32[16,128], index: 1, kind: output, shape index: {}]
  %s2 = sld [smem:[#allocation0]]
  $region41: #{tpu_custom_call.1} parent=0
    _
  %s4 = ssub.s32 1, %s2
  %s5 = scalar_select 0, %s4, %s2
  $region1: #{tpu_custom_call.1} parent=0
    #allocation2 [shape = 'u8[4096]{0}', space=vmem, size = 0x1000, scoped, tag = 'input window, operand 0, single buffered']
    #allocation3 [shape = 's32[2]{0}', space=sflag, size = 0x8, scoped, tag = 'scoped memory for tpu_custom_call.1']
    #allocation4 [shape = 's32[2]{0}', space=sflag, size = 0x8, scoped, tag = 'scoped memory for tpu_custom_call.1']
    #allocation5 [shape = 'u8[8192]{0}', space=vmem, size = 0x2000, scoped, tag = 'output window, operand 0']
    %6 = vsyncpa [#allocation3], 0
    %7 = vsyncpa [#allocation4], 0
    %s8 = scalar_lea.sflag [#allocation4], 1
    %9 = vsyncpa %s8, 0
    loop: start=0, step=1, limit=4
    $region2: #{tpu_custom_call.1} parent=1 // loop_pre_header
      _
    $region3: #{tpu_custom_call.1} parent=1 // loop_header
      %s11 = sphi 0, %s15
      %p12 = scmp.ge.s32.totalorder %s11, 4
      %s19 = sphi 0, %s19
      %s21 = sphi 0, %s19
      %s22 = sphi 0, %s21
      %s36 = sphi 0, %s22
      %s42 = sphi 0, %s44
      %s45 = sphi 0, %s42
      %s46 = sphi 0, %s45
      %s62 = sphi 0, %s46
    $region4: #{tpu_custom_call.1} parent=1 // loop_header_branch
      %14 = sbr.rel (%p12) target = $region8
    $region5: #{tpu_custom_call.1} parent=1 // loop_body
      %s16 = ssub.s32 %s11, 1
      %s17 = ssub.s32 %s11, 2
      %s18 = sadd.s32 %s11, 1
      %s20 = sadd.s32 %s19, 1
      %p23 = scmp.eq.s32.totalorder %s11, 1
      %p24 = scmp.ne.s32.totalorder %s19, %s21
      %p25 = scmp.eq.s32.totalorder %s11, 0
      %p26 = por %p24, %p25
      %p27 = scmp.ne.s32.totalorder %s19, %s21
      %p28 = scmp.eq.s32.totalorder %s16, 1
      %p29 = por %p27, %p28
      %p30 = scmp.ne.s32.totalorder %s21, %s22
      %p31 = scmp.eq.s32.totalorder %s16, 0
      %p32 = por %p30, %p31
      %p33 = scmp.ne.s32.totalorder %s21, %s22
      %p34 = scmp.eq.s32.totalorder %s17, 1
      %p35 = por %p33, %p34
      %p37 = scmp.ne.s32.totalorder %s22, %s36
      %p38 = scmp.eq.s32.totalorder %s17, 0
      %p39 = por %p37, %p38
      %s40 = ssub.s32 %s11, %s18
      %p41 = scmp.eq.s32.totalorder %s40, 0
      %s43 = sadd.s32 %s42, 1
      %s44 = scalar_select %p41, %s42, %s43
      %p47 = pneg %p41
      %p48 = scmp.eq.s32.totalorder %s11, 1
      %p49 = por %p47, %p48
      %p50 = scmp.ne.s32.totalorder %s42, %s45
      %p51 = scmp.eq.s32.totalorder %s11, 0
      %p52 = por %p50, %p51
      %p53 = scmp.ne.s32.totalorder %s42, %s45
      %p54 = scmp.eq.s32.totalorder %s16, 1
      %p55 = por %p53, %p54
      %p56 = scmp.ne.s32.totalorder %s45, %s46
      %p57 = scmp.eq.s32.totalorder %s16, 0
      %p58 = por %p56, %p57
      %p59 = scmp.ne.s32.totalorder %s45, %s46
      %p60 = scmp.eq.s32.totalorder %s17, 1
      %p61 = por %p59, %p60
      %p63 = scmp.ne.s32.totalorder %s46, %s62
      %p64 = scmp.eq.s32.totalorder %s17, 0
      %p65 = por %p63, %p64
      %p66 = scmp.le.s32.totalorder 1, %s11
      %p67 = scmp.lt.s32.totalorder %s11, 3
      %p68 = pnand %p66, %p67
      %p69 = pneg %p68
      // Predicated region
      $region9: #{tpu_custom_call.1} parent=5 // pred_check
        _
      $region10: #{tpu_custom_call.1} parent=5 // pred_check_branch
        %71 = sbr.rel (%p68) target = $region12
      $region11: #{tpu_custom_call.1} parent=5 // pred_region
        %s72 = ssub.s32 %s11, 1
        // Predicated region
        $region13: #{tpu_custom_call.1} parent=11 // pred_check
          %p73 = pneg %p32
        $region14: #{tpu_custom_call.1} parent=11 // pred_check_branch
          %75 = sbr.rel (%p73) target = $region16
        $region15: #{tpu_custom_call.1} parent=11 // pred_region
          %s77 = ssub.s32 128, 128
          %78 = vsyncadd [#allocation3], %s77
          %s80 = sshll.u32 [#allocation2], 4
          %s81 = int_to_ptr.vmem [resolvable:$true] %s80
          %83 = dma.hbm_to_vmem [thread:$0]  %s0, 128, %s81, [#allocation3]
        $region16: #{tpu_custom_call.1} parent=11 // pred_fallthru
          _
      $region12: #{tpu_custom_call.1} parent=5 // pred_fallthru
        _
      %p84 = scmp.lt.s32.totalorder %s11, 2
      // Predicated region
      $region17: #{tpu_custom_call.1} parent=5 // pred_check
        %p85 = pneg %p84
      $region18: #{tpu_custom_call.1} parent=5 // pred_check_branch
        %87 = sbr.rel (%p85) target = $region20
      $region19: #{tpu_custom_call.1} parent=5 // pred_region
        _
      $region20: #{tpu_custom_call.1} parent=5 // pred_fallthru
        _
      %p88 = scmp.le.s32.totalorder 1, %s11
      %p89 = scmp.lt.s32.totalorder %s11, 3
      %p90 = pnand %p88, %p89
      %p91 = pneg %p90
      // Predicated region
      $region21: #{tpu_custom_call.1} parent=5 // pred_check
        _
      $region22: #{tpu_custom_call.1} parent=5 // pred_check_branch
        %93 = sbr.rel (%p90) target = $region24
      $region23: #{tpu_custom_call.1} parent=5 // pred_region
        %s94 = ssub.s32 %s11, 1
        // Predicated region
        $region25: #{tpu_custom_call.1} parent=23 // pred_check
          %p95 = pneg %p32
        $region26: #{tpu_custom_call.1} parent=23 // pred_check_branch
          %97 = sbr.rel (%p95) target = $region28
        $region27: #{tpu_custom_call.1} parent=23 // pred_region
          %98 = dma.done [#allocation3], 128
        $region28: #{tpu_custom_call.1} parent=23 // pred_fallthru
          _
        %p99 = pneg %p32
        %p100 = pneg %p29
        %p101 = pneg %p58
        %p102 = pneg %p55
        %s103 = sand.u32 %s45, 1
        %s104 = scalar_lea.sflag [#allocation4], %s103
        %s105 = sand.u32 %s45, 1
        %s106 = smul.addr %s105, 8
        %s107 = scalar_lea.vmem [#allocation5], %s106
        %v108 = vld [vmem:[#allocation2] sm:$0xff]
        %v109 = vadd.f32 %v108, 1.0
        %110 = vst [vmem:[%s107] sm:$0xff] %v109
        %s111 = sand.u32 %s45, 1
        %s112 = scalar_lea.sflag [#allocation4], %s111
        %s113 = sand.u32 %s45, 1
        %s114 = smul.addr %s113, 8
        %s115 = scalar_lea.vmem [#allocation5], %s114
        // Predicated region
        $region29: #{tpu_custom_call.1} parent=23 // pred_check
          %p116 = pneg %p55
        $region30: #{tpu_custom_call.1} parent=23 // pred_check_branch
          %118 = sbr.rel (%p116) target = $region32
        $region31: #{tpu_custom_call.1} parent=23 // pred_region
          %s120 = ssub.s32 128, 128
          %121 = vsyncadd %s112, %s120
          %s122 = smul.addr %s16, 128
          %s123 = scalar_lea.hbm %s1, %s122
          %s125 = sshll.u32 %s115, 4
          %s126 = int_to_ptr.vmem [resolvable:$true] %s125
          %128 = dma.vmem_to_hbm [thread:$0]  %s126, 128, %s123, %s112
        $region32: #{tpu_custom_call.1} parent=23 // pred_fallthru
          _
      $region24: #{tpu_custom_call.1} parent=5 // pred_fallthru
        _
      %p129 = scmp.le.s32.totalorder 2, %s11
      // Predicated region
      $region33: #{tpu_custom_call.1} parent=5 // pred_check
        %p130 = pneg %p129
      $region34: #{tpu_custom_call.1} parent=5 // pred_check_branch
        %132 = sbr.rel (%p130) target = $region36
      $region35: #{tpu_custom_call.1} parent=5 // pred_region
        %s133 = ssub.s32 %s11, 2
        // Predicated region
        $region37: #{tpu_custom_call.1} parent=35 // pred_check
          %p134 = pneg %p61
        $region38: #{tpu_custom_call.1} parent=35 // pred_check_branch
          %136 = sbr.rel (%p134) target = $region40
        $region39: #{tpu_custom_call.1} parent=35 // pred_region
          %s137 = sand.u32 %s46, 1
          %s138 = scalar_lea.sflag [#allocation4], %s137
          %s139 = sand.u32 %s46, 1
          %s140 = smul.addr %s139, 8
          %s141 = scalar_lea.vmem [#allocation5], %s140
          %142 = dma.done %s138, 128
        $region40: #{tpu_custom_call.1} parent=35 // pred_fallthru
          _
      $region36: #{tpu_custom_call.1} parent=5 // pred_fallthru
        _
    $region6: #{tpu_custom_call.1} parent=1 // loop_footer
      %s15 = sadd.s32 1, %s11
    $region7: #{tpu_custom_call.1} parent=1 // loop_footer_branch
      %10 = sbr.rel target = $region3
    $region8: #{tpu_custom_call.1} parent=1 // loop_exit
      _
    %143 = vsyncpa [#allocation3], 1
    %s144 = scalar_lea.sflag [#allocation3], 1
    %145 = vsyncpa %s144, 1
    %146 = vsyncpa [#allocation4], 1
    %s147 = scalar_lea.sflag [#allocation4], 1
    %148 = vsyncpa %s147, 1

// kernel: bottleneck_forward.5
$region0: #{bottleneck_forward.5}
  #allocation0 [shape = 'u32[]', space=smem, size = 0x4, offset = 0x4, fixed_abs, tag = 'smem constant byte address 0x4 - core index']
  #allocation1 [shape = 'u32[144,128]{1,0:T(1,128)}', space=vmem, size = 0x12000, scoped, tag = 'internal scratch']
  %s0 = inlined_call_operand.vmem [shape: bf16[2,18,18,8], index: 0, kind: input, shape index: {}]
  %s1 = inlined_call_operand.vmem [shape: bf16[3,24,8], index: 1, kind: input, shape index: {}]
  %s2 = inlined_call_operand.vmem [shape: f32[1,8], index: 2, kind: input, shape index: {}]
  %s3 = inlined_call_operand.vmem [shape: f32[1,8], index: 3, kind: input, shape index: {}]
  %s4 = inlined_call_operand.vmem [shape: bf16[2,256,8], index: 4, kind: output, shape index: {}]
  %s5 = sld [smem:[#allocation0]]
  $region49: #{bottleneck_forward.5} parent=0
    _
  %s7 = ssub.s32 1, %s5
  %s8 = scalar_select 0, %s7, %s5
  loop: start=0, step=1, limit=6
  $region2: #{bottleneck_forward.5} parent=0 // loop_pre_header
    _
  $region3: #{bottleneck_forward.5} parent=0 // loop_header
    %s10 = sphi 0, %s14
    %p11 = scmp.ge.s32.totalorder %s10, 6
    %s17 = sphi 0, %s29
    %s18 = sphi 0, %s25
    %s19 = sphi 0, %s17
    %s20 = sphi 0, %s18
    %s21 = sphi 0, %s19
    %s22 = sphi 0, %s20
    %s32 = sphi 0, %s34
    %s35 = sphi 0, %s32
    %s36 = sphi 0, %s35
    %s52 = sphi 0, %s36
    %s56 = sphi 0, %s56
    %s58 = sphi 0, %s56
    %s59 = sphi 0, %s58
    %s73 = sphi 0, %s59
    %s77 = sphi 0, %s77
    %s79 = sphi 0, %s77
    %s80 = sphi 0, %s79
    %s94 = sphi 0, %s80
    %s98 = sphi 0, %s98
    %s100 = sphi 0, %s98
    %s101 = sphi 0, %s100
    %s115 = sphi 0, %s101
    %s123 = sphi 0, %s125
    %s126 = sphi 0, %s123
    %s127 = sphi 0, %s126
    %s143 = sphi 0, %s127
  $region4: #{bottleneck_forward.5} parent=0 // loop_header_branch
    %13 = sbr.rel (%p11) target = $region8
  $region5: #{bottleneck_forward.5} parent=0 // loop_body
    %s15 = ssub.s32 %s10, 1
    %s16 = ssub.s32 %s10, 2
    %s23 = sadd.s32 1, %s18
    %p24 = scmp.ge.s32.totalorder %s23, 2
    %s25 = scalar_select %p24, 0, %s23
    %s26 = sadd.s32 1, %s17
    %s27 = scalar_select %p24, %s26, %s17
    %p28 = scmp.ge.s32.totalorder %s27, 2
    %s29 = scalar_select %p28, 0, %s27
    %s30 = ssub.s32 %s17, %s29
    %p31 = scmp.eq.s32.totalorder %s30, 0
    %s33 = sadd.s32 %s32, 1
    %s34 = scalar_select %p31, %s32, %s33
    %p37 = pneg %p31
    %p38 = scmp.eq.s32.totalorder %s10, 3
    %p39 = por %p37, %p38
    %p40 = scmp.ne.s32.totalorder %s32, %s35
    %p41 = scmp.eq.s32.totalorder %s10, 0
    %p42 = por %p40, %p41
    %p43 = scmp.ne.s32.totalorder %s32, %s35
    %p44 = scmp.eq.s32.totalorder %s15, 3
    %p45 = por %p43, %p44
    %p46 = scmp.ne.s32.totalorder %s35, %s36
    %p47 = scmp.eq.s32.totalorder %s15, 0
    %p48 = por %p46, %p47
    %p49 = scmp.ne.s32.totalorder %s35, %s36
    %p50 = scmp.eq.s32.totalorder %s16, 3
    %p51 = por %p49, %p50
    %p53 = scmp.ne.s32.totalorder %s36, %s52
    %p54 = scmp.eq.s32.totalorder %s16, 0
    %p55 = por %p53, %p54
    %s57 = sadd.s32 %s56, 1
    %p60 = scmp.eq.s32.totalorder %s10, 3
    %p61 = scmp.ne.s32.totalorder %s56, %s58
    %p62 = scmp.eq.s32.totalorder %s10, 0
    %p63 = por %p61, %p62
    %p64 = scmp.ne.s32.totalorder %s56, %s58
    %p65 = scmp.eq.s32.totalorder %s15, 3
    %p66 = por %p64, %p65
    %p67 = scmp.ne.s32.totalorder %s58, %s59
    %p68 = scmp.eq.s32.totalorder %s15, 0
    %p69 = por %p67, %p68
    %p70 = scmp.ne.s32.totalorder %s58, %s59
    %p71 = scmp.eq.s32.totalorder %s16, 3
    %p72 = por %p70, %p71
    %p74 = scmp.ne.s32.totalorder %s59, %s73
    %p75 = scmp.eq.s32.totalorder %s16, 0
    %p76 = por %p74, %p75
    %s78 = sadd.s32 %s77, 1
    %p81 = scmp.eq.s32.totalorder %s10, 3
    %p82 = scmp.ne.s32.totalorder %s77, %s79
    %p83 = scmp.eq.s32.totalorder %s10, 0
    %p84 = por %p82, %p83
    %p85 = scmp.ne.s32.totalorder %s77, %s79
    %p86 = scmp.eq.s32.totalorder %s15, 3
    %p87 = por %p85, %p86
    %p88 = scmp.ne.s32.totalorder %s79, %s80
    %p89 = scmp.eq.s32.totalorder %s15, 0
    %p90 = por %p88, %p89
    %p91 = scmp.ne.s32.totalorder %s79, %s80
    %p92 = scmp.eq.s32.totalorder %s16, 3
    %p93 = por %p91, %p92
    %p95 = scmp.ne.s32.totalorder %s80, %s94
    %p96 = scmp.eq.s32.totalorder %s16, 0
    %p97 = por %p95, %p96
    %s99 = sadd.s32 %s98, 1
    %p102 = scmp.eq.s32.totalorder %s10, 3
    %p103 = scmp.ne.s32.totalorder %s98, %s100
    %p104 = scmp.eq.s32.totalorder %s10, 0
    %p105 = por %p103, %p104
    %p106 = scmp.ne.s32.totalorder %s98, %s100
    %p107 = scmp.eq.s32.totalorder %s15, 3
    %p108 = por %p106, %p107
    %p109 = scmp.ne.s32.totalorder %s100, %s101
    %p110 = scmp.eq.s32.totalorder %s15, 0
    %p111 = por %p109, %p110
    %p112 = scmp.ne.s32.totalorder %s100, %s101
    %p113 = scmp.eq.s32.totalorder %s16, 3
    %p114 = por %p112, %p113
    %p116 = scmp.ne.s32.totalorder %s101, %s115
    %p117 = scmp.eq.s32.totalorder %s16, 0
    %p118 = por %p116, %p117
    %s119 = ssub.s32 %s17, %s29
    %s120 = ssub.s32 %s18, %s25
    %s121 = sor.u32 %s119, %s120
    %p122 = scmp.eq.s32.totalorder %s121, 0
    %s124 = sadd.s32 %s123, 1
    %s125 = scalar_select %p122, %s123, %s124
    %p128 = pneg %p122
    %p129 = scmp.eq.s32.totalorder %s10, 3
    %p130 = por %p128, %p129
    %p131 = scmp.ne.s32.totalorder %s123, %s126
    %p132 = scmp.eq.s32.totalorder %s10, 0
    %p133 = por %p131, %p132
    %p134 = scmp.ne.s32.totalorder %s123, %s126
    %p135 = scmp.eq.s32.totalorder %s15, 3
    %p136 = por %p134, %p135
    %p137 = scmp.ne.s32.totalorder %s126, %s127
    %p138 = scmp.eq.s32.totalorder %s15, 0
    %p139 = por %p137, %p138
    %p140 = scmp.ne.s32.totalorder %s126, %s127
    %p141 = scmp.eq.s32.totalorder %s16, 3
    %p142 = por %p140, %p141
    %p144 = scmp.ne.s32.totalorder %s127, %s143
    %p145 = scmp.eq.s32.totalorder %s16, 0
    %p146 = por %p144, %p145
    %p147 = scmp.le.s32.totalorder 1, %s10
    %p148 = scmp.lt.s32.totalorder %s10, 5
    %p149 = pnand %p147, %p148
    %p150 = pneg %p149
    // Predicated region
    $region9: #{bottleneck_forward.5} parent=5 // pred_check
      _
    $region10: #{bottleneck_forward.5} parent=5 // pred_check_branch
      %152 = sbr.rel (%p149) target = $region12
    $region11: #{bottleneck_forward.5} parent=5 // pred_region
      %s153 = ssub.s32 %s10, 1
      // Predicated region
      $region13: #{bottleneck_forward.5} parent=11 // pred_check
        %p154 = pneg %p69
      $region14: #{bottleneck_forward.5} parent=11 // pred_check_branch
        %156 = sbr.rel (%p154) target = $region16
      $region15: #{bottleneck_forward.5} parent=11 // pred_region
        _
      $region16: #{bottleneck_forward.5} parent=11 // pred_fallthru
        _
      // Predicated region
      $region17: #{bottleneck_forward.5} parent=11 // pred_check
        %p157 = pneg %p90
      $region18: #{bottleneck_forward.5} parent=11 // pred_check_branch
        %159 = sbr.rel (%p157) target = $region20
      $region19: #{bottleneck_forward.5} parent=11 // pred_region
        _
      $region20: #{bottleneck_forward.5} parent=11 // pred_fallthru
        _
      // Predicated region
      $region21: #{bottleneck_forward.5} parent=11 // pred_check
        %p160 = pneg %p111
      $region22: #{bottleneck_forward.5} parent=11 // pred_check_branch
        %162 = sbr.rel (%p160) target = $region24
      $region23: #{bottleneck_forward.5} parent=11 // pred_region
        _
      $region24: #{bottleneck_forward.5} parent=11 // pred_fallthru
        _
    $region12: #{bottleneck_forward.5} parent=5 // pred_fallthru
      _
    %p163 = scmp.lt.s32.totalorder %s10, 4
    // Predicated region
    $region25: #{bottleneck_forward.5} parent=5 // pred_check
      %p164 = pneg %p163
    $region26: #{bottleneck_forward.5} parent=5 // pred_check_branch
      %166 = sbr.rel (%p164) target = $region28
    $region27: #{bottleneck_forward.5} parent=5 // pred_region
      // Predicated region
      $region29: #{bottleneck_forward.5} parent=27 // pred_check
        %p167 = pneg %p42
      $region30: #{bottleneck_forward.5} parent=27 // pred_check_branch
        %169 = sbr.rel (%p167) target = $region32
      $region31: #{bottleneck_forward.5} parent=27 // pred_region
        %p170 = scmp.lt.s32.totalorder %s17, 1
        %s171 = scalar_select %p170, %s17, 1
        %s172 = smul.addr %s171, 54
        %s173 = smul.addr %s172, 4
        %s174 = scalar_lea.vmem %s0, %s173
      $region32: #{bottleneck_forward.5} parent=27 // pred_fallthru
        _
    $region28: #{bottleneck_forward.5} parent=5 // pred_fallthru
      _
    %p175 = scmp.le.s32.totalorder 1, %s10
    %p176 = scmp.lt.s32.totalorder %s10, 5
    %p177 = pnand %p175, %p176
    %p178 = pneg %p177
    // Predicated region
    $region33: #{bottleneck_forward.5} parent=5 // pred_check
      _
    $region34: #{bottleneck_forward.5} parent=5 // pred_check_branch
      %180 = sbr.rel (%p177) target = $region36
    $region35: #{bottleneck_forward.5} parent=5 // pred_region
      %s181 = ssub.s32 %s10, 1
      %p182 = scmp.lt.s32.totalorder %s19, 1
      %s183 = scalar_select %p182, %s19, 1
      %s184 = smul.addr %s183, 54
      %s185 = smul.addr %s184, 4
      %s186 = scalar_lea.vmem %s0, %s185
      %p187 = pneg %p48
      %p188 = pneg %p45
      %p189 = pneg %p69
      %p190 = pneg %p66
      %p191 = pneg %p90
      %p192 = pneg %p87
      %p193 = pneg %p111
      %p194 = pneg %p108
      %p195 = pneg %p139
      %p196 = pneg %p136
      %s197 = smul.u32 16, %s20
      %p198 = scmp.lt.s32.totalorder %s19, 1
      %s199 = scalar_select %p198, %s19, 1
      %p200 = scmp.lt.s32.totalorder %s197, 31
      %s201 = scalar_select %p200, %s197, 31
      %s202 = smul.addr %s199, 32
      %s203 = sadd.s32 %s201, %s202
      %s204 = smul.addr %s203, 4
      %s205 = scalar_lea.vmem %s4, %s204
      %p206 = scmp.lt.s32.totalorder %s19, 1
      %s207 = scalar_select %p206, %s19, 1
      %s208 = smul.addr %s207, 54
      %s209 = smul.addr %s208, 4
      %s210 = scalar_lea.vmem %s0, %s209
      %s211 = smul.u32 16, %s20
      %p212 = scmp.lt.s32.totalorder %s19, 1
      %s213 = scalar_select %p212, %s19, 1
      %p214 = scmp.lt.s32.totalorder %s211, 31
      %s215 = scalar_select %p214, %s211, 31
      %s216 = smul.addr %s213, 32
      %s217 = sadd.s32 %s215, %s216
      %s218 = smul.addr %s217, 4
      %s219 = scalar_lea.vmem %s4, %s218
      %s220 = smul.u32 16, %s20
      %s222 = smul.u32 %s20, 8
      %s223 = smul.u32 %s222, 3
      %s224 = smul.addr %s223, 4
      %s225 = scalar_lea.vmem %s210, %s224
      %v226 = vld [vmem:[%s225] sm:$0xf]
      %v227 = vld [vmem:[%s225 + $0x4] sm:$0xf]
      %v228 = vld [vmem:[%s225 + $0x8] sm:$0x1]
      %v229 = vld [vmem:[%s225 + $0xc] sm:$0xf]
      %v230 = vld [vmem:[%s225 + $0x10] sm:$0xf]
      %v231 = vld [vmem:[%s225 + $0x14] sm:$0x1]
      %v232 = vld [vmem:[%s225 + $0x18] sm:$0xf]
      %v233 = vld [vmem:[%s225 + $0x1c] sm:$0xf]
      %v234 = vld [vmem:[%s225 + $0x20] sm:$0x1]
      %v235 = vld [vmem:[%s225 + $0x24] sm:$0xf]
      %v236 = vld [vmem:[%s225 + $0x28] sm:$0xf]
      %v237 = vld [vmem:[%s225 + $0x2c] sm:$0x1]
      %v238 = vld [vmem:[%s225 + $0x30] sm:$0xf]
      %v239 = vld [vmem:[%s225 + $0x34] sm:$0xf]
      %v240 = vld [vmem:[%s225 + $0x38] sm:$0x1]
      %v241 = vld [vmem:[%s225 + $0x3c] sm:$0xf]
      %v242 = vld [vmem:[%s225 + $0x40] sm:$0xf]
      %v243 = vld [vmem:[%s225 + $0x44] sm:$0x1]
      %v244 = vld [vmem:[%s225 + $0x48] sm:$0xf]
      %v245 = vld [vmem:[%s225 + $0x4c] sm:$0xf]
      %v246 = vld [vmem:[%s225 + $0x50] sm:$0x1]
      %v247 = vld [vmem:[%s225 + $0x54] sm:$0xf]
      %v248 = vld [vmem:[%s225 + $0x58] sm:$0xf]
      %v249 = vld [vmem:[%s225 + $0x5c] sm:$0x1]
      %v250 = vld [vmem:[%s225 + $0x60] sm:$0xf]
      %v251 = vld [vmem:[%s225 + $0x64] sm:$0xf]
      %v252 = vld [vmem:[%s225 + $0x68] sm:$0x1]
      %v253 = vld [vmem:[%s225 + $0x6c] sm:$0xf]
      %v254 = vld [vmem:[%s225 + $0x70] sm:$0xf]
      %v255 = vld [vmem:[%s225 + $0x74] sm:$0x1]
      %v272 = vunpack.c.l.b16 %v226
      %v273 = vunpack.c.l.b16 %v227
      %v274 = vunpack.c.l.b16 %v229
      %v275 = vunpack.c.l.b16 %v230
      %v276 = vunpack.c.l.b16 %v232
      %v277 = vunpack.c.l.b16 %v233
      %v278 = vunpack.c.l.b16 %v235
      %v279 = vunpack.c.l.b16 %v236
      %v280 = vunpack.c.l.b16 %v238
      %v281 = vunpack.c.l.b16 %v239
      %v282 = vunpack.c.l.b16 %v241
      %v283 = vunpack.c.l.b16 %v242
      %v284 = vunpack.c.l.b16 %v244
      %v285 = vunpack.c.l.b16 %v245
      %v286 = vunpack.c.l.b16 %v247
      %v287 = vunpack.c.l.b16 %v248
      %v288 = vpack.c.b16 %v273, %v272
      %v289 = vpack.c.b16 %v275, %v274
      %v290 = vpack.c.b16 %v277, %v276
      %v291 = vpack.c.b16 %v279, %v278
      %v292 = vpack.c.b16 %v281, %v280
      %v293 = vpack.c.b16 %v283, %v282
      %v294 = vpack.c.b16 %v285, %v284
      %v295 = vpack.c.b16 %v287, %v286
      %v304 = vunpack.c.l.b16 %v228
      %v305 = vunpack.c.l.b16 %v231
      %v306 = vunpack.c.l.b16 %v234
      %v307 = vunpack.c.l.b16 %v237
      %v308 = vunpack.c.l.b16 %v240
      %v309 = vunpack.c.l.b16 %v243
      %v310 = vunpack.c.l.b16 %v246
      %v311 = vunpack.c.l.b16 %v249
      %v312 = vpack.c.b16 %v304, %v304
      %v313 = vpack.c.b16 %v305, %v305
      %v314 = vpack.c.b16 %v306, %v306
      %v315 = vpack.c.b16 %v307, %v307
      %v316 = vpack.c.b16 %v308, %v308
      %v317 = vpack.c.b16 %v309, %v309
      %v318 = vpack.c.b16 %v310, %v310
      %v319 = vpack.c.b16 %v311, %v311
      %vm320 = vsmask.f32 7424
      %v322 = vshrl.u32 %v288, 16
      %v324 = vshll.u32 %v288, 16
      %v326 = vrot.slane %v324, 1
      %v327 = vor.u32 %v322, %v326
      %v329 = vshll.u32 %v312, 16
      %v331 = vrot.slane %v329, 1
      %v332 = vsel %vm320, %v327, %v331
      %v334 = vshrl.u32 %v289, 16
      %v336 = vshll.u32 %v289, 16
      %v338 = vrot.slane %v336, 1
      %v339 = vor.u32 %v334, %v338
      %v341 = vshll.u32 %v313, 16
      %v343 = vrot.slane %v341, 1
      %v344 = vsel %vm320, %v339, %v343
      %v346 = vshrl.u32 %v290, 16
      %v348 = vshll.u32 %v290, 16
      %v350 = vrot.slane %v348, 1
      %v351 = vor.u32 %v346, %v350
      %v353 = vshll.u32 %v314, 16
      %v355 = vrot.slane %v353, 1
      %v356 = vsel %vm320, %v351, %v355
      %v358 = vshrl.u32 %v291, 16
      %v360 = vshll.u32 %v291, 16
      %v362 = vrot.slane %v360, 1
      %v363 = vor.u32 %v358, %v362
      %v365 = vshll.u32 %v315, 16
      %v367 = vrot.slane %v365, 1
      %v368 = vsel %vm320, %v363, %v367
      %v370 = vshrl.u32 %v292, 16
      %v372 = vshll.u32 %v292, 16
      %v374 = vrot.slane %v372, 1
      %v375 = vor.u32 %v370, %v374
      %v377 = vshll.u32 %v316, 16
      %v379 = vrot.slane %v377, 1
      %v380 = vsel %vm320, %v375, %v379
      %v382 = vshrl.u32 %v293, 16
      %v384 = vshll.u32 %v293, 16
      %v386 = vrot.slane %v384, 1
      %v387 = vor.u32 %v382, %v386
      %v389 = vshll.u32 %v317, 16
      %v391 = vrot.slane %v389, 1
      %v392 = vsel %vm320, %v387, %v391
      %v394 = vshrl.u32 %v294, 16
      %v396 = vshll.u32 %v294, 16
      %v398 = vrot.slane %v396, 1
      %v399 = vor.u32 %v394, %v398
      %v401 = vshll.u32 %v318, 16
      %v403 = vrot.slane %v401, 1
      %v404 = vsel %vm320, %v399, %v403
      %v406 = vshrl.u32 %v295, 16
      %v408 = vshll.u32 %v295, 16
      %v410 = vrot.slane %v408, 1
      %v411 = vor.u32 %v406, %v410
      %v413 = vshll.u32 %v319, 16
      %v415 = vrot.slane %v413, 1
      %v416 = vsel %vm320, %v411, %v415
      %417 = vrot.lane.b32.xlu0 %v332, 8
      %v418 = vpop.permute.xlu0 %417
      %419 = vrot.lane.b32.xlu0 %v344, 8
      %v420 = vpop.permute.xlu0 %419
      %421 = vrot.lane.b32.xlu0 %v356, 8
      %v422 = vpop.permute.xlu0 %421
      %423 = vrot.lane.b32.xlu0 %v368, 8
      %v424 = vpop.permute.xlu0 %423
      %425 = vrot.lane.b32.xlu0 %v380, 8
      %v426 = vpop.permute.xlu0 %425
      %427 = vrot.lane.b32.xlu0 %v392, 8
      %v428 = vpop.permute.xlu0 %427
      %429 = vrot.lane.b32.xlu0 %v404, 8
      %v430 = vpop.permute.xlu0 %429
      %431 = vrot.lane.b32.xlu0 %v416, 8
      %v432 = vpop.permute.xlu0 %431
      %vm433 = vcmask 1046528
      %v434 = vrot.slane %v288, 1
      %v435 = vrot.slane %v312, 1
      %v436 = vsel %vm433, %v434, %v435
      %v437 = vrot.slane %v289, 1
      %v438 = vrot.slane %v313, 1
      %v439 = vsel %vm433, %v437, %v438
      %v440 = vrot.slane %v290, 1
      %v441 = vrot.slane %v314, 1
      %v442 = vsel %vm433, %v440, %v441
      %v443 = vrot.slane %v291, 1
      %v444 = vrot.slane %v315, 1
      %v445 = vsel %vm433, %v443, %v444
      %v446 = vrot.slane %v292, 1
      %v447 = vrot.slane %v316, 1
      %v448 = vsel %vm433, %v446, %v447
      %v449 = vrot.slane %v293, 1
      %v450 = vrot.slane %v317, 1
      %v451 = vsel %vm433, %v449, %v450
      %v452 = vrot.slane %v294, 1
      %v453 = vrot.slane %v318, 1
      %v454 = vsel %vm433, %v452, %v453
      %v455 = vrot.slane %v295, 1
      %v456 = vrot.slane %v319, 1
      %v457 = vsel %vm433, %v455, %v456
      %458 = vrot.lane.b32.xlu0 %v436, 16
      %v459 = vpop.permute.xlu0 %458
      %460 = vrot.lane.b32.xlu0 %v439, 16
      %v461 = vpop.permute.xlu0 %460
      %462 = vrot.lane.b32.xlu0 %v442, 16
      %v463 = vpop.permute.xlu0 %462
      %464 = vrot.lane.b32.xlu0 %v445, 16
      %v465 = vpop.permute.xlu0 %464
      %466 = vrot.lane.b32.xlu0 %v448, 16
      %v467 = vpop.permute.xlu0 %466
      %468 = vrot.lane.b32.xlu0 %v451, 16
      %v469 = vpop.permute.xlu0 %468
      %470 = vrot.lane.b32.xlu0 %v454, 16
      %v471 = vpop.permute.xlu0 %470
      %472 = vrot.lane.b32.xlu0 %v457, 16
      %v473 = vpop.permute.xlu0 %472
      %vm474 = vcmask 64512
      %v476 = vsel %vm474, %v288, %v418
      %v478 = vsel %vm474, %v289, %v420
      %v480 = vsel %vm474, %v290, %v422
      %v482 = vsel %vm474, %v291, %v424
      %v484 = vsel %vm474, %v292, %v426
      %v486 = vsel %vm474, %v293, %v428
      %v488 = vsel %vm474, %v294, %v430
      %v490 = vsel %vm474, %v295, %v432
      %vm491 = vcmask 130048
      %v493 = vsel %vm491, %v476, %v459
      %v495 = vsel %vm491, %v478, %v461
      %v497 = vsel %vm491, %v480, %v463
      %v499 = vsel %vm491, %v482, %v465
      %v501 = vsel %vm491, %v484, %v467
      %v503 = vsel %vm491, %v486, %v469
      %v505 = vsel %vm491, %v488, %v471
      %v507 = vsel %vm491, %v490, %v473
      %v508 = vld [vmem:[%s1] sm:$0xf]
      %v509 = vld [vmem:[%s1 + $0x4] sm:$0xf]
      %v510 = vld [vmem:[%s1 + $0x8] sm:$0xf]
      %v513 = vunpack.c.l.b16 %v250
      %v514 = vunpack.c.l.b16 %v251
      %v515 = vpack.c.b16 %v514, %v513
      %v517 = vunpack.c.l.b16 %v252
      %v518 = vpack.c.b16 %v517, %v517
      %v520 = vshrl.u32 %v515, 16
      %v522 = vshll.u32 %v515, 16
      %v524 = vrot.slane %v522, 1
      %v525 = vor.u32 %v520, %v524
      %v527 = vshll.u32 %v518, 16
      %v529 = vrot.slane %v527, 1
      %v530 = vsel %vm320, %v525, %v529
      %531 = vrot.lane.b32.xlu0 %v530, 8
      %v532 = vpop.permute.xlu0 %531
      %v533 = vrot.slane %v515, 1
      %v534 = vrot.slane %v518, 1
      %v535 = vsel %vm433, %v533, %v534
      %536 = vrot.lane.b32.xlu0 %v535, 16
      %v537 = vpop.permute.xlu0 %536
      %v539 = vsel %vm474, %v515, %v532
      %v541 = vsel %vm491, %v539, %v537
      %s542 = scalar_lea.vmem %s1, 12
      %v543 = vld [vmem:[%s542] sm:$0xf]
      %v544 = vld [vmem:[%s542 + $0x4] sm:$0xf]
      %v545 = vld [vmem:[%s542 + $0x8] sm:$0xf]
      %v549 = vunpack.c.l.b16 %v543
      %v550 = vunpack.c.l.b16 %v544
      %v551 = vunpack.c.l.b16 %v545
      %v552 = vpack.c.b16 %v550, %v549
      %v553 = vpack.c.b16 %v551, %v551
      %vm555 = vcmask 195584
      %v556 = vsel %vm555, %v495, 0
      %v558 = vsel %vm555, %v497, 0
      %v560 = vsel %vm555, %v499, 0
      %v562 = vsel %vm555, %v501, 0
      %v564 = vsel %vm555, %v503, 0
      %v566 = vsel %vm555, %v505, 0
      %v568 = vsel %vm555, %v507, 0
      %v570 = vsel %vm555, %v541, 0
      %vm572 = vcmask 1043456
      %v574 = vsel %vm572, %v553, 0
      %576 = vmatprep.subr.bf16.mxu0 0
      %577 = vmatpush1.bf16.msra.mxu0 %v552
      %578 = vmatprep.subr.bf16.mxu0 0
      %579 = vmatpush1.bf16.msra.mxu0 %v574
      %580 = vmatprep.subr.bf16.mxu0 0
      %581 = vmatpush1.bf16.msra.mxu0 0
      %582 = vmatprep.subr.bf16.mxu0 0
      %583 = vmatpush1.bf16.msra.mxu0 0
      %584 = vmatprep.subr.bf16.mxu0 0
      %585 = vmatpush1.bf16.msra.mxu0 0
      %586 = vmatprep.subr.bf16.mxu0 0
      %587 = vmatpush1.bf16.msra.mxu0 0
      %588 = vmatprep.subr.bf16.mxu0 0
      %589 = vmatpush1.bf16.msra.mxu0 0
      %590 = vmatprep.subr.bf16.mxu0 0
      %591 = vmatpush1.bf16.msra.mxu0 0
      %592 = vmatprep.subr.bf16.mxu0 0
      %593 = vmatpush1.bf16.msra.mxu0 0
      %594 = vmatprep.subr.bf16.mxu0 0
      %595 = vmatpush1.bf16.msra.mxu0 0
      %596 = vmatprep.subr.bf16.mxu0 0
      %597 = vmatpush1.bf16.msra.mxu0 0
      %598 = vmatprep.subr.bf16.mxu0 0
      %599 = vmatpush1.bf16.msra.mxu0 0
      %600 = vmatprep.subr.bf16.mxu0 0
      %601 = vmatpush1.bf16.msra.mxu0 0
      %602 = vmatprep.subr.bf16.mxu0 0
      %603 = vmatpush1.bf16.msra.mxu0 0
      %604 = vmatprep.subr.bf16.mxu0 0
      %605 = vmatpush1.bf16.msra.mxu0 0
      %606 = vmatprep.subr.bf16.mxu0 0
      %607 = vmatpush1.bf16.msra.mxu0 0
      %608 = vmatprep.mubr.bf16.mxu0 0
      %609 = vmatmul.mubr.bf16.gmra.mrb[0].mxu0 %v556
      %v610 = vpop.f32.mrb[0].mxu0
      %v611 = vadd.f32 0.0, %v610
      %v612 = vpop.f32.mrb[0].mxu0
      %v613 = vpop.f32.mrb[0].mxu0
      %v614 = vadd.f32 0.0, %v613
      %v615 = vpop.f32.mrb[0].mxu0
      %616 = vmatprep.mubr.bf16.mxu0 0
      %617 = vmatmul.mubr.bf16.gmra.mrb[0].mxu0 %v558
      %v618 = vpop.f32.mrb[0].mxu0
      %v619 = vadd.f32 0.0, %v618
      %v620 = vpop.f32.mrb[0].mxu0
      %v621 = vpop.f32.mrb[0].mxu0
      %v622 = vadd.f32 0.0, %v621
      %v623 = vpop.f32.mrb[0].mxu0
      %624 = vmatprep.mubr.bf16.mxu0 0
      %625 = vmatmul.mubr.bf16.gmra.mrb[0].mxu0 %v560
      %v626 = vpop.f32.mrb[0].mxu0
      %v627 = vadd.f32 0.0, %v626
      %v628 = vpop.f32.mrb[0].mxu0
      %v629 = vpop.f32.mrb[0].mxu0
      %v630 = vadd.f32 0.0, %v629
      %v631 = vpop.f32.mrb[0].mxu0
      %632 = vmatprep.mubr.bf16.mxu0 0
      %633 = vmatmul.mubr.bf16.gmra.mrb[0].mxu0 %v562
      %v634 = vpop.f32.mrb[0].mxu0
      %v635 = vadd.f32 0.0, %v634
      %v636 = vpop.f32.mrb[0].mxu0
      %v637 = vpop.f32.mrb[0].mxu0
      %v638 = vadd.f32 0.0, %v637
      %v639 = vpop.f32.mrb[0].mxu0
      %640 = vmatprep.mubr.bf16.mxu0 0
      %641 = vmatmul.mubr.bf16.gmra.mrb[0].mxu0 %v564
      %v642 = vpop.f32.mrb[0].mxu0
      %v643 = vadd.f32 0.0, %v642
      %v644 = vpop.f32.mrb[0].mxu0
      %v645 = vpop.f32.mrb[0].mxu0
      %v646 = vadd.f32 0.0, %v645
      %v647 = vpop.f32.mrb[0].mxu0
      %648 = vmatprep.mubr.bf16.mxu0 0
      %649 = vmatmul.mubr.bf16.gmra.mrb[0].mxu0 %v566
      %v650 = vpop.f32.mrb[0].mxu0
      %v651 = vadd.f32 0.0, %v650
      %v652 = vpop.f32.mrb[0].mxu0
      %v653 = vpop.f32.mrb[0].mxu0
      %v654 = vadd.f32 0.0, %v653
      %v655 = vpop.f32.mrb[0].mxu0
      %656 = vmatprep.mubr.bf16.mxu0 0
      %657 = vmatmul.mubr.bf16.gmra.mrb[0].mxu0 %v568
      %v658 = vpop.f32.mrb[0].mxu0
      %v659 = vadd.f32 0.0, %v658
      %v660 = vpop.f32.mrb[0].mxu0
      %v661 = vpop.f32.mrb[0].mxu0
      %v662 = vadd.f32 0.0, %v661
      %v663 = vpop.f32.mrb[0].mxu0
      %664 = vmatprep.mubr.bf16.mxu0 0
      %665 = vmatmul.mubr.bf16.gmra.mrb[0].mxu0 %v570
      %v666 = vpop.f32.mrb[0].mxu0
      %v667 = vadd.f32 0.0, %v666
      %v668 = vpop.f32.mrb[0].mxu0
      %v669 = vpop.f32.mrb[0].mxu0
      %v670 = vadd.f32 0.0, %v669
      %v671 = vpop.f32.mrb[0].mxu0
      %672 = vdwg.mxu0
      %v676 = vunpack.c.l.b16 %v508
      %v677 = vunpack.c.l.b16 %v509
      %v678 = vunpack.c.l.b16 %v510
      %v679 = vpack.c.b16 %v677, %v676
      %v680 = vpack.c.b16 %v678, %v678
      %v682 = vsel %vm555, %v493, 0
      %v685 = vsel %vm572, %v680, 0
      %687 = vmatprep.subr.bf16.mxu0 0
      %688 = vmatpush1.bf16.msra.mxu0 %v679
      %689 = vmatprep.subr.bf16.mxu0 0
      %690 = vmatpush1.bf16.msra.mxu0 %v685
      %691 = vmatprep.subr.bf16.mxu0 0
      %692 = vmatpush1.bf16.msra.mxu0 0
      %693 = vmatprep.subr.bf16.mxu0 0
      %694 = vmatpush1.bf16.msra.mxu0 0
      %695 = vmatprep.subr.bf16.mxu0 0
      %696 = vmatpush1.bf16.msra.mxu0 0
      %697 = vmatprep.subr.bf16.mxu0 0
      %698 = vmatpush1.bf16.msra.mxu0 0
      %699 = vmatprep.subr.bf16.mxu0 0
      %700 = vmatpush1.bf16.msra.mxu0 0
      %701 = vmatprep.subr.bf16.mxu0 0
      %702 = vmatpush1.bf16.msra.mxu0 0
      %703 = vmatprep.subr.bf16.mxu0 0
      %704 = vmatpush1.bf16.msra.mxu0 0
      %705 = vmatprep.subr.bf16.mxu0 0
      %706 = vmatpush1.bf16.msra.mxu0 0
      %707 = vmatprep.subr.bf16.mxu0 0
      %708 = vmatpush1.bf16.msra.mxu0 0
      %709 = vmatprep.subr.bf16.mxu0 0
      %710 = vmatpush1.bf16.msra.mxu0 0
      %711 = vmatprep.subr.bf16.mxu0 0
      %712 = vmatpush1.bf16.msra.mxu0 0
      %713 = vmatprep.subr.bf16.mxu0 0
      %714 = vmatpush1.bf16.msra.mxu0 0
      %715 = vmatprep.subr.bf16.mxu0 0
      %716 = vmatpush1.bf16.msra.mxu0 0
      %717 = vmatprep.subr.bf16.mxu0 0
      %718 = vmatpush1.bf16.msra.mxu0 0
      %719 = vmatprep.mubr.bf16.mxu0 0
      %720 = vmatmul.mubr.bf16.gmra.mrb[0].mxu0 %v682
      %v721 = vpop.f32.mrb[0].mxu0
      %v722 = vadd.f32 %v611, %v721
      %v723 = vpop.f32.mrb[0].mxu0
      %v724 = vpop.f32.mrb[0].mxu0
      %v725 = vadd.f32 %v614, %v724
      %v726 = vpop.f32.mrb[0].mxu0
      %727 = vmatprep.mubr.bf16.mxu0 0
      %728 = vmatmul.mubr.bf16.gmra.mrb[0].mxu0 %v556
      %v729 = vpop.f32.mrb[0].mxu0
      %v730 = vadd.f32 %v619, %v729
      %v731 = vpop.f32.mrb[0].mxu0
      %v732 = vpop.f32.mrb[0].mxu0
      %v733 = vadd.f32 %v622, %v732
      %v734 = vpop.f32.mrb[0].mxu0
      %735 = vmatprep.mubr.bf16.mxu0 0
      %736 = vmatmul.mubr.bf16.gmra.mrb[0].mxu0 %v558
      %v737 = vpop.f32.mrb[0].mxu0
      %v738 = vadd.f32 %v627, %v737
      %v739 = vpop.f32.mrb[0].mxu0
      %v740 = vpop.f32.mrb[0].mxu0
      %v741 = vadd.f32 %v630, %v740
      %v742 = vpop.f32.mrb[0].mxu0
      %743 = vmatprep.mubr.bf16.mxu0 0
      %744 = vmatmul.mubr.bf16.gmra.mrb[0].mxu0 %v560
      %v745 = vpop.f32.mrb[0].mxu0
      %v746 = vadd.f32 %v635, %v745
      %v747 = vpop.f32.mrb[0].mxu0
      %v748 = vpop.f32.mrb[0].mxu0
      %v749 = vadd.f32 %v638, %v748
      %v750 = vpop.f32.mrb[0].mxu0
      %751 = vmatprep.mubr.bf16.mxu0 0
      %752 = vmatmul.mubr.bf16.gmra.mrb[0].mxu0 %v562
      %v753 = vpop.f32.mrb[0].mxu0
      %v754 = vadd.f32 %v643, %v753
      %v755 = vpop.f32.mrb[0].mxu0
      %v756 = vpop.f32.mrb[0].mxu0
      %v757 = vadd.f32 %v646, %v756
      %v758 = vpop.f32.mrb[0].mxu0
      %759 = vmatprep.mubr.bf16.mxu0 0
      %760 = vmatmul.mubr.bf16.gmra.mrb[0].mxu0 %v564
      %v761 = vpop.f32.mrb[0].mxu0
      %v762 = vadd.f32 %v651, %v761
      %v763 = vpop.f32.mrb[0].mxu0
      %v764 = vpop.f32.mrb[0].mxu0
      %v765 = vadd.f32 %v654, %v764
      %v766 = vpop.f32.mrb[0].mxu0
      %767 = vmatprep.mubr.bf16.mxu0 0
      %768 = vmatmul.mubr.bf16.gmra.mrb[0].mxu0 %v566
      %v769 = vpop.f32.mrb[0].mxu0
      %v770 = vadd.f32 %v659, %v769
      %v771 = vpop.f32.mrb[0].mxu0
      %v772 = vpop.f32.mrb[0].mxu0
      %v773 = vadd.f32 %v662, %v772
      %v774 = vpop.f32.mrb[0].mxu0
      %775 = vmatprep.mubr.bf16.mxu0 0
      %776 = vmatmul.mubr.bf16.gmra.mrb[0].mxu0 %v568
      %v777 = vpop.f32.mrb[0].mxu0
      %v778 = vadd.f32 %v667, %v777
      %v779 = vpop.f32.mrb[0].mxu0
      %v780 = vpop.f32.mrb[0].mxu0
      %v781 = vadd.f32 %v670, %v780
      %v782 = vpop.f32.mrb[0].mxu0
      %783 = vdwg.mxu0
      %v786 = vunpack.c.l.b16 %v253
      %v787 = vunpack.c.l.b16 %v254
      %v788 = vpack.c.b16 %v787, %v786
      %v790 = vunpack.c.l.b16 %v255
      %v791 = vpack.c.b16 %v790, %v790
      %v793 = vshrl.u32 %v788, 16
      %v795 = vshll.u32 %v788, 16
      %v797 = vrot.slane %v795, 1
      %v798 = vor.u32 %v793, %v797
      %v800 = vshll.u32 %v791, 16
      %v802 = vrot.slane %v800, 1
      %v803 = vsel %vm320, %v798, %v802
      %804 = vrot.lane.b32.xlu0 %v803, 8
      %v805 = vpop.permute.xlu0 %804
      %v806 = vrot.slane %v788, 1
      %v807 = vrot.slane %v791, 1
      %v808 = vsel %vm433, %v806, %v807
      %809 = vrot.lane.b32.xlu0 %v808, 16
      %v810 = vpop.permute.xlu0 %809
      %v812 = vsel %vm474, %v788, %v805
      %v814 = vsel %vm491, %v812, %v810
      %s815 = scalar_lea.vmem %s1, 24
      %v816 = vld [vmem:[%s815] sm:$0xf]
      %v817 = vld [vmem:[%s815 + $0x4] sm:$0xf]
      %v818 = vld [vmem:[%s815 + $0x8] sm:$0xf]
      %v822 = vunpack.c.l.b16 %v816
      %v823 = vunpack.c.l.b16 %v817
      %v824 = vunpack.c.l.b16 %v818
      %v825 = vpack.c.b16 %v823, %v822
      %v826 = vpack.c.b16 %v824, %v824
      %v828 = vsel %vm555, %v814, 0
      %v831 = vsel %vm572, %v826, 0
      %833 = vmatprep.subr.bf16.mxu0 0
      %834 = vmatpush1.bf16.msra.mxu0 %v825
      %835 = vmatprep.subr.bf16.mxu0 0
      %836 = vmatpush1.bf16.msra.mxu0 %v831
      %837 = vmatprep.subr.bf16.mxu0 0
      %838 = vmatpush1.bf16.msra.mxu0 0
      %839 = vmatprep.subr.bf16.mxu0 0
      %840 = vmatpush1.bf16.msra.mxu0 0
      %841 = vmatprep.subr.bf16.mxu0 0
      %842 = vmatpush1.bf16.msra.mxu0 0
      %843 = vmatprep.subr.bf16.mxu0 0
      %844 = vmatpush1.bf16.msra.mxu0 0
      %845 = vmatprep.subr.bf16.mxu0 0
      %846 = vmatpush1.bf16.msra.mxu0 0
      %847 = vmatprep.subr.bf16.mxu0 0
      %848 = vmatpush1.bf16.msra.mxu0 0
      %849 = vmatprep.subr.bf16.mxu0 0
      %850 = vmatpush1.bf16.msra.mxu0 0
      %851 = vmatprep.subr.bf16.mxu0 0
      %852 = vmatpush1.bf16.msra.mxu0 0
      %853 = vmatprep.subr.bf16.mxu0 0
      %854 = vmatpush1.bf16.msra.mxu0 0
      %855 = vmatprep.subr.bf16.mxu0 0
      %856 = vmatpush1.bf16.msra.mxu0 0
      %857 = vmatprep.subr.bf16.mxu0 0
      %858 = vmatpush1.bf16.msra.mxu0 0
      %859 = vmatprep.subr.bf16.mxu0 0
      %860 = vmatpush1.bf16.msra.mxu0 0
      %861 = vmatprep.subr.bf16.mxu0 0
      %862 = vmatpush1.bf16.msra.mxu0 0
      %863 = vmatprep.subr.bf16.mxu0 0
      %864 = vmatpush1.bf16.msra.mxu0 0
      %865 = vmatprep.mubr.bf16.mxu0 0
      %866 = vmatmul.mubr.bf16.gmra.mrb[0].mxu0 %v558
      %v867 = vpop.f32.mrb[0].mxu0
      %v868 = vadd.f32 0.0, %v867
      %v869 = vpop.f32.mrb[0].mxu0
      %v870 = vpop.f32.mrb[0].mxu0
      %v871 = vadd.f32 0.0, %v870
      %v872 = vpop.f32.mrb[0].mxu0
      %873 = vmatprep.mubr.bf16.mxu0 0
      %874 = vmatmul.mubr.bf16.gmra.mrb[0].mxu0 %v560
      %v875 = vpop.f32.mrb[0].mxu0
      %v876 = vadd.f32 0.0, %v875
      %v877 = vpop.f32.mrb[0].mxu0
      %v878 = vpop.f32.mrb[0].mxu0
      %v879 = vadd.f32 0.0, %v878
      %v880 = vpop.f32.mrb[0].mxu0
      %881 = vmatprep.mubr.bf16.mxu0 0
      %882 = vmatmul.mubr.bf16.gmra.mrb[0].mxu0 %v562
      %v883 = vpop.f32.mrb[0].mxu0
      %v884 = vadd.f32 0.0, %v883
      %v885 = vpop.f32.mrb[0].mxu0
      %v886 = vpop.f32.mrb[0].mxu0
      %v887 = vadd.f32 0.0, %v886
      %v888 = vpop.f32.mrb[0].mxu0
      %889 = vmatprep.mubr.bf16.mxu0 0
      %890 = vmatmul.mubr.bf16.gmra.mrb[0].mxu0 %v564
      %v891 = vpop.f32.mrb[0].mxu0
      %v892 = vadd.f32 0.0, %v891
      %v893 = vpop.f32.mrb[0].mxu0
      %v894 = vpop.f32.mrb[0].mxu0
      %v895 = vadd.f32 0.0, %v894
      %v896 = vpop.f32.mrb[0].mxu0
      %897 = vmatprep.mubr.bf16.mxu0 0
      %898 = vmatmul.mubr.bf16.gmra.mrb[0].mxu0 %v566
      %v899 = vpop.f32.mrb[0].mxu0
      %v900 = vadd.f32 0.0, %v899
      %v901 = vpop.f32.mrb[0].mxu0
      %v902 = vpop.f32.mrb[0].mxu0
      %v903 = vadd.f32 0.0, %v902
      %v904 = vpop.f32.mrb[0].mxu0
      %905 = vmatprep.mubr.bf16.mxu0 0
      %906 = vmatmul.mubr.bf16.gmra.mrb[0].mxu0 %v568
      %v907 = vpop.f32.mrb[0].mxu0
      %v908 = vadd.f32 0.0, %v907
      %v909 = vpop.f32.mrb[0].mxu0
      %v910 = vpop.f32.mrb[0].mxu0
      %v911 = vadd.f32 0.0, %v910
      %v912 = vpop.f32.mrb[0].mxu0
      %913 = vmatprep.mubr.bf16.mxu0 0
      %914 = vmatmul.mubr.bf16.gmra.mrb[0].mxu0 %v570
      %v915 = vpop.f32.mrb[0].mxu0
      %v916 = vadd.f32 0.0, %v915
      %v917 = vpop.f32.mrb[0].mxu0
      %v918 = vpop.f32.mrb[0].mxu0
      %v919 = vadd.f32 0.0, %v918
      %v920 = vpop.f32.mrb[0].mxu0
      %921 = vmatprep.mubr.bf16.mxu0 0
      %922 = vmatmul.mubr.bf16.gmra.mrb[0].mxu0 %v828
      %v923 = vpop.f32.mrb[0].mxu0
      %v924 = vadd.f32 0.0, %v923
      %v925 = vpop.f32.mrb[0].mxu0
      %v926 = vpop.f32.mrb[0].mxu0
      %v927 = vadd.f32 0.0, %v926
      %v928 = vpop.f32.mrb[0].mxu0
      %929 = vdwg.mxu0
      %v930 = vadd.f32 %v722, %v868
      %v931 = vadd.f32 %v725, %v871
      %v932 = vadd.f32 %v730, %v876
      %v933 = vadd.f32 %v733, %v879
      %v934 = vadd.f32 %v738, %v884
      %v935 = vadd.f32 %v741, %v887
      %v936 = vadd.f32 %v746, %v892
      %v937 = vadd.f32 %v749, %v895
      %v938 = vadd.f32 %v754, %v900
      %v939 = vadd.f32 %v757, %v903
      %v940 = vadd.f32 %v762, %v908
      %v941 = vadd.f32 %v765, %v911
      %v942 = vadd.f32 %v770, %v916
      %v943 = vadd.f32 %v773, %v919
      %v944 = vadd.f32 %v778, %v924
      %v945 = vadd.f32 %v781, %v927
      %v946 = vld [vmem:[%s2] sm:$0x1]
      %v948 = vlaneseq
      %v949 = vshrl.u32 %v948, 7
      %v950 = vsub.s32 0, %v949
      %v951 = vrot.slane %v946, %v950
      %v953 = vmul.f32 %v930, %v951
      %v954 = vmul.f32 %v931, %v951
      %v955 = vmul.f32 %v932, %v951
      %v956 = vmul.f32 %v933, %v951
      %v957 = vmul.f32 %v934, %v951
      %v958 = vmul.f32 %v935, %v951
      %v959 = vmul.f32 %v936, %v951
      %v960 = vmul.f32 %v937, %v951
      %v961 = vmul.f32 %v938, %v951
      %v962 = vmul.f32 %v939, %v951
      %v963 = vmul.f32 %v940, %v951
      %v964 = vmul.f32 %v941, %v951
      %v965 = vmul.f32 %v942, %v951
      %v966 = vmul.f32 %v943, %v951
      %v967 = vmul.f32 %v944, %v951
      %v968 = vmul.f32 %v945, %v951
      %v969 = vld [vmem:[%s3] sm:$0x1]
      %v971 = vlaneseq
      %v972 = vshrl.u32 %v971, 7
      %v973 = vsub.s32 0, %v972
      %v974 = vrot.slane %v969, %v973
      %v976 = vadd.f32 %v953, %v974
      %v977 = vadd.f32 %v954, %v974
      %v978 = vadd.f32 %v955, %v974
      %v979 = vadd.f32 %v956, %v974
      %v980 = vadd.f32 %v957, %v974
      %v981 = vadd.f32 %v958, %v974
      %v982 = vadd.f32 %v959, %v974
      %v983 = vadd.f32 %v960, %v974
      %v984 = vadd.f32 %v961, %v974
      %v985 = vadd.f32 %v962, %v974
      %v986 = vadd.f32 %v963, %v974
      %v987 = vadd.f32 %v964, %v974
      %v988 = vadd.f32 %v965, %v974
      %v989 = vadd.f32 %v966, %v974
      %v990 = vadd.f32 %v967, %v974
      %v991 = vadd.f32 %v968, %v974
      %v992 = vmax.f32 %v976, 0.0
      %v993 = vmax.f32 %v977, 0.0
      %v994 = vmax.f32 %v978, 0.0
      %v995 = vmax.f32 %v979, 0.0
      %v996 = vmax.f32 %v980, 0.0
      %v997 = vmax.f32 %v981, 0.0
      %v998 = vmax.f32 %v982, 0.0
      %v999 = vmax.f32 %v983, 0.0
      %v1000 = vmax.f32 %v984, 0.0
      %v1001 = vmax.f32 %v985, 0.0
      %v1002 = vmax.f32 %v986, 0.0
      %v1003 = vmax.f32 %v987, 0.0
      %v1004 = vmax.f32 %v988, 0.0
      %v1005 = vmax.f32 %v989, 0.0
      %v1006 = vmax.f32 %v990, 0.0
      %v1007 = vmax.f32 %v991, 0.0
      %v1008 = vpack.c.bf16 %v993, %v992
      %v1009 = vpack.c.bf16 %v995, %v994
      %v1010 = vpack.c.bf16 %v997, %v996
      %v1011 = vpack.c.bf16 %v999, %v998
      %v1012 = vpack.c.bf16 %v1001, %v1000
      %v1013 = vpack.c.bf16 %v1003, %v1002
      %v1014 = vpack.c.bf16 %v1005, %v1004
      %v1015 = vpack.c.bf16 %v1007, %v1006
      %v1024 = vunpack.c.l.b16 %v1008
      %v1025 = vunpack.c.h.b16 %v1008
      %v1026 = vunpack.c.l.b16 %v1009
      %v1027 = vunpack.c.h.b16 %v1009
      %v1028 = vunpack.c.l.b16 %v1010
      %v1029 = vunpack.c.h.b16 %v1010
      %v1030 = vunpack.c.l.b16 %v1011
      %v1031 = vunpack.c.h.b16 %v1011
      %v1032 = vunpack.c.l.b16 %v1012
      %v1033 = vunpack.c.h.b16 %v1012
      %v1034 = vunpack.c.l.b16 %v1013
      %v1035 = vunpack.c.h.b16 %v1013
      %v1036 = vunpack.c.l.b16 %v1014
      %v1037 = vunpack.c.h.b16 %v1014
      %v1038 = vunpack.c.l.b16 %v1015
      %v1039 = vunpack.c.h.b16 %v1015
      %v1040 = vpack.c.b16 %v1024, %v1024
      %v1041 = vpack.c.b16 %v1025, %v1025
      %v1042 = vpack.c.b16 %v1026, %v1026
      %v1043 = vpack.c.b16 %v1027, %v1027
      %v1044 = vpack.c.b16 %v1028, %v1028
      %v1045 = vpack.c.b16 %v1029, %v1029
      %v1046 = vpack.c.b16 %v1030, %v1030
      %v1047 = vpack.c.b16 %v1031, %v1031
      %v1048 = vpack.c.b16 %v1032, %v1032
      %v1049 = vpack.c.b16 %v1033, %v1033
      %v1050 = vpack.c.b16 %v1034, %v1034
      %v1051 = vpack.c.b16 %v1035, %v1035
      %v1052 = vpack.c.b16 %v1036, %v1036
      %v1053 = vpack.c.b16 %v1037, %v1037
      %v1054 = vpack.c.b16 %v1038, %v1038
      %v1055 = vpack.c.b16 %v1039, %v1039
      %vm1072 = vcmask 60416
      %1073 = vst.msk [vmem:[%s219] sm:$0xf] %vm1072, %v1040
      %1074 = vst.msk [vmem:[%s219 + $0x4] sm:$0xf] %vm1072, %v1041
      %1075 = vst.msk [vmem:[%s219 + $0x8] sm:$0xf] %vm1072, %v1042
      %1076 = vst.msk [vmem:[%s219 + $0xc] sm:$0xf] %vm1072, %v1043
      %1077 = vst.msk [vmem:[%s219 + $0x10] sm:$0xf] %vm1072, %v1044
      %1078 = vst.msk [vmem:[%s219 + $0x14] sm:$0xf] %vm1072, %v1045
      %1079 = vst.msk [vmem:[%s219 + $0x18] sm:$0xf] %vm1072, %v1046
      %1080 = vst.msk [vmem:[%s219 + $0x1c] sm:$0xf] %vm1072, %v1047
      %1081 = vst.msk [vmem:[%s219 + $0x20] sm:$0xf] %vm1072, %v1048
      %1082 = vst.msk [vmem:[%s219 + $0x24] sm:$0xf] %vm1072, %v1049
      %1083 = vst.msk [vmem:[%s219 + $0x28] sm:$0xf] %vm1072, %v1050
      %1084 = vst.msk [vmem:[%s219 + $0x2c] sm:$0xf] %vm1072, %v1051
      %1085 = vst.msk [vmem:[%s219 + $0x30] sm:$0xf] %vm1072, %v1052
      %1086 = vst.msk [vmem:[%s219 + $0x34] sm:$0xf] %vm1072, %v1053
      %1087 = vst.msk [vmem:[%s219 + $0x38] sm:$0xf] %vm1072, %v1054
      %1088 = vst.msk [vmem:[%s219 + $0x3c] sm:$0xf] %vm1072, %v1055
      %s1089 = smul.u32 16, %s20
      %p1090 = scmp.lt.s32.totalorder %s19, 1
      %s1091 = scalar_select %p1090, %s19, 1
      %p1092 = scmp.lt.s32.totalorder %s1089, 31
      %s1093 = scalar_select %p1092, %s1089, 31
      %s1094 = smul.addr %s1091, 32
      %s1095 = sadd.s32 %s1093, %s1094
      %s1096 = smul.addr %s1095, 4
      %s1097 = scalar_lea.vmem %s4, %s1096
      // Predicated region
      $region37: #{bottleneck_forward.5} parent=35 // pred_check
        %p1098 = pneg %p136
      $region38: #{bottleneck_forward.5} parent=35 // pred_check_branch
        %1100 = sbr.rel (%p1098) target = $region40
      $region39: #{bottleneck_forward.5} parent=35 // pred_region
        %s1101 = smul.u32 16, %s20
      $region40: #{bottleneck_forward.5} parent=35 // pred_fallthru
        _
    $region36: #{bottleneck_forward.5} parent=5 // pred_fallthru
      _
    %p1102 = scmp.le.s32.totalorder 2, %s10
    // Predicated region
    $region41: #{bottleneck_forward.5} parent=5 // pred_check
      %p1103 = pneg %p1102
    $region42: #{bottleneck_forward.5} parent=5 // pred_check_branch
      %1105 = sbr.rel (%p1103) target = $region44
    $region43: #{bottleneck_forward.5} parent=5 // pred_region
      %s1106 = ssub.s32 %s10, 2
      // Predicated region
      $region45: #{bottleneck_forward.5} parent=43 // pred_check
        %p1107 = pneg %p142
      $region46: #{bottleneck_forward.5} parent=43 // pred_check_branch
        %1109 = sbr.rel (%p1107) target = $region48
      $region47: #{bottleneck_forward.5} parent=43 // pred_region
        %s1110 = smul.u32 16, %s22
        %p1111 = scmp.lt.s32.totalorder %s21, 1
        %s1112 = scalar_select %p1111, %s21, 1
        %p1113 = scmp.lt.s32.totalorder %s1110, 31
        %s1114 = scalar_select %p1113, %s1110, 31
        %s1115 = smul.addr %s1112, 32
        %s1116 = sadd.s32 %s1114, %s1115
        %s1117 = smul.addr %s1116, 4
        %s1118 = scalar_lea.vmem %s4, %s1117
      $region48: #{bottleneck_forward.5} parent=43 // pred_fallthru
        _
    $region44: #{bottleneck_forward.5} parent=5 // pred_fallthru
      _
  $region6: #{bottleneck_forward.5} parent=0 // loop_footer
    %s14 = sadd.s32 1, %s10
  $region7: #{bottleneck_forward.5} parent=0 // loop_footer_branch
    %9 = sbr.rel target = $region3
  $region8: #{bottleneck_forward.5} parent=0 // loop_exit
    _

// kernel: bottleneck_forward.4
$region0: #{bottleneck_forward.4}
  #allocation0 [shape = 'u32[]', space=smem, size = 0x4, offset = 0x4, fixed_abs, tag = 'smem constant byte address 0x4 - core index']
  #allocation1 [shape = 'u32[144,128]{1,0:T(1,128)}', space=vmem, size = 0x12000, scoped, tag = 'internal scratch']
  %s0 = inlined_call_operand.vmem [shape: bf16[512,16], index: 0, kind: input, shape index: {}]
  %s1 = inlined_call_operand.vmem [shape: bf16[16,8], index: 1, kind: input, shape index: {}]
  %s2 = inlined_call_operand.vmem [shape: f32[1,8], index: 2, kind: input, shape index: {}]
  %s3 = inlined_call_operand.vmem [shape: f32[1,8], index: 3, kind: input, shape index: {}]
  %s4 = inlined_call_operand.vmem [shape: bf16[512,8], index: 4, kind: output, shape index: {}]
  %s5 = sld [smem:[#allocation0]]
  $region26: #{bottleneck_forward.4} parent=0
    _
  %s7 = ssub.s32 1, %s5
  %s8 = scalar_select 0, %s7, %s5
  // Predicated region
  $region2: #{bottleneck_forward.4} parent=0 // pred_check
    _
  $region3: #{bottleneck_forward.4} parent=0 // pred_check_branch
    %10 = sbr.rel (0) target = $region5
  $region4: #{bottleneck_forward.4} parent=0 // pred_region
    _
  $region5: #{bottleneck_forward.4} parent=0 // pred_fallthru
    _
  // Predicated region
  $region6: #{bottleneck_forward.4} parent=0 // pred_check
    _
  $region7: #{bottleneck_forward.4} parent=0 // pred_check_branch
    %12 = sbr.rel (0) target = $region9
  $region8: #{bottleneck_forward.4} parent=0 // pred_region
    _
  $region9: #{bottleneck_forward.4} parent=0 // pred_fallthru
    _
  // Predicated region
  $region10: #{bottleneck_forward.4} parent=0 // pred_check
    _
  $region11: #{bottleneck_forward.4} parent=0 // pred_check_branch
    %14 = sbr.rel (0) target = $region13
  $region12: #{bottleneck_forward.4} parent=0 // pred_region
    _
  $region13: #{bottleneck_forward.4} parent=0 // pred_fallthru
    _
  // Predicated region
  $region14: #{bottleneck_forward.4} parent=0 // pred_check
    _
  $region15: #{bottleneck_forward.4} parent=0 // pred_check_branch
    %16 = sbr.rel (0) target = $region17
  $region16: #{bottleneck_forward.4} parent=0 // pred_region
    _
  $region17: #{bottleneck_forward.4} parent=0 // pred_fallthru
    _
  %v18 = vld [vmem:[%s0] sm:$0xf]
  %v19 = vld [vmem:[%s0 + $0x4] sm:$0xf]
  %v20 = vld [vmem:[%s0 + $0x8] sm:$0xf]
  %v21 = vld [vmem:[%s0 + $0xc] sm:$0xf]
  %v22 = vld [vmem:[%s0 + $0x10] sm:$0xf]
  %v23 = vld [vmem:[%s0 + $0x14] sm:$0xf]
  %v24 = vld [vmem:[%s0 + $0x18] sm:$0xf]
  %v25 = vld [vmem:[%s0 + $0x1c] sm:$0xf]
  %v26 = vld [vmem:[%s0 + $0x20] sm:$0xf]
  %v27 = vld [vmem:[%s0 + $0x24] sm:$0xf]
  %v28 = vld [vmem:[%s0 + $0x28] sm:$0xf]
  %v29 = vld [vmem:[%s0 + $0x2c] sm:$0xf]
  %v30 = vld [vmem:[%s0 + $0x30] sm:$0xf]
  %v31 = vld [vmem:[%s0 + $0x34] sm:$0xf]
  %v32 = vld [vmem:[%s0 + $0x38] sm:$0xf]
  %v33 = vld [vmem:[%s0 + $0x3c] sm:$0xf]
  %v34 = vld [vmem:[%s0 + $0x40] sm:$0xf]
  %v35 = vld [vmem:[%s0 + $0x44] sm:$0xf]
  %v36 = vld [vmem:[%s0 + $0x48] sm:$0xf]
  %v37 = vld [vmem:[%s0 + $0x4c] sm:$0xf]
  %v38 = vld [vmem:[%s0 + $0x50] sm:$0xf]
  %v39 = vld [vmem:[%s0 + $0x54] sm:$0xf]
  %v40 = vld [vmem:[%s0 + $0x58] sm:$0xf]
  %v41 = vld [vmem:[%s0 + $0x5c] sm:$0xf]
  %v42 = vld [vmem:[%s0 + $0x60] sm:$0xf]
  %v43 = vld [vmem:[%s0 + $0x64] sm:$0xf]
  %v44 = vld [vmem:[%s0 + $0x68] sm:$0xf]
  %v45 = vld [vmem:[%s0 + $0x6c] sm:$0xf]
  %v46 = vld [vmem:[%s0 + $0x70] sm:$0xf]
  %v47 = vld [vmem:[%s0 + $0x74] sm:$0xf]
  %v48 = vld [vmem:[%s0 + $0x78] sm:$0xf]
  %v49 = vld [vmem:[%s0 + $0x7c] sm:$0xf]
  %v50 = vld [vmem:[%s0 + $0x80] sm:$0xf]
  %v51 = vld [vmem:[%s0 + $0x84] sm:$0xf]
  %v52 = vld [vmem:[%s0 + $0x88] sm:$0xf]
  %v53 = vld [vmem:[%s0 + $0x8c] sm:$0xf]
  %v54 = vld [vmem:[%s0 + $0x90] sm:$0xf]
  %v55 = vld [vmem:[%s0 + $0x94] sm:$0xf]
  %v56 = vld [vmem:[%s0 + $0x98] sm:$0xf]
  %v57 = vld [vmem:[%s0 + $0x9c] sm:$0xf]
  %v58 = vld [vmem:[%s0 + $0xa0] sm:$0xf]
  %v59 = vld [vmem:[%s0 + $0xa4] sm:$0xf]
  %v60 = vld [vmem:[%s0 + $0xa8] sm:$0xf]
  %v61 = vld [vmem:[%s0 + $0xac] sm:$0xf]
  %v62 = vld [vmem:[%s0 + $0xb0] sm:$0xf]
  %v63 = vld [vmem:[%s0 + $0xb4] sm:$0xf]
  %v64 = vld [vmem:[%s0 + $0xb8] sm:$0xf]
  %v65 = vld [vmem:[%s0 + $0xbc] sm:$0xf]
  %v66 = vld [vmem:[%s0 + $0xc0] sm:$0xf]
  %v67 = vld [vmem:[%s0 + $0xc4] sm:$0xf]
  %v68 = vld [vmem:[%s0 + $0xc8] sm:$0xf]
  %v69 = vld [vmem:[%s0 + $0xcc] sm:$0xf]
  %v70 = vld [vmem:[%s0 + $0xd0] sm:$0xf]
  %v71 = vld [vmem:[%s0 + $0xd4] sm:$0xf]
  %v72 = vld [vmem:[%s0 + $0xd8] sm:$0xf]
  %v73 = vld [vmem:[%s0 + $0xdc] sm:$0xf]
  %v74 = vld [vmem:[%s0 + $0xe0] sm:$0xf]
  %v75 = vld [vmem:[%s0 + $0xe4] sm:$0xf]
  %v76 = vld [vmem:[%s0 + $0xe8] sm:$0xf]
  %v77 = vld [vmem:[%s0 + $0xec] sm:$0xf]
  %v78 = vld [vmem:[%s0 + $0xf0] sm:$0xf]
  %v79 = vld [vmem:[%s0 + $0xf4] sm:$0xf]
  %v80 = vld [vmem:[%s0 + $0xf8] sm:$0xf]
  %v81 = vld [vmem:[%s0 + $0xfc] sm:$0xf]
  %v82 = vld [vmem:[%s1] sm:$0xf]
  %v83 = vld [vmem:[%s1 + $0x4] sm:$0xf]
  %v148 = vunpack.c.l.b16 %v18
  %v149 = vunpack.c.l.b16 %v19
  %v150 = vunpack.c.l.b16 %v20
  %v151 = vunpack.c.l.b16 %v21
  %v152 = vunpack.c.l.b16 %v22
  %v153 = vunpack.c.l.b16 %v23
  %v154 = vunpack.c.l.b16 %v24
  %v155 = vunpack.c.l.b16 %v25
  %v156 = vunpack.c.l.b16 %v26
  %v157 = vunpack.c.l.b16 %v27
  %v158 = vunpack.c.l.b16 %v28
  %v159 = vunpack.c.l.b16 %v29
  %v160 = vunpack.c.l.b16 %v30
  %v161 = vunpack.c.l.b16 %v31
  %v162 = vunpack.c.l.b16 %v32
  %v163 = vunpack.c.l.b16 %v33
  %v164 = vunpack.c.l.b16 %v34
  %v165 = vunpack.c.l.b16 %v35
  %v166 = vunpack.c.l.b16 %v36
  %v167 = vunpack.c.l.b16 %v37
  %v168 = vunpack.c.l.b16 %v38
  %v169 = vunpack.c.l.b16 %v39
  %v170 = vunpack.c.l.b16 %v40
  %v171 = vunpack.c.l.b16 %v41
  %v172 = vunpack.c.l.b16 %v42
  %v173 = vunpack.c.l.b16 %v43
  %v174 = vunpack.c.l.b16 %v44
  %v175 = vunpack.c.l.b16 %v45
  %v176 = vunpack.c.l.b16 %v46
  %v177 = vunpack.c.l.b16 %v47
  %v178 = vunpack.c.l.b16 %v48
  %v179 = vunpack.c.l.b16 %v49
  %v180 = vunpack.c.l.b16 %v50
  %v181 = vunpack.c.l.b16 %v51
  %v182 = vunpack.c.l.b16 %v52
  %v183 = vunpack.c.l.b16 %v53
  %v184 = vunpack.c.l.b16 %v54
  %v185 = vunpack.c.l.b16 %v55
  %v186 = vunpack.c.l.b16 %v56
  %v187 = vunpack.c.l.b16 %v57
  %v188 = vunpack.c.l.b16 %v58
  %v189 = vunpack.c.l.b16 %v59
  %v190 = vunpack.c.l.b16 %v60
  %v191 = vunpack.c.l.b16 %v61
  %v192 = vunpack.c.l.b16 %v62
  %v193 = vunpack.c.l.b16 %v63
  %v194 = vunpack.c.l.b16 %v64
  %v195 = vunpack.c.l.b16 %v65
  %v196 = vunpack.c.l.b16 %v66
  %v197 = vunpack.c.l.b16 %v67
  %v198 = vunpack.c.l.b16 %v68
  %v199 = vunpack.c.l.b16 %v69
  %v200 = vunpack.c.l.b16 %v70
  %v201 = vunpack.c.l.b16 %v71
  %v202 = vunpack.c.l.b16 %v72
  %v203 = vunpack.c.l.b16 %v73
  %v204 = vunpack.c.l.b16 %v74
  %v205 = vunpack.c.l.b16 %v75
  %v206 = vunpack.c.l.b16 %v76
  %v207 = vunpack.c.l.b16 %v77
  %v208 = vunpack.c.l.b16 %v78
  %v209 = vunpack.c.l.b16 %v79
  %v210 = vunpack.c.l.b16 %v80
  %v211 = vunpack.c.l.b16 %v81
  %v212 = vpack.c.b16 %v149, %v148
  %v213 = vpack.c.b16 %v151, %v150
  %v214 = vpack.c.b16 %v153, %v152
  %v215 = vpack.c.b16 %v155, %v154
  %v216 = vpack.c.b16 %v157, %v156
  %v217 = vpack.c.b16 %v159, %v158
  %v218 = vpack.c.b16 %v161, %v160
  %v219 = vpack.c.b16 %v163, %v162
  %v220 = vpack.c.b16 %v165, %v164
  %v221 = vpack.c.b16 %v167, %v166
  %v222 = vpack.c.b16 %v169, %v168
  %v223 = vpack.c.b16 %v171, %v170
  %v224 = vpack.c.b16 %v173, %v172
  %v225 = vpack.c.b16 %v175, %v174
  %v226 = vpack.c.b16 %v177, %v176
  %v227 = vpack.c.b16 %v179, %v178
  %v228 = vpack.c.b16 %v181, %v180
  %v229 = vpack.c.b16 %v183, %v182
  %v230 = vpack.c.b16 %v185, %v184
  %v231 = vpack.c.b16 %v187, %v186
  %v232 = vpack.c.b16 %v189, %v188
  %v233 = vpack.c.b16 %v191, %v190
  %v234 = vpack.c.b16 %v193, %v192
  %v235 = vpack.c.b16 %v195, %v194
  %v236 = vpack.c.b16 %v197, %v196
  %v237 = vpack.c.b16 %v199, %v198
  %v238 = vpack.c.b16 %v201, %v200
  %v239 = vpack.c.b16 %v203, %v202
  %v240 = vpack.c.b16 %v205, %v204
  %v241 = vpack.c.b16 %v207, %v206
  %v242 = vpack.c.b16 %v209, %v208
  %v243 = vpack.c.b16 %v211, %v210
  %v246 = vunpack.c.l.b16 %v82
  %v247 = vunpack.c.l.b16 %v83
  %v248 = vpack.c.b16 %v247, %v246
  %vm250 = vcmask 130048
  %v252 = vsel %vm250, %v212, 0
  %v255 = vsel %vm250, %v213, 0
  %v258 = vsel %vm250, %v214, 0
  %v261 = vsel %vm250, %v215, 0
  %v264 = vsel %vm250, %v216, 0
  %v267 = vsel %vm250, %v217, 0
  %v270 = vsel %vm250, %v218, 0
  %v273 = vsel %vm250, %v219, 0
  %v276 = vsel %vm250, %v220, 0
  %v279 = vsel %vm250, %v221, 0
  %v282 = vsel %vm250, %v222, 0
  %v285 = vsel %vm250, %v223, 0
  %v288 = vsel %vm250, %v224, 0
  %v291 = vsel %vm250, %v225, 0
  %v294 = vsel %vm250, %v226, 0
  %v297 = vsel %vm250, %v227, 0
  %v300 = vsel %vm250, %v228, 0
  %v303 = vsel %vm250, %v229, 0
  %v306 = vsel %vm250, %v230, 0
  %v309 = vsel %vm250, %v231, 0
  %v312 = vsel %vm250, %v232, 0
  %v315 = vsel %vm250, %v233, 0
  %v318 = vsel %vm250, %v234, 0
  %v321 = vsel %vm250, %v235, 0
  %v324 = vsel %vm250, %v236, 0
  %v327 = vsel %vm250, %v237, 0
  %v330 = vsel %vm250, %v238, 0
  %v333 = vsel %vm250, %v239, 0
  %v336 = vsel %vm250, %v240, 0
  %v339 = vsel %vm250, %v241, 0
  %v342 = vsel %vm250, %v242, 0
  %v345 = vsel %vm250, %v243, 0
  %347 = vmatprep.subr.bf16.mxu0 0
  %348 = vmatpush1.bf16.msra.mxu0 %v248
  %349 = vmatprep.subr.bf16.mxu0 0
  %350 = vmatpush1.bf16.msra.mxu0 0
  %351 = vmatprep.subr.bf16.mxu0 0
  %352 = vmatpush1.bf16.msra.mxu0 0
  %353 = vmatprep.subr.bf16.mxu0 0
  %354 = vmatpush1.bf16.msra.mxu0 0
  %355 = vmatprep.subr.bf16.mxu0 0
  %356 = vmatpush1.bf16.msra.mxu0 0
  %357 = vmatprep.subr.bf16.mxu0 0
  %358 = vmatpush1.bf16.msra.mxu0 0
  %359 = vmatprep.subr.bf16.mxu0 0
  %360 = vmatpush1.bf16.msra.mxu0 0
  %361 = vmatprep.subr.bf16.mxu0 0
  %362 = vmatpush1.bf16.msra.mxu0 0
  %363 = vmatprep.subr.bf16.mxu0 0
  %364 = vmatpush1.bf16.msra.mxu0 0
  %365 = vmatprep.subr.bf16.mxu0 0
  %366 = vmatpush1.bf16.msra.mxu0 0
  %367 = vmatprep.subr.bf16.mxu0 0
  %368 = vmatpush1.bf16.msra.mxu0 0
  %369 = vmatprep.subr.bf16.mxu0 0
  %370 = vmatpush1.bf16.msra.mxu0 0
  %371 = vmatprep.subr.bf16.mxu0 0
  %372 = vmatpush1.bf16.msra.mxu0 0
  %373 = vmatprep.subr.bf16.mxu0 0
  %374 = vmatpush1.bf16.msra.mxu0 0
  %375 = vmatprep.subr.bf16.mxu0 0
  %376 = vmatpush1.bf16.msra.mxu0 0
  %377 = vmatprep.subr.bf16.mxu0 0
  %378 = vmatpush1.bf16.msra.mxu0 0
  %379 = vmatprep.mubr.bf16.mxu0 0
  %380 = vmatmul.mubr.bf16.gmra.mrb[0].mxu0 %v252
  %v381 = vpop.f32.mrb[0].mxu0
  %v382 = vadd.f32 0.0, %v381
  %v383 = vpop.f32.mrb[0].mxu0
  %v384 = vpop.f32.mrb[0].mxu0
  %v385 = vadd.f32 0.0, %v384
  %v386 = vpop.f32.mrb[0].mxu0
  %387 = vmatprep.mubr.bf16.mxu0 0
  %388 = vmatmul.mubr.bf16.gmra.mrb[0].mxu0 %v255
  %v389 = vpop.f32.mrb[0].mxu0
  %v390 = vadd.f32 0.0, %v389
  %v391 = vpop.f32.mrb[0].mxu0
  %v392 = vpop.f32.mrb[0].mxu0
  %v393 = vadd.f32 0.0, %v392
  %v394 = vpop.f32.mrb[0].mxu0
  %395 = vmatprep.mubr.bf16.mxu0 0
  %396 = vmatmul.mubr.bf16.gmra.mrb[0].mxu0 %v258
  %v397 = vpop.f32.mrb[0].mxu0
  %v398 = vadd.f32 0.0, %v397
  %v399 = vpop.f32.mrb[0].mxu0
  %v400 = vpop.f32.mrb[0].mxu0
  %v401 = vadd.f32 0.0, %v400
  %v402 = vpop.f32.mrb[0].mxu0
  %403 = vmatprep.mubr.bf16.mxu0 0
  %404 = vmatmul.mubr.bf16.gmra.mrb[0].mxu0 %v261
  %v405 = vpop.f32.mrb[0].mxu0
  %v406 = vadd.f32 0.0, %v405
  %v407 = vpop.f32.mrb[0].mxu0
  %v408 = vpop.f32.mrb[0].mxu0
  %v409 = vadd.f32 0.0, %v408
  %v410 = vpop.f32.mrb[0].mxu0
  %411 = vmatprep.mubr.bf16.mxu0 0
  %412 = vmatmul.mubr.bf16.gmra.mrb[0].mxu0 %v264
  %v413 = vpop.f32.mrb[0].mxu0
  %v414 = vadd.f32 0.0, %v413
  %v415 = vpop.f32.mrb[0].mxu0
  %v416 = vpop.f32.mrb[0].mxu0
  %v417 = vadd.f32 0.0, %v416
  %v418 = vpop.f32.mrb[0].mxu0
  %419 = vmatprep.mubr.bf16.mxu0 0
  %420 = vmatmul.mubr.bf16.gmra.mrb[0].mxu0 %v267
  %v421 = vpop.f32.mrb[0].mxu0
  %v422 = vadd.f32 0.0, %v421
  %v423 = vpop.f32.mrb[0].mxu0
  %v424 = vpop.f32.mrb[0].mxu0
  %v425 = vadd.f32 0.0, %v424
  %v426 = vpop.f32.mrb[0].mxu0
  %427 = vmatprep.mubr.bf16.mxu0 0
  %428 = vmatmul.mubr.bf16.gmra.mrb[0].mxu0 %v270
  %v429 = vpop.f32.mrb[0].mxu0
  %v430 = vadd.f32 0.0, %v429
  %v431 = vpop.f32.mrb[0].mxu0
  %v432 = vpop.f32.mrb[0].mxu0
  %v433 = vadd.f32 0.0, %v432
  %v434 = vpop.f32.mrb[0].mxu0
  %435 = vmatprep.mubr.bf16.mxu0 0
  %436 = vmatmul.mubr.bf16.gmra.mrb[0].mxu0 %v273
  %v437 = vpop.f32.mrb[0].mxu0
  %v438 = vadd.f32 0.0, %v437
  %v439 = vpop.f32.mrb[0].mxu0
  %v440 = vpop.f32.mrb[0].mxu0
  %v441 = vadd.f32 0.0, %v440
  %v442 = vpop.f32.mrb[0].mxu0
  %443 = vmatprep.mubr.bf16.mxu0 0
  %444 = vmatmul.mubr.bf16.gmra.mrb[0].mxu0 %v276
  %v445 = vpop.f32.mrb[0].mxu0
  %v446 = vadd.f32 0.0, %v445
  %v447 = vpop.f32.mrb[0].mxu0
  %v448 = vpop.f32.mrb[0].mxu0
  %v449 = vadd.f32 0.0, %v448
  %v450 = vpop.f32.mrb[0].mxu0
  %451 = vmatprep.mubr.bf16.mxu0 0
  %452 = vmatmul.mubr.bf16.gmra.mrb[0].mxu0 %v279
  %v453 = vpop.f32.mrb[0].mxu0
  %v454 = vadd.f32 0.0, %v453
  %v455 = vpop.f32.mrb[0].mxu0
  %v456 = vpop.f32.mrb[0].mxu0
  %v457 = vadd.f32 0.0, %v456
  %v458 = vpop.f32.mrb[0].mxu0
  %459 = vmatprep.mubr.bf16.mxu0 0
  %460 = vmatmul.mubr.bf16.gmra.mrb[0].mxu0 %v282
  %v461 = vpop.f32.mrb[0].mxu0
  %v462 = vadd.f32 0.0, %v461
  %v463 = vpop.f32.mrb[0].mxu0
  %v464 = vpop.f32.mrb[0].mxu0
  %v465 = vadd.f32 0.0, %v464
  %v466 = vpop.f32.mrb[0].mxu0
  %467 = vmatprep.mubr.bf16.mxu0 0
  %468 = vmatmul.mubr.bf16.gmra.mrb[0].mxu0 %v285
  %v469 = vpop.f32.mrb[0].mxu0
  %v470 = vadd.f32 0.0, %v469
  %v471 = vpop.f32.mrb[0].mxu0
  %v472 = vpop.f32.mrb[0].mxu0
  %v473 = vadd.f32 0.0, %v472
  %v474 = vpop.f32.mrb[0].mxu0
  %475 = vmatprep.mubr.bf16.mxu0 0
  %476 = vmatmul.mubr.bf16.gmra.mrb[0].mxu0 %v288
  %v477 = vpop.f32.mrb[0].mxu0
  %v478 = vadd.f32 0.0, %v477
  %v479 = vpop.f32.mrb[0].mxu0
  %v480 = vpop.f32.mrb[0].mxu0
  %v481 = vadd.f32 0.0, %v480
  %v482 = vpop.f32.mrb[0].mxu0
  %483 = vmatprep.mubr.bf16.mxu0 0
  %484 = vmatmul.mubr.bf16.gmra.mrb[0].mxu0 %v291
  %v485 = vpop.f32.mrb[0].mxu0
  %v486 = vadd.f32 0.0, %v485
  %v487 = vpop.f32.mrb[0].mxu0
  %v488 = vpop.f32.mrb[0].mxu0
  %v489 = vadd.f32 0.0, %v488
  %v490 = vpop.f32.mrb[0].mxu0
  %491 = vmatprep.mubr.bf16.mxu0 0
  %492 = vmatmul.mubr.bf16.gmra.mrb[0].mxu0 %v294
  %v493 = vpop.f32.mrb[0].mxu0
  %v494 = vadd.f32 0.0, %v493
  %v495 = vpop.f32.mrb[0].mxu0
  %v496 = vpop.f32.mrb[0].mxu0
  %v497 = vadd.f32 0.0, %v496
  %v498 = vpop.f32.mrb[0].mxu0
  %499 = vmatprep.mubr.bf16.mxu0 0
  %500 = vmatmul.mubr.bf16.gmra.mrb[0].mxu0 %v297
  %v501 = vpop.f32.mrb[0].mxu0
  %v502 = vadd.f32 0.0, %v501
  %v503 = vpop.f32.mrb[0].mxu0
  %v504 = vpop.f32.mrb[0].mxu0
  %v505 = vadd.f32 0.0, %v504
  %v506 = vpop.f32.mrb[0].mxu0
  %507 = vmatprep.mubr.bf16.mxu0 0
  %508 = vmatmul.mubr.bf16.gmra.mrb[0].mxu0 %v300
  %v509 = vpop.f32.mrb[0].mxu0
  %v510 = vadd.f32 0.0, %v509
  %v511 = vpop.f32.mrb[0].mxu0
  %v512 = vpop.f32.mrb[0].mxu0
  %v513 = vadd.f32 0.0, %v512
  %v514 = vpop.f32.mrb[0].mxu0
  %515 = vmatprep.mubr.bf16.mxu0 0
  %516 = vmatmul.mubr.bf16.gmra.mrb[0].mxu0 %v303
  %v517 = vpop.f32.mrb[0].mxu0
  %v518 = vadd.f32 0.0, %v517
  %v519 = vpop.f32.mrb[0].mxu0
  %v520 = vpop.f32.mrb[0].mxu0
  %v521 = vadd.f32 0.0, %v520
  %v522 = vpop.f32.mrb[0].mxu0
  %523 = vmatprep.mubr.bf16.mxu0 0
  %524 = vmatmul.mubr.bf16.gmra.mrb[0].mxu0 %v306
  %v525 = vpop.f32.mrb[0].mxu0
  %v526 = vadd.f32 0.0, %v525
  %v527 = vpop.f32.mrb[0].mxu0
  %v528 = vpop.f32.mrb[0].mxu0
  %v529 = vadd.f32 0.0, %v528
  %v530 = vpop.f32.mrb[0].mxu0
  %531 = vmatprep.mubr.bf16.mxu0 0
  %532 = vmatmul.mubr.bf16.gmra.mrb[0].mxu0 %v309
  %v533 = vpop.f32.mrb[0].mxu0
  %v534 = vadd.f32 0.0, %v533
  %v535 = vpop.f32.mrb[0].mxu0
  %v536 = vpop.f32.mrb[0].mxu0
  %v537 = vadd.f32 0.0, %v536
  %v538 = vpop.f32.mrb[0].mxu0
  %539 = vmatprep.mubr.bf16.mxu0 0
  %540 = vmatmul.mubr.bf16.gmra.mrb[0].mxu0 %v312
  %v541 = vpop.f32.mrb[0].mxu0
  %v542 = vadd.f32 0.0, %v541
  %v543 = vpop.f32.mrb[0].mxu0
  %v544 = vpop.f32.mrb[0].mxu0
  %v545 = vadd.f32 0.0, %v544
  %v546 = vpop.f32.mrb[0].mxu0
  %547 = vmatprep.mubr.bf16.mxu0 0
  %548 = vmatmul.mubr.bf16.gmra.mrb[0].mxu0 %v315
  %v549 = vpop.f32.mrb[0].mxu0
  %v550 = vadd.f32 0.0, %v549
  %v551 = vpop.f32.mrb[0].mxu0
  %v552 = vpop.f32.mrb[0].mxu0
  %v553 = vadd.f32 0.0, %v552
  %v554 = vpop.f32.mrb[0].mxu0
  %555 = vmatprep.mubr.bf16.mxu0 0
  %556 = vmatmul.mubr.bf16.gmra.mrb[0].mxu0 %v318
  %v557 = vpop.f32.mrb[0].mxu0
  %v558 = vadd.f32 0.0, %v557
  %v559 = vpop.f32.mrb[0].mxu0
  %v560 = vpop.f32.mrb[0].mxu0
  %v561 = vadd.f32 0.0, %v560
  %v562 = vpop.f32.mrb[0].mxu0
  %563 = vmatprep.mubr.bf16.mxu0 0
  %564 = vmatmul.mubr.bf16.gmra.mrb[0].mxu0 %v321
  %v565 = vpop.f32.mrb[0].mxu0
  %v566 = vadd.f32 0.0, %v565
  %v567 = vpop.f32.mrb[0].mxu0
  %v568 = vpop.f32.mrb[0].mxu0
  %v569 = vadd.f32 0.0, %v568
  %v570 = vpop.f32.mrb[0].mxu0
  %571 = vmatprep.mubr.bf16.mxu0 0
  %572 = vmatmul.mubr.bf16.gmra.mrb[0].mxu0 %v324
  %v573 = vpop.f32.mrb[0].mxu0
  %v574 = vadd.f32 0.0, %v573
  %v575 = vpop.f32.mrb[0].mxu0
  %v576 = vpop.f32.mrb[0].mxu0
  %v577 = vadd.f32 0.0, %v576
  %v578 = vpop.f32.mrb[0].mxu0
  %579 = vmatprep.mubr.bf16.mxu0 0
  %580 = vmatmul.mubr.bf16.gmra.mrb[0].mxu0 %v327
  %v581 = vpop.f32.mrb[0].mxu0
  %v582 = vadd.f32 0.0, %v581
  %v583 = vpop.f32.mrb[0].mxu0
  %v584 = vpop.f32.mrb[0].mxu0
  %v585 = vadd.f32 0.0, %v584
  %v586 = vpop.f32.mrb[0].mxu0
  %587 = vmatprep.mubr.bf16.mxu0 0
  %588 = vmatmul.mubr.bf16.gmra.mrb[0].mxu0 %v330
  %v589 = vpop.f32.mrb[0].mxu0
  %v590 = vadd.f32 0.0, %v589
  %v591 = vpop.f32.mrb[0].mxu0
  %v592 = vpop.f32.mrb[0].mxu0
  %v593 = vadd.f32 0.0, %v592
  %v594 = vpop.f32.mrb[0].mxu0
  %595 = vmatprep.mubr.bf16.mxu0 0
  %596 = vmatmul.mubr.bf16.gmra.mrb[0].mxu0 %v333
  %v597 = vpop.f32.mrb[0].mxu0
  %v598 = vadd.f32 0.0, %v597
  %v599 = vpop.f32.mrb[0].mxu0
  %v600 = vpop.f32.mrb[0].mxu0
  %v601 = vadd.f32 0.0, %v600
  %v602 = vpop.f32.mrb[0].mxu0
  %603 = vmatprep.mubr.bf16.mxu0 0
  %604 = vmatmul.mubr.bf16.gmra.mrb[0].mxu0 %v336
  %v605 = vpop.f32.mrb[0].mxu0
  %v606 = vadd.f32 0.0, %v605
  %v607 = vpop.f32.mrb[0].mxu0
  %v608 = vpop.f32.mrb[0].mxu0
  %v609 = vadd.f32 0.0, %v608
  %v610 = vpop.f32.mrb[0].mxu0
  %611 = vmatprep.mubr.bf16.mxu0 0
  %612 = vmatmul.mubr.bf16.gmra.mrb[0].mxu0 %v339
  %v613 = vpop.f32.mrb[0].mxu0
  %v614 = vadd.f32 0.0, %v613
  %v615 = vpop.f32.mrb[0].mxu0
  %v616 = vpop.f32.mrb[0].mxu0
  %v617 = vadd.f32 0.0, %v616
  %v618 = vpop.f32.mrb[0].mxu0
  %619 = vmatprep.mubr.bf16.mxu0 0
  %620 = vmatmul.mubr.bf16.gmra.mrb[0].mxu0 %v342
  %v621 = vpop.f32.mrb[0].mxu0
  %v622 = vadd.f32 0.0, %v621
  %v623 = vpop.f32.mrb[0].mxu0
  %v624 = vpop.f32.mrb[0].mxu0
  %v625 = vadd.f32 0.0, %v624
  %v626 = vpop.f32.mrb[0].mxu0
  %627 = vmatprep.mubr.bf16.mxu0 0
  %628 = vmatmul.mubr.bf16.gmra.mrb[0].mxu0 %v345
  %v629 = vpop.f32.mrb[0].mxu0
  %v630 = vadd.f32 0.0, %v629
  %v631 = vpop.f32.mrb[0].mxu0
  %v632 = vpop.f32.mrb[0].mxu0
  %v633 = vadd.f32 0.0, %v632
  %v634 = vpop.f32.mrb[0].mxu0
  %635 = vdwg.mxu0
  %v636 = vld [vmem:[%s2] sm:$0x1]
  %v638 = vlaneseq
  %v639 = vshrl.u32 %v638, 7
  %v640 = vsub.s32 0, %v639
  %v641 = vrot.slane %v636, %v640
  %v643 = vmul.f32 %v382, %v641
  %v644 = vmul.f32 %v385, %v641
  %v645 = vmul.f32 %v390, %v641
  %v646 = vmul.f32 %v393, %v641
  %v647 = vmul.f32 %v398, %v641
  %v648 = vmul.f32 %v401, %v641
  %v649 = vmul.f32 %v406, %v641
  %v650 = vmul.f32 %v409, %v641
  %v651 = vmul.f32 %v414, %v641
  %v652 = vmul.f32 %v417, %v641
  %v653 = vmul.f32 %v422, %v641
  %v654 = vmul.f32 %v425, %v641
  %v655 = vmul.f32 %v430, %v641
  %v656 = vmul.f32 %v433, %v641
  %v657 = vmul.f32 %v438, %v641
  %v658 = vmul.f32 %v441, %v641
  %v659 = vmul.f32 %v446, %v641
  %v660 = vmul.f32 %v449, %v641
  %v661 = vmul.f32 %v454, %v641
  %v662 = vmul.f32 %v457, %v641
  %v663 = vmul.f32 %v462, %v641
  %v664 = vmul.f32 %v465, %v641
  %v665 = vmul.f32 %v470, %v641
  %v666 = vmul.f32 %v473, %v641
  %v667 = vmul.f32 %v478, %v641
  %v668 = vmul.f32 %v481, %v641
  %v669 = vmul.f32 %v486, %v641
  %v670 = vmul.f32 %v489, %v641
  %v671 = vmul.f32 %v494, %v641
  %v672 = vmul.f32 %v497, %v641
  %v673 = vmul.f32 %v502, %v641
  %v674 = vmul.f32 %v505, %v641
  %v675 = vmul.f32 %v510, %v641
  %v676 = vmul.f32 %v513, %v641
  %v677 = vmul.f32 %v518, %v641
  %v678 = vmul.f32 %v521, %v641
  %v679 = vmul.f32 %v526, %v641
  %v680 = vmul.f32 %v529, %v641
  %v681 = vmul.f32 %v534, %v641
  %v682 = vmul.f32 %v537, %v641
  %v683 = vmul.f32 %v542, %v641
  %v684 = vmul.f32 %v545, %v641
  %v685 = vmul.f32 %v550, %v641
  %v686 = vmul.f32 %v553, %v641
  %v687 = vmul.f32 %v558, %v641
  %v688 = vmul.f32 %v561, %v641
  %v689 = vmul.f32 %v566, %v641
  %v690 = vmul.f32 %v569, %v641
  %v691 = vmul.f32 %v574, %v641
  %v692 = vmul.f32 %v577, %v641
  %v693 = vmul.f32 %v582, %v641
  %v694 = vmul.f32 %v585, %v641
  %v695 = vmul.f32 %v590, %v641
  %v696 = vmul.f32 %v593, %v641
  %v697 = vmul.f32 %v598, %v641
  %v698 = vmul.f32 %v601, %v641
  %v699 = vmul.f32 %v606, %v641
  %v700 = vmul.f32 %v609, %v641
  %v701 = vmul.f32 %v614, %v641
  %v702 = vmul.f32 %v617, %v641
  %v703 = vmul.f32 %v622, %v641
  %v704 = vmul.f32 %v625, %v641
  %v705 = vmul.f32 %v630, %v641
  %v706 = vmul.f32 %v633, %v641
  %v707 = vld [vmem:[%s3] sm:$0x1]
  %v709 = vlaneseq
  %v710 = vshrl.u32 %v709, 7
  %v711 = vsub.s32 0, %v710
  %v712 = vrot.slane %v707, %v711
  %v714 = vadd.f32 %v643, %v712
  %v715 = vadd.f32 %v644, %v712
  %v716 = vadd.f32 %v645, %v712
  %v717 = vadd.f32 %v646, %v712
  %v718 = vadd.f32 %v647, %v712
  %v719 = vadd.f32 %v648, %v712
  %v720 = vadd.f32 %v649, %v712
  %v721 = vadd.f32 %v650, %v712
  %v722 = vadd.f32 %v651, %v712
  %v723 = vadd.f32 %v652, %v712
  %v724 = vadd.f32 %v653, %v712
  %v725 = vadd.f32 %v654, %v712
  %v726 = vadd.f32 %v655, %v712
  %v727 = vadd.f32 %v656, %v712
  %v728 = vadd.f32 %v657, %v712
  %v729 = vadd.f32 %v658, %v712
  %v730 = vadd.f32 %v659, %v712
  %v731 = vadd.f32 %v660, %v712
  %v732 = vadd.f32 %v661, %v712
  %v733 = vadd.f32 %v662, %v712
  %v734 = vadd.f32 %v663, %v712
  %v735 = vadd.f32 %v664, %v712
  %v736 = vadd.f32 %v665, %v712
  %v737 = vadd.f32 %v666, %v712
  %v738 = vadd.f32 %v667, %v712
  %v739 = vadd.f32 %v668, %v712
  %v740 = vadd.f32 %v669, %v712
  %v741 = vadd.f32 %v670, %v712
  %v742 = vadd.f32 %v671, %v712
  %v743 = vadd.f32 %v672, %v712
  %v744 = vadd.f32 %v673, %v712
  %v745 = vadd.f32 %v674, %v712
  %v746 = vadd.f32 %v675, %v712
  %v747 = vadd.f32 %v676, %v712
  %v748 = vadd.f32 %v677, %v712
  %v749 = vadd.f32 %v678, %v712
  %v750 = vadd.f32 %v679, %v712
  %v751 = vadd.f32 %v680, %v712
  %v752 = vadd.f32 %v681, %v712
  %v753 = vadd.f32 %v682, %v712
  %v754 = vadd.f32 %v683, %v712
  %v755 = vadd.f32 %v684, %v712
  %v756 = vadd.f32 %v685, %v712
  %v757 = vadd.f32 %v686, %v712
  %v758 = vadd.f32 %v687, %v712
  %v759 = vadd.f32 %v688, %v712
  %v760 = vadd.f32 %v689, %v712
  %v761 = vadd.f32 %v690, %v712
  %v762 = vadd.f32 %v691, %v712
  %v763 = vadd.f32 %v692, %v712
  %v764 = vadd.f32 %v693, %v712
  %v765 = vadd.f32 %v694, %v712
  %v766 = vadd.f32 %v695, %v712
  %v767 = vadd.f32 %v696, %v712
  %v768 = vadd.f32 %v697, %v712
  %v769 = vadd.f32 %v698, %v712
  %v770 = vadd.f32 %v699, %v712
  %v771 = vadd.f32 %v700, %v712
  %v772 = vadd.f32 %v701, %v712
  %v773 = vadd.f32 %v702, %v712
  %v774 = vadd.f32 %v703, %v712
  %v775 = vadd.f32 %v704, %v712
  %v776 = vadd.f32 %v705, %v712
  %v777 = vadd.f32 %v706, %v712
  %v778 = vmax.f32 %v714, 0.0
  %v779 = vmax.f32 %v715, 0.0
  %v780 = vmax.f32 %v716, 0.0
  %v781 = vmax.f32 %v717, 0.0
  %v782 = vmax.f32 %v718, 0.0
  %v783 = vmax.f32 %v719, 0.0
  %v784 = vmax.f32 %v720, 0.0
  %v785 = vmax.f32 %v721, 0.0
  %v786 = vmax.f32 %v722, 0.0
  %v787 = vmax.f32 %v723, 0.0
  %v788 = vmax.f32 %v724, 0.0
  %v789 = vmax.f32 %v725, 0.0
  %v790 = vmax.f32 %v726, 0.0
  %v791 = vmax.f32 %v727, 0.0
  %v792 = vmax.f32 %v728, 0.0
  %v793 = vmax.f32 %v729, 0.0
  %v794 = vmax.f32 %v730, 0.0
  %v795 = vmax.f32 %v731, 0.0
  %v796 = vmax.f32 %v732, 0.0
  %v797 = vmax.f32 %v733, 0.0
  %v798 = vmax.f32 %v734, 0.0
  %v799 = vmax.f32 %v735, 0.0
  %v800 = vmax.f32 %v736, 0.0
  %v801 = vmax.f32 %v737, 0.0
  %v802 = vmax.f32 %v738, 0.0
  %v803 = vmax.f32 %v739, 0.0
  %v804 = vmax.f32 %v740, 0.0
  %v805 = vmax.f32 %v741, 0.0
  %v806 = vmax.f32 %v742, 0.0
  %v807 = vmax.f32 %v743, 0.0
  %v808 = vmax.f32 %v744, 0.0
  %v809 = vmax.f32 %v745, 0.0
  %v810 = vmax.f32 %v746, 0.0
  %v811 = vmax.f32 %v747, 0.0
  %v812 = vmax.f32 %v748, 0.0
  %v813 = vmax.f32 %v749, 0.0
  %v814 = vmax.f32 %v750, 0.0
  %v815 = vmax.f32 %v751, 0.0
  %v816 = vmax.f32 %v752, 0.0
  %v817 = vmax.f32 %v753, 0.0
  %v818 = vmax.f32 %v754, 0.0
  %v819 = vmax.f32 %v755, 0.0
  %v820 = vmax.f32 %v756, 0.0
  %v821 = vmax.f32 %v757, 0.0
  %v822 = vmax.f32 %v758, 0.0
  %v823 = vmax.f32 %v759, 0.0
  %v824 = vmax.f32 %v760, 0.0
  %v825 = vmax.f32 %v761, 0.0
  %v826 = vmax.f32 %v762, 0.0
  %v827 = vmax.f32 %v763, 0.0
  %v828 = vmax.f32 %v764, 0.0
  %v829 = vmax.f32 %v765, 0.0
  %v830 = vmax.f32 %v766, 0.0
  %v831 = vmax.f32 %v767, 0.0
  %v832 = vmax.f32 %v768, 0.0
  %v833 = vmax.f32 %v769, 0.0
  %v834 = vmax.f32 %v770, 0.0
  %v835 = vmax.f32 %v771, 0.0
  %v836 = vmax.f32 %v772, 0.0
  %v837 = vmax.f32 %v773, 0.0
  %v838 = vmax.f32 %v774, 0.0
  %v839 = vmax.f32 %v775, 0.0
  %v840 = vmax.f32 %v776, 0.0
  %v841 = vmax.f32 %v777, 0.0
  %v842 = vpack.c.bf16 %v779, %v778
  %v843 = vpack.c.bf16 %v781, %v780
  %v844 = vpack.c.bf16 %v783, %v782
  %v845 = vpack.c.bf16 %v785, %v784
  %v846 = vpack.c.bf16 %v787, %v786
  %v847 = vpack.c.bf16 %v789, %v788
  %v848 = vpack.c.bf16 %v791, %v790
  %v849 = vpack.c.bf16 %v793, %v792
  %v850 = vpack.c.bf16 %v795, %v794
  %v851 = vpack.c.bf16 %v797, %v796
  %v852 = vpack.c.bf16 %v799, %v798
  %v853 = vpack.c.bf16 %v801, %v800
  %v854 = vpack.c.bf16 %v803, %v802
  %v855 = vpack.c.bf16 %v805, %v804
  %v856 = vpack.c.bf16 %v807, %v806
  %v857 = vpack.c.bf16 %v809, %v808
  %v858 = vpack.c.bf16 %v811, %v810
  %v859 = vpack.c.bf16 %v813, %v812
  %v860 = vpack.c.bf16 %v815, %v814
  %v861 = vpack.c.bf16 %v817, %v816
  %v862 = vpack.c.bf16 %v819, %v818
  %v863 = vpack.c.bf16 %v821, %v820
  %v864 = vpack.c.bf16 %v823, %v822
  %v865 = vpack.c.bf16 %v825, %v824
  %v866 = vpack.c.bf16 %v827, %v826
  %v867 = vpack.c.bf16 %v829, %v828
  %v868 = vpack.c.bf16 %v831, %v830
  %v869 = vpack.c.bf16 %v833, %v832
  %v870 = vpack.c.bf16 %v835, %v834
  %v871 = vpack.c.bf16 %v837, %v836
  %v872 = vpack.c.bf16 %v839, %v838
  %v873 = vpack.c.bf16 %v841, %v840
  %v906 = vunpack.c.l.b16 %v842
  %v907 = vunpack.c.h.b16 %v842
  %v908 = vunpack.c.l.b16 %v843
  %v909 = vunpack.c.h.b16 %v843
  %v910 = vunpack.c.l.b16 %v844
  %v911 = vunpack.c.h.b16 %v844
  %v912 = vunpack.c.l.b16 %v845
  %v913 = vunpack.c.h.b16 %v845
  %v914 = vunpack.c.l.b16 %v846
  %v915 = vunpack.c.h.b16 %v846
  %v916 = vunpack.c.l.b16 %v847
  %v917 = vunpack.c.h.b16 %v847
  %v918 = vunpack.c.l.b16 %v848
  %v919 = vunpack.c.h.b16 %v848
  %v920 = vunpack.c.l.b16 %v849
  %v921 = vunpack.c.h.b16 %v849
  %v922 = vunpack.c.l.b16 %v850
  %v923 = vunpack.c.h.b16 %v850
  %v924 = vunpack.c.l.b16 %v851
  %v925 = vunpack.c.h.b16 %v851
  %v926 = vunpack.c.l.b16 %v852
  %v927 = vunpack.c.h.b16 %v852
  %v928 = vunpack.c.l.b16 %v853
  %v929 = vunpack.c.h.b16 %v853
  %v930 = vunpack.c.l.b16 %v854
  %v931 = vunpack.c.h.b16 %v854
  %v932 = vunpack.c.l.b16 %v855
  %v933 = vunpack.c.h.b16 %v855
  %v934 = vunpack.c.l.b16 %v856
  %v935 = vunpack.c.h.b16 %v856
  %v936 = vunpack.c.l.b16 %v857
  %v937 = vunpack.c.h.b16 %v857
  %v938 = vunpack.c.l.b16 %v858
  %v939 = vunpack.c.h.b16 %v858
  %v940 = vunpack.c.l.b16 %v859
  %v941 = vunpack.c.h.b16 %v859
  %v942 = vunpack.c.l.b16 %v860
  %v943 = vunpack.c.h.b16 %v860
  %v944 = vunpack.c.l.b16 %v861
  %v945 = vunpack.c.h.b16 %v861
  %v946 = vunpack.c.l.b16 %v862
  %v947 = vunpack.c.h.b16 %v862
  %v948 = vunpack.c.l.b16 %v863
  %v949 = vunpack.c.h.b16 %v863
  %v950 = vunpack.c.l.b16 %v864
  %v951 = vunpack.c.h.b16 %v864
  %v952 = vunpack.c.l.b16 %v865
  %v953 = vunpack.c.h.b16 %v865
  %v954 = vunpack.c.l.b16 %v866
  %v955 = vunpack.c.h.b16 %v866
  %v956 = vunpack.c.l.b16 %v867
  %v957 = vunpack.c.h.b16 %v867
  %v958 = vunpack.c.l.b16 %v868
  %v959 = vunpack.c.h.b16 %v868
  %v960 = vunpack.c.l.b16 %v869
  %v961 = vunpack.c.h.b16 %v869
  %v962 = vunpack.c.l.b16 %v870
  %v963 = vunpack.c.h.b16 %v870
  %v964 = vunpack.c.l.b16 %v871
  %v965 = vunpack.c.h.b16 %v871
  %v966 = vunpack.c.l.b16 %v872
  %v967 = vunpack.c.h.b16 %v872
  %v968 = vunpack.c.l.b16 %v873
  %v969 = vunpack.c.h.b16 %v873
  %v970 = vpack.c.b16 %v906, %v906
  %v971 = vpack.c.b16 %v907, %v907
  %v972 = vpack.c.b16 %v908, %v908
  %v973 = vpack.c.b16 %v909, %v909
  %v974 = vpack.c.b16 %v910, %v910
  %v975 = vpack.c.b16 %v911, %v911
  %v976 = vpack.c.b16 %v912, %v912
  %v977 = vpack.c.b16 %v913, %v913
  %v978 = vpack.c.b16 %v914, %v914
  %v979 = vpack.c.b16 %v915, %v915
  %v980 = vpack.c.b16 %v916, %v916
  %v981 = vpack.c.b16 %v917, %v917
  %v982 = vpack.c.b16 %v918, %v918
  %v983 = vpack.c.b16 %v919, %v919
  %v984 = vpack.c.b16 %v920, %v920
  %v985 = vpack.c.b16 %v921, %v921
  %v986 = vpack.c.b16 %v922, %v922
  %v987 = vpack.c.b16 %v923, %v923
  %v988 = vpack.c.b16 %v924, %v924
  %v989 = vpack.c.b16 %v925, %v925
  %v990 = vpack.c.b16 %v926, %v926
  %v991 = vpack.c.b16 %v927, %v927
  %v992 = vpack.c.b16 %v928, %v928
  %v993 = vpack.c.b16 %v929, %v929
  %v994 = vpack.c.b16 %v930, %v930
  %v995 = vpack.c.b16 %v931, %v931
  %v996 = vpack.c.b16 %v932, %v932
  %v997 = vpack.c.b16 %v933, %v933
  %v998 = vpack.c.b16 %v934, %v934
  %v999 = vpack.c.b16 %v935, %v935
  %v1000 = vpack.c.b16 %v936, %v936
  %v1001 = vpack.c.b16 %v937, %v937
  %v1002 = vpack.c.b16 %v938, %v938
  %v1003 = vpack.c.b16 %v939, %v939
  %v1004 = vpack.c.b16 %v940, %v940
  %v1005 = vpack.c.b16 %v941, %v941
  %v1006 = vpack.c.b16 %v942, %v942
  %v1007 = vpack.c.b16 %v943, %v943
  %v1008 = vpack.c.b16 %v944, %v944
  %v1009 = vpack.c.b16 %v945, %v945
  %v1010 = vpack.c.b16 %v946, %v946
  %v1011 = vpack.c.b16 %v947, %v947
  %v1012 = vpack.c.b16 %v948, %v948
  %v1013 = vpack.c.b16 %v949, %v949
  %v1014 = vpack.c.b16 %v950, %v950
  %v1015 = vpack.c.b16 %v951, %v951
  %v1016 = vpack.c.b16 %v952, %v952
  %v1017 = vpack.c.b16 %v953, %v953
  %v1018 = vpack.c.b16 %v954, %v954
  %v1019 = vpack.c.b16 %v955, %v955
  %v1020 = vpack.c.b16 %v956, %v956
  %v1021 = vpack.c.b16 %v957, %v957
  %v1022 = vpack.c.b16 %v958, %v958
  %v1023 = vpack.c.b16 %v959, %v959
  %v1024 = vpack.c.b16 %v960, %v960
  %v1025 = vpack.c.b16 %v961, %v961
  %v1026 = vpack.c.b16 %v962, %v962
  %v1027 = vpack.c.b16 %v963, %v963
  %v1028 = vpack.c.b16 %v964, %v964
  %v1029 = vpack.c.b16 %v965, %v965
  %v1030 = vpack.c.b16 %v966, %v966
  %v1031 = vpack.c.b16 %v967, %v967
  %v1032 = vpack.c.b16 %v968, %v968
  %v1033 = vpack.c.b16 %v969, %v969
  %vm1098 = vcmask 60416
  %1099 = vst.msk [vmem:[%s4] sm:$0xf] %vm1098, %v970
  %1100 = vst.msk [vmem:[%s4 + $0x4] sm:$0xf] %vm1098, %v971
  %1101 = vst.msk [vmem:[%s4 + $0x8] sm:$0xf] %vm1098, %v972
  %1102 = vst.msk [vmem:[%s4 + $0xc] sm:$0xf] %vm1098, %v973
  %1103 = vst.msk [vmem:[%s4 + $0x10] sm:$0xf] %vm1098, %v974
  %1104 = vst.msk [vmem:[%s4 + $0x14] sm:$0xf] %vm1098, %v975
  %1105 = vst.msk [vmem:[%s4 + $0x18] sm:$0xf] %vm1098, %v976
  %1106 = vst.msk [vmem:[%s4 + $0x1c] sm:$0xf] %vm1098, %v977
  %1107 = vst.msk [vmem:[%s4 + $0x20] sm:$0xf] %vm1098, %v978
  %1108 = vst.msk [vmem:[%s4 + $0x24] sm:$0xf] %vm1098, %v979
  %1109 = vst.msk [vmem:[%s4 + $0x28] sm:$0xf] %vm1098, %v980
  %1110 = vst.msk [vmem:[%s4 + $0x2c] sm:$0xf] %vm1098, %v981
  %1111 = vst.msk [vmem:[%s4 + $0x30] sm:$0xf] %vm1098, %v982
  %1112 = vst.msk [vmem:[%s4 + $0x34] sm:$0xf] %vm1098, %v983
  %1113 = vst.msk [vmem:[%s4 + $0x38] sm:$0xf] %vm1098, %v984
  %1114 = vst.msk [vmem:[%s4 + $0x3c] sm:$0xf] %vm1098, %v985
  %1115 = vst.msk [vmem:[%s4 + $0x40] sm:$0xf] %vm1098, %v986
  %1116 = vst.msk [vmem:[%s4 + $0x44] sm:$0xf] %vm1098, %v987
  %1117 = vst.msk [vmem:[%s4 + $0x48] sm:$0xf] %vm1098, %v988
  %1118 = vst.msk [vmem:[%s4 + $0x4c] sm:$0xf] %vm1098, %v989
  %1119 = vst.msk [vmem:[%s4 + $0x50] sm:$0xf] %vm1098, %v990
  %1120 = vst.msk [vmem:[%s4 + $0x54] sm:$0xf] %vm1098, %v991
  %1121 = vst.msk [vmem:[%s4 + $0x58] sm:$0xf] %vm1098, %v992
  %1122 = vst.msk [vmem:[%s4 + $0x5c] sm:$0xf] %vm1098, %v993
  %1123 = vst.msk [vmem:[%s4 + $0x60] sm:$0xf] %vm1098, %v994
  %1124 = vst.msk [vmem:[%s4 + $0x64] sm:$0xf] %vm1098, %v995
  %1125 = vst.msk [vmem:[%s4 + $0x68] sm:$0xf] %vm1098, %v996
  %1126 = vst.msk [vmem:[%s4 + $0x6c] sm:$0xf] %vm1098, %v997
  %1127 = vst.msk [vmem:[%s4 + $0x70] sm:$0xf] %vm1098, %v998
  %1128 = vst.msk [vmem:[%s4 + $0x74] sm:$0xf] %vm1098, %v999
  %1129 = vst.msk [vmem:[%s4 + $0x78] sm:$0xf] %vm1098, %v1000
  %1130 = vst.msk [vmem:[%s4 + $0x7c] sm:$0xf] %vm1098, %v1001
  %1131 = vst.msk [vmem:[%s4 + $0x80] sm:$0xf] %vm1098, %v1002
  %1132 = vst.msk [vmem:[%s4 + $0x84] sm:$0xf] %vm1098, %v1003
  %1133 = vst.msk [vmem:[%s4 + $0x88] sm:$0xf] %vm1098, %v1004
  %1134 = vst.msk [vmem:[%s4 + $0x8c] sm:$0xf] %vm1098, %v1005
  %1135 = vst.msk [vmem:[%s4 + $0x90] sm:$0xf] %vm1098, %v1006
  %1136 = vst.msk [vmem:[%s4 + $0x94] sm:$0xf] %vm1098, %v1007
  %1137 = vst.msk [vmem:[%s4 + $0x98] sm:$0xf] %vm1098, %v1008
  %1138 = vst.msk [vmem:[%s4 + $0x9c] sm:$0xf] %vm1098, %v1009
  %1139 = vst.msk [vmem:[%s4 + $0xa0] sm:$0xf] %vm1098, %v1010
  %1140 = vst.msk [vmem:[%s4 + $0xa4] sm:$0xf] %vm1098, %v1011
  %1141 = vst.msk [vmem:[%s4 + $0xa8] sm:$0xf] %vm1098, %v1012
  %1142 = vst.msk [vmem:[%s4 + $0xac] sm:$0xf] %vm1098, %v1013
  %1143 = vst.msk [vmem:[%s4 + $0xb0] sm:$0xf] %vm1098, %v1014
  %1144 = vst.msk [vmem:[%s4 + $0xb4] sm:$0xf] %vm1098, %v1015
  %1145 = vst.msk [vmem:[%s4 + $0xb8] sm:$0xf] %vm1098, %v1016
  %1146 = vst.msk [vmem:[%s4 + $0xbc] sm:$0xf] %vm1098, %v1017
  %1147 = vst.msk [vmem:[%s4 + $0xc0] sm:$0xf] %vm1098, %v1018
  %1148 = vst.msk [vmem:[%s4 + $0xc4] sm:$0xf] %vm1098, %v1019
  %1149 = vst.msk [vmem:[%s4 + $0xc8] sm:$0xf] %vm1098, %v1020
  %1150 = vst.msk [vmem:[%s4 + $0xcc] sm:$0xf] %vm1098, %v1021
  %1151 = vst.msk [vmem:[%s4 + $0xd0] sm:$0xf] %vm1098, %v1022
  %1152 = vst.msk [vmem:[%s4 + $0xd4] sm:$0xf] %vm1098, %v1023
  %1153 = vst.msk [vmem:[%s4 + $0xd8] sm:$0xf] %vm1098, %v1024
  %1154 = vst.msk [vmem:[%s4 + $0xdc] sm:$0xf] %vm1098, %v1025
  %1155 = vst.msk [vmem:[%s4 + $0xe0] sm:$0xf] %vm1098, %v1026
  %1156 = vst.msk [vmem:[%s4 + $0xe4] sm:$0xf] %vm1098, %v1027
  %1157 = vst.msk [vmem:[%s4 + $0xe8] sm:$0xf] %vm1098, %v1028
  %1158 = vst.msk [vmem:[%s4 + $0xec] sm:$0xf] %vm1098, %v1029
  %1159 = vst.msk [vmem:[%s4 + $0xf0] sm:$0xf] %vm1098, %v1030
  %1160 = vst.msk [vmem:[%s4 + $0xf4] sm:$0xf] %vm1098, %v1031
  %1161 = vst.msk [vmem:[%s4 + $0xf8] sm:$0xf] %vm1098, %v1032
  %1162 = vst.msk [vmem:[%s4 + $0xfc] sm:$0xf] %vm1098, %v1033
  // Predicated region
  $region18: #{bottleneck_forward.4} parent=0 // pred_check
    _
  $region19: #{bottleneck_forward.4} parent=0 // pred_check_branch
    %1164 = sbr.rel (0) target = $region21
  $region20: #{bottleneck_forward.4} parent=0 // pred_region
    _
  $region21: #{bottleneck_forward.4} parent=0 // pred_fallthru
    _
  // Predicated region
  $region22: #{bottleneck_forward.4} parent=0 // pred_check
    _
  $region23: #{bottleneck_forward.4} parent=0 // pred_check_branch
    %1166 = sbr.rel (0) target = $region25
  $region24: #{bottleneck_forward.4} parent=0 // pred_region
    _
  $region25: #{bottleneck_forward.4} parent=0 // pred_fallthru
    _

// kernel: bottleneck_forward.6
$region0: #{bottleneck_forward.6}
  #allocation0 [shape = 'u32[]', space=smem, size = 0x4, offset = 0x4, fixed_abs, tag = 'smem constant byte address 0x4 - core index']
  #allocation1 [shape = 'u32[144,128]{1,0:T(1,128)}', space=vmem, size = 0x12000, scoped, tag = 'internal scratch']
  %s0 = inlined_call_operand.vmem [shape: bf16[128,16], index: 0, kind: input, shape index: {}]
  %s1 = inlined_call_operand.vmem [shape: bf16[16,32], index: 1, kind: input, shape index: {}]
  %s2 = inlined_call_operand.vmem [shape: f32[1,32], index: 2, kind: input, shape index: {}]
  %s3 = inlined_call_operand.vmem [shape: f32[1,32], index: 3, kind: input, shape index: {}]
  %s4 = inlined_call_operand.vmem [shape: bf16[128,32], index: 4, kind: output, shape index: {}]
  %s5 = sld [smem:[#allocation0]]
  $region26: #{bottleneck_forward.6} parent=0
    _
  %s7 = ssub.s32 1, %s5
  %s8 = scalar_select 0, %s7, %s5
  // Predicated region
  $region2: #{bottleneck_forward.6} parent=0 // pred_check
    _
  $region3: #{bottleneck_forward.6} parent=0 // pred_check_branch
    %10 = sbr.rel (0) target = $region5
  $region4: #{bottleneck_forward.6} parent=0 // pred_region
    _
  $region5: #{bottleneck_forward.6} parent=0 // pred_fallthru
    _
  // Predicated region
  $region6: #{bottleneck_forward.6} parent=0 // pred_check
    _
  $region7: #{bottleneck_forward.6} parent=0 // pred_check_branch
    %12 = sbr.rel (0) target = $region9
  $region8: #{bottleneck_forward.6} parent=0 // pred_region
    _
  $region9: #{bottleneck_forward.6} parent=0 // pred_fallthru
    _
  // Predicated region
  $region10: #{bottleneck_forward.6} parent=0 // pred_check
    _
  $region11: #{bottleneck_forward.6} parent=0 // pred_check_branch
    %14 = sbr.rel (0) target = $region13
  $region12: #{bottleneck_forward.6} parent=0 // pred_region
    _
  $region13: #{bottleneck_forward.6} parent=0 // pred_fallthru
    _
  // Predicated region
  $region14: #{bottleneck_forward.6} parent=0 // pred_check
    _
  $region15: #{bottleneck_forward.6} parent=0 // pred_check_branch
    %16 = sbr.rel (0) target = $region17
  $region16: #{bottleneck_forward.6} parent=0 // pred_region
    _
  $region17: #{bottleneck_forward.6} parent=0 // pred_fallthru
    _
  %v18 = vld [vmem:[%s0] sm:$0xf]
  %v19 = vld [vmem:[%s0 + $0x4] sm:$0xf]
  %v20 = vld [vmem:[%s0 + $0x8] sm:$0xf]
  %v21 = vld [vmem:[%s0 + $0xc] sm:$0xf]
  %v22 = vld [vmem:[%s0 + $0x10] sm:$0xf]
  %v23 = vld [vmem:[%s0 + $0x14] sm:$0xf]
  %v24 = vld [vmem:[%s0 + $0x18] sm:$0xf]
  %v25 = vld [vmem:[%s0 + $0x1c] sm:$0xf]
  %v26 = vld [vmem:[%s0 + $0x20] sm:$0xf]
  %v27 = vld [vmem:[%s0 + $0x24] sm:$0xf]
  %v28 = vld [vmem:[%s0 + $0x28] sm:$0xf]
  %v29 = vld [vmem:[%s0 + $0x2c] sm:$0xf]
  %v30 = vld [vmem:[%s0 + $0x30] sm:$0xf]
  %v31 = vld [vmem:[%s0 + $0x34] sm:$0xf]
  %v32 = vld [vmem:[%s0 + $0x38] sm:$0xf]
  %v33 = vld [vmem:[%s0 + $0x3c] sm:$0xf]
  %v34 = vld [vmem:[%s1] sm:$0xf]
  %v35 = vld [vmem:[%s1 + $0x4] sm:$0xf]
  %v52 = vunpack.c.l.b16 %v18
  %v53 = vunpack.c.l.b16 %v19
  %v54 = vunpack.c.l.b16 %v20
  %v55 = vunpack.c.l.b16 %v21
  %v56 = vunpack.c.l.b16 %v22
  %v57 = vunpack.c.l.b16 %v23
  %v58 = vunpack.c.l.b16 %v24
  %v59 = vunpack.c.l.b16 %v25
  %v60 = vunpack.c.l.b16 %v26
  %v61 = vunpack.c.l.b16 %v27
  %v62 = vunpack.c.l.b16 %v28
  %v63 = vunpack.c.l.b16 %v29
  %v64 = vunpack.c.l.b16 %v30
  %v65 = vunpack.c.l.b16 %v31
  %v66 = vunpack.c.l.b16 %v32
  %v67 = vunpack.c.l.b16 %v33
  %v68 = vpack.c.b16 %v53, %v52
  %v69 = vpack.c.b16 %v55, %v54
  %v70 = vpack.c.b16 %v57, %v56
  %v71 = vpack.c.b16 %v59, %v58
  %v72 = vpack.c.b16 %v61, %v60
  %v73 = vpack.c.b16 %v63, %v62
  %v74 = vpack.c.b16 %v65, %v64
  %v75 = vpack.c.b16 %v67, %v66
  %v78 = vunpack.c.l.b16 %v34
  %v79 = vunpack.c.l.b16 %v35
  %v80 = vpack.c.b16 %v79, %v78
  %vm82 = vcmask 130048
  %v84 = vsel %vm82, %v68, 0
  %v87 = vsel %vm82, %v69, 0
  %v90 = vsel %vm82, %v70, 0
  %v93 = vsel %vm82, %v71, 0
  %v96 = vsel %vm82, %v72, 0
  %v99 = vsel %vm82, %v73, 0
  %v102 = vsel %vm82, %v74, 0
  %v105 = vsel %vm82, %v75, 0
  %107 = vmatprep.subr.bf16.mxu0 0
  %108 = vmatpush1.bf16.msra.mxu0 %v80
  %109 = vmatprep.subr.bf16.mxu0 0
  %110 = vmatpush1.bf16.msra.mxu0 0
  %111 = vmatprep.subr.bf16.mxu0 0
  %112 = vmatpush1.bf16.msra.mxu0 0
  %113 = vmatprep.subr.bf16.mxu0 0
  %114 = vmatpush1.bf16.msra.mxu0 0
  %115 = vmatprep.subr.bf16.mxu0 0
  %116 = vmatpush1.bf16.msra.mxu0 0
  %117 = vmatprep.subr.bf16.mxu0 0
  %118 = vmatpush1.bf16.msra.mxu0 0
  %119 = vmatprep.subr.bf16.mxu0 0
  %120 = vmatpush1.bf16.msra.mxu0 0
  %121 = vmatprep.subr.bf16.mxu0 0
  %122 = vmatpush1.bf16.msra.mxu0 0
  %123 = vmatprep.subr.bf16.mxu0 0
  %124 = vmatpush1.bf16.msra.mxu0 0
  %125 = vmatprep.subr.bf16.mxu0 0
  %126 = vmatpush1.bf16.msra.mxu0 0
  %127 = vmatprep.subr.bf16.mxu0 0
  %128 = vmatpush1.bf16.msra.mxu0 0
  %129 = vmatprep.subr.bf16.mxu0 0
  %130 = vmatpush1.bf16.msra.mxu0 0
  %131 = vmatprep.subr.bf16.mxu0 0
  %132 = vmatpush1.bf16.msra.mxu0 0
  %133 = vmatprep.subr.bf16.mxu0 0
  %134 = vmatpush1.bf16.msra.mxu0 0
  %135 = vmatprep.subr.bf16.mxu0 0
  %136 = vmatpush1.bf16.msra.mxu0 0
  %137 = vmatprep.subr.bf16.mxu0 0
  %138 = vmatpush1.bf16.msra.mxu0 0
  %139 = vmatprep.mubr.bf16.mxu0 0
  %140 = vmatmul.mubr.bf16.gmra.mrb[0].mxu0 %v84
  %v141 = vpop.f32.mrb[0].mxu0
  %v142 = vadd.f32 0.0, %v141
  %v143 = vpop.f32.mrb[0].mxu0
  %v144 = vpop.f32.mrb[0].mxu0
  %v145 = vadd.f32 0.0, %v144
  %v146 = vpop.f32.mrb[0].mxu0
  %147 = vmatprep.mubr.bf16.mxu0 0
  %148 = vmatmul.mubr.bf16.gmra.mrb[0].mxu0 %v87
  %v149 = vpop.f32.mrb[0].mxu0
  %v150 = vadd.f32 0.0, %v149
  %v151 = vpop.f32.mrb[0].mxu0
  %v152 = vpop.f32.mrb[0].mxu0
  %v153 = vadd.f32 0.0, %v152
  %v154 = vpop.f32.mrb[0].mxu0
  %155 = vmatprep.mubr.bf16.mxu0 0
  %156 = vmatmul.mubr.bf16.gmra.mrb[0].mxu0 %v90
  %v157 = vpop.f32.mrb[0].mxu0
  %v158 = vadd.f32 0.0, %v157
  %v159 = vpop.f32.mrb[0].mxu0
  %v160 = vpop.f32.mrb[0].mxu0
  %v161 = vadd.f32 0.0, %v160
  %v162 = vpop.f32.mrb[0].mxu0
  %163 = vmatprep.mubr.bf16.mxu0 0
  %164 = vmatmul.mubr.bf16.gmra.mrb[0].mxu0 %v93
  %v165 = vpop.f32.mrb[0].mxu0
  %v166 = vadd.f32 0.0, %v165
  %v167 = vpop.f32.mrb[0].mxu0
  %v168 = vpop.f32.mrb[0].mxu0
  %v169 = vadd.f32 0.0, %v168
  %v170 = vpop.f32.mrb[0].mxu0
  %171 = vmatprep.mubr.bf16.mxu0 0
  %172 = vmatmul.mubr.bf16.gmra.mrb[0].mxu0 %v96
  %v173 = vpop.f32.mrb[0].mxu0
  %v174 = vadd.f32 0.0, %v173
  %v175 = vpop.f32.mrb[0].mxu0
  %v176 = vpop.f32.mrb[0].mxu0
  %v177 = vadd.f32 0.0, %v176
  %v178 = vpop.f32.mrb[0].mxu0
  %179 = vmatprep.mubr.bf16.mxu0 0
  %180 = vmatmul.mubr.bf16.gmra.mrb[0].mxu0 %v99
  %v181 = vpop.f32.mrb[0].mxu0
  %v182 = vadd.f32 0.0, %v181
  %v183 = vpop.f32.mrb[0].mxu0
  %v184 = vpop.f32.mrb[0].mxu0
  %v185 = vadd.f32 0.0, %v184
  %v186 = vpop.f32.mrb[0].mxu0
  %187 = vmatprep.mubr.bf16.mxu0 0
  %188 = vmatmul.mubr.bf16.gmra.mrb[0].mxu0 %v102
  %v189 = vpop.f32.mrb[0].mxu0
  %v190 = vadd.f32 0.0, %v189
  %v191 = vpop.f32.mrb[0].mxu0
  %v192 = vpop.f32.mrb[0].mxu0
  %v193 = vadd.f32 0.0, %v192
  %v194 = vpop.f32.mrb[0].mxu0
  %195 = vmatprep.mubr.bf16.mxu0 0
  %196 = vmatmul.mubr.bf16.gmra.mrb[0].mxu0 %v105
  %v197 = vpop.f32.mrb[0].mxu0
  %v198 = vadd.f32 0.0, %v197
  %v199 = vpop.f32.mrb[0].mxu0
  %v200 = vpop.f32.mrb[0].mxu0
  %v201 = vadd.f32 0.0, %v200
  %v202 = vpop.f32.mrb[0].mxu0
  %203 = vdwg.mxu0
  %v204 = vld [vmem:[%s2] sm:$0x1]
  %v206 = vlaneseq
  %v207 = vshrl.u32 %v206, 7
  %v208 = vsub.s32 0, %v207
  %v209 = vrot.slane %v204, %v208
  %v211 = vmul.f32 %v142, %v209
  %v212 = vmul.f32 %v145, %v209
  %v213 = vmul.f32 %v150, %v209
  %v214 = vmul.f32 %v153, %v209
  %v215 = vmul.f32 %v158, %v209
  %v216 = vmul.f32 %v161, %v209
  %v217 = vmul.f32 %v166, %v209
  %v218 = vmul.f32 %v169, %v209
  %v219 = vmul.f32 %v174, %v209
  %v220 = vmul.f32 %v177, %v209
  %v221 = vmul.f32 %v182, %v209
  %v222 = vmul.f32 %v185, %v209
  %v223 = vmul.f32 %v190, %v209
  %v224 = vmul.f32 %v193, %v209
  %v225 = vmul.f32 %v198, %v209
  %v226 = vmul.f32 %v201, %v209
  %v227 = vld [vmem:[%s3] sm:$0x1]
  %v229 = vlaneseq
  %v230 = vshrl.u32 %v229, 7
  %v231 = vsub.s32 0, %v230
  %v232 = vrot.slane %v227, %v231
  %v234 = vadd.f32 %v211, %v232
  %v235 = vadd.f32 %v212, %v232
  %v236 = vadd.f32 %v213, %v232
  %v237 = vadd.f32 %v214, %v232
  %v238 = vadd.f32 %v215, %v232
  %v239 = vadd.f32 %v216, %v232
  %v240 = vadd.f32 %v217, %v232
  %v241 = vadd.f32 %v218, %v232
  %v242 = vadd.f32 %v219, %v232
  %v243 = vadd.f32 %v220, %v232
  %v244 = vadd.f32 %v221, %v232
  %v245 = vadd.f32 %v222, %v232
  %v246 = vadd.f32 %v223, %v232
  %v247 = vadd.f32 %v224, %v232
  %v248 = vadd.f32 %v225, %v232
  %v249 = vadd.f32 %v226, %v232
  %v250 = vpack.c.bf16 %v235, %v234
  %v251 = vpack.c.bf16 %v237, %v236
  %v252 = vpack.c.bf16 %v239, %v238
  %v253 = vpack.c.bf16 %v241, %v240
  %v254 = vpack.c.bf16 %v243, %v242
  %v255 = vpack.c.bf16 %v245, %v244
  %v256 = vpack.c.bf16 %v247, %v246
  %v257 = vpack.c.bf16 %v249, %v248
  %v266 = vunpack.c.l.b16 %v250
  %v267 = vunpack.c.h.b16 %v250
  %v268 = vunpack.c.l.b16 %v251
  %v269 = vunpack.c.h.b16 %v251
  %v270 = vunpack.c.l.b16 %v252
  %v271 = vunpack.c.h.b16 %v252
  %v272 = vunpack.c.l.b16 %v253
  %v273 = vunpack.c.h.b16 %v253
  %v274 = vunpack.c.l.b16 %v254
  %v275 = vunpack.c.h.b16 %v254
  %v276 = vunpack.c.l.b16 %v255
  %v277 = vunpack.c.h.b16 %v255
  %v278 = vunpack.c.l.b16 %v256
  %v279 = vunpack.c.h.b16 %v256
  %v280 = vunpack.c.l.b16 %v257
  %v281 = vunpack.c.h.b16 %v257
  %v282 = vpack.c.b16 %v266, %v266
  %v283 = vpack.c.b16 %v267, %v267
  %v284 = vpack.c.b16 %v268, %v268
  %v285 = vpack.c.b16 %v269, %v269
  %v286 = vpack.c.b16 %v270, %v270
  %v287 = vpack.c.b16 %v271, %v271
  %v288 = vpack.c.b16 %v272, %v272
  %v289 = vpack.c.b16 %v273, %v273
  %v290 = vpack.c.b16 %v274, %v274
  %v291 = vpack.c.b16 %v275, %v275
  %v292 = vpack.c.b16 %v276, %v276
  %v293 = vpack.c.b16 %v277, %v277
  %v294 = vpack.c.b16 %v278, %v278
  %v295 = vpack.c.b16 %v279, %v279
  %v296 = vpack.c.b16 %v280, %v280
  %v297 = vpack.c.b16 %v281, %v281
  %vm314 = vcmask 257024
  %315 = vst.msk [vmem:[%s4] sm:$0xf] %vm314, %v282
  %316 = vst.msk [vmem:[%s4 + $0x4] sm:$0xf] %vm314, %v283
  %317 = vst.msk [vmem:[%s4 + $0x8] sm:$0xf] %vm314, %v284
  %318 = vst.msk [vmem:[%s4 + $0xc] sm:$0xf] %vm314, %v285
  %319 = vst.msk [vmem:[%s4 + $0x10] sm:$0xf] %vm314, %v286
  %320 = vst.msk [vmem:[%s4 + $0x14] sm:$0xf] %vm314, %v287
  %321 = vst.msk [vmem:[%s4 + $0x18] sm:$0xf] %vm314, %v288
  %322 = vst.msk [vmem:[%s4 + $0x1c] sm:$0xf] %vm314, %v289
  %323 = vst.msk [vmem:[%s4 + $0x20] sm:$0xf] %vm314, %v290
  %324 = vst.msk [vmem:[%s4 + $0x24] sm:$0xf] %vm314, %v291
  %325 = vst.msk [vmem:[%s4 + $0x28] sm:$0xf] %vm314, %v292
  %326 = vst.msk [vmem:[%s4 + $0x2c] sm:$0xf] %vm314, %v293
  %327 = vst.msk [vmem:[%s4 + $0x30] sm:$0xf] %vm314, %v294
  %328 = vst.msk [vmem:[%s4 + $0x34] sm:$0xf] %vm314, %v295
  %329 = vst.msk [vmem:[%s4 + $0x38] sm:$0xf] %vm314, %v296
  %330 = vst.msk [vmem:[%s4 + $0x3c] sm:$0xf] %vm314, %v297
  // Predicated region
  $region18: #{bottleneck_forward.6} parent=0 // pred_check
    _
  $region19: #{bottleneck_forward.6} parent=0 // pred_check_branch
    %332 = sbr.rel (0) target = $region21
  $region20: #{bottleneck_forward.6} parent=0 // pred_region
    _
  $region21: #{bottleneck_forward.6} parent=0 // pred_fallthru
    _
  // Predicated region
  $region22: #{bottleneck_forward.6} parent=0 // pred_check
    _
  $region23: #{bottleneck_forward.6} parent=0 // pred_check_branch
    %334 = sbr.rel (0) target = $region25
  $region24: #{bottleneck_forward.6} parent=0 // pred_region
    _
  $region25: #{bottleneck_forward.6} parent=0 // pred_fallthru
    _

// kernel: bottleneck_forward.7
$region0: #{bottleneck_forward.7}
  #allocation0 [shape = 'u32[]', space=smem, size = 0x4, offset = 0x4, fixed_abs, tag = 'smem constant byte address 0x4 - core index']
  #allocation1 [shape = 'u32[144,128]{1,0:T(1,128)}', space=vmem, size = 0x12000, scoped, tag = 'internal scratch']
  %s0 = inlined_call_operand.vmem [shape: bf16[128,8], index: 0, kind: input, shape index: {}]
  %s1 = inlined_call_operand.vmem [shape: bf16[8,32], index: 1, kind: input, shape index: {}]
  %s2 = inlined_call_operand.vmem [shape: f32[1,32], index: 2, kind: input, shape index: {}]
  %s3 = inlined_call_operand.vmem [shape: f32[1,32], index: 3, kind: input, shape index: {}]
  %s4 = inlined_call_operand.vmem [shape: bf16[128,32], index: 4, kind: input, shape index: {}]
  %s5 = inlined_call_operand.hbm [shape: f32[128,32], index: 5, kind: output, shape index: {}]
  %s6 = sld [smem:[#allocation0]]
  $region30: #{bottleneck_forward.7} parent=0
    _
  %s8 = ssub.s32 1, %s6
  %s9 = scalar_select 0, %s8, %s6
  $region1: #{bottleneck_forward.7} parent=0
    #allocation2 [shape = 'u8[65536]{0}', space=vmem, size = 0x10000, scoped, tag = 'output window, operand 0, single buffered']
    #allocation3 [shape = 's32[1]{0}', space=sflag, size = 0x4, scoped, tag = 'scoped memory for bottleneck_forward.7']
    %10 = vsyncpa [#allocation3], 0
    // Predicated region
    $region2: #{bottleneck_forward.7} parent=1 // pred_check
      _
    $region3: #{bottleneck_forward.7} parent=1 // pred_check_branch
      %12 = sbr.rel (0) target = $region5
    $region4: #{bottleneck_forward.7} parent=1 // pred_region
      _
    $region5: #{bottleneck_forward.7} parent=1 // pred_fallthru
      _
    // Predicated region
    $region6: #{bottleneck_forward.7} parent=1 // pred_check
      _
    $region7: #{bottleneck_forward.7} parent=1 // pred_check_branch
      %14 = sbr.rel (0) target = $region9
    $region8: #{bottleneck_forward.7} parent=1 // pred_region
      _
    $region9: #{bottleneck_forward.7} parent=1 // pred_fallthru
      _
    // Predicated region
    $region10: #{bottleneck_forward.7} parent=1 // pred_check
      _
    $region11: #{bottleneck_forward.7} parent=1 // pred_check_branch
      %16 = sbr.rel (0) target = $region13
    $region12: #{bottleneck_forward.7} parent=1 // pred_region
      _
    $region13: #{bottleneck_forward.7} parent=1 // pred_fallthru
      _
    // Predicated region
    $region14: #{bottleneck_forward.7} parent=1 // pred_check
      _
    $region15: #{bottleneck_forward.7} parent=1 // pred_check_branch
      %18 = sbr.rel (0) target = $region17
    $region16: #{bottleneck_forward.7} parent=1 // pred_region
      _
    $region17: #{bottleneck_forward.7} parent=1 // pred_fallthru
      _
    // Predicated region
    $region18: #{bottleneck_forward.7} parent=1 // pred_check
      _
    $region19: #{bottleneck_forward.7} parent=1 // pred_check_branch
      %20 = sbr.rel (0) target = $region21
    $region20: #{bottleneck_forward.7} parent=1 // pred_region
      _
    $region21: #{bottleneck_forward.7} parent=1 // pred_fallthru
      _
    %v22 = vld [vmem:[%s0] sm:$0xf]
    %v23 = vld [vmem:[%s0 + $0x4] sm:$0xf]
    %v24 = vld [vmem:[%s0 + $0x8] sm:$0xf]
    %v25 = vld [vmem:[%s0 + $0xc] sm:$0xf]
    %v26 = vld [vmem:[%s0 + $0x10] sm:$0xf]
    %v27 = vld [vmem:[%s0 + $0x14] sm:$0xf]
    %v28 = vld [vmem:[%s0 + $0x18] sm:$0xf]
    %v29 = vld [vmem:[%s0 + $0x1c] sm:$0xf]
    %v30 = vld [vmem:[%s0 + $0x20] sm:$0xf]
    %v31 = vld [vmem:[%s0 + $0x24] sm:$0xf]
    %v32 = vld [vmem:[%s0 + $0x28] sm:$0xf]
    %v33 = vld [vmem:[%s0 + $0x2c] sm:$0xf]
    %v34 = vld [vmem:[%s0 + $0x30] sm:$0xf]
    %v35 = vld [vmem:[%s0 + $0x34] sm:$0xf]
    %v36 = vld [vmem:[%s0 + $0x38] sm:$0xf]
    %v37 = vld [vmem:[%s0 + $0x3c] sm:$0xf]
    %v38 = vld [vmem:[%s1] sm:$0xf]
    %v55 = vunpack.c.l.b16 %v22
    %v56 = vunpack.c.l.b16 %v23
    %v57 = vunpack.c.l.b16 %v24
    %v58 = vunpack.c.l.b16 %v25
    %v59 = vunpack.c.l.b16 %v26
    %v60 = vunpack.c.l.b16 %v27
    %v61 = vunpack.c.l.b16 %v28
    %v62 = vunpack.c.l.b16 %v29
    %v63 = vunpack.c.l.b16 %v30
    %v64 = vunpack.c.l.b16 %v31
    %v65 = vunpack.c.l.b16 %v32
    %v66 = vunpack.c.l.b16 %v33
    %v67 = vunpack.c.l.b16 %v34
    %v68 = vunpack.c.l.b16 %v35
    %v69 = vunpack.c.l.b16 %v36
    %v70 = vunpack.c.l.b16 %v37
    %v71 = vpack.c.b16 %v56, %v55
    %v72 = vpack.c.b16 %v58, %v57
    %v73 = vpack.c.b16 %v60, %v59
    %v74 = vpack.c.b16 %v62, %v61
    %v75 = vpack.c.b16 %v64, %v63
    %v76 = vpack.c.b16 %v66, %v65
    %v77 = vpack.c.b16 %v68, %v67
    %v78 = vpack.c.b16 %v70, %v69
    %vm79 = vcmask 64512
    %v81 = vsel %vm79, %v71, 0
    %v84 = vsel %vm79, %v72, 0
    %v87 = vsel %vm79, %v73, 0
    %v90 = vsel %vm79, %v74, 0
    %v93 = vsel %vm79, %v75, 0
    %v96 = vsel %vm79, %v76, 0
    %v99 = vsel %vm79, %v77, 0
    %v102 = vsel %vm79, %v78, 0
    %vm104 = vcmask 1043456
    %v106 = vsel %vm104, %v38, 0
    %108 = vmatprep.subr.bf16.mxu0 0
    %109 = vmatpush1.bf16.msra.mxu0 %v106
    %110 = vmatprep.subr.bf16.mxu0 0
    %111 = vmatpush1.bf16.msra.mxu0 0
    %112 = vmatprep.subr.bf16.mxu0 0
    %113 = vmatpush1.bf16.msra.mxu0 0
    %114 = vmatprep.subr.bf16.mxu0 0
    %115 = vmatpush1.bf16.msra.mxu0 0
    %116 = vmatprep.subr.bf16.mxu0 0
    %117 = vmatpush1.bf16.msra.mxu0 0
    %118 = vmatprep.subr.bf16.mxu0 0
    %119 = vmatpush1.bf16.msra.mxu0 0
    %120 = vmatprep.subr.bf16.mxu0 0
    %121 = vmatpush1.bf16.msra.mxu0 0
    %122 = vmatprep.subr.bf16.mxu0 0
    %123 = vmatpush1.bf16.msra.mxu0 0
    %124 = vmatprep.subr.bf16.mxu0 0
    %125 = vmatpush1.bf16.msra.mxu0 0
    %126 = vmatprep.subr.bf16.mxu0 0
    %127 = vmatpush1.bf16.msra.mxu0 0
    %128 = vmatprep.subr.bf16.mxu0 0
    %129 = vmatpush1.bf16.msra.mxu0 0
    %130 = vmatprep.subr.bf16.mxu0 0
    %131 = vmatpush1.bf16.msra.mxu0 0
    %132 = vmatprep.subr.bf16.mxu0 0
    %133 = vmatpush1.bf16.msra.mxu0 0
    %134 = vmatprep.subr.bf16.mxu0 0
    %135 = vmatpush1.bf16.msra.mxu0 0
    %136 = vmatprep.subr.bf16.mxu0 0
    %137 = vmatpush1.bf16.msra.mxu0 0
    %138 = vmatprep.subr.bf16.mxu0 0
    %139 = vmatpush1.bf16.msra.mxu0 0
    %140 = vmatprep.mubr.bf16.mxu0 0
    %141 = vmatmul.mubr.bf16.gmra.mrb[0].mxu0 %v81
    %v142 = vpop.f32.mrb[0].mxu0
    %v143 = vadd.f32 0.0, %v142
    %v144 = vpop.f32.mrb[0].mxu0
    %v145 = vpop.f32.mrb[0].mxu0
    %v146 = vadd.f32 0.0, %v145
    %v147 = vpop.f32.mrb[0].mxu0
    %148 = vmatprep.mubr.bf16.mxu0 0
    %149 = vmatmul.mubr.bf16.gmra.mrb[0].mxu0 %v84
    %v150 = vpop.f32.mrb[0].mxu0
    %v151 = vadd.f32 0.0, %v150
    %v152 = vpop.f32.mrb[0].mxu0
    %v153 = vpop.f32.mrb[0].mxu0
    %v154 = vadd.f32 0.0, %v153
    %v155 = vpop.f32.mrb[0].mxu0
    %156 = vmatprep.mubr.bf16.mxu0 0
    %157 = vmatmul.mubr.bf16.gmra.mrb[0].mxu0 %v87
    %v158 = vpop.f32.mrb[0].mxu0
    %v159 = vadd.f32 0.0, %v158
    %v160 = vpop.f32.mrb[0].mxu0
    %v161 = vpop.f32.mrb[0].mxu0
    %v162 = vadd.f32 0.0, %v161
    %v163 = vpop.f32.mrb[0].mxu0
    %164 = vmatprep.mubr.bf16.mxu0 0
    %165 = vmatmul.mubr.bf16.gmra.mrb[0].mxu0 %v90
    %v166 = vpop.f32.mrb[0].mxu0
    %v167 = vadd.f32 0.0, %v166
    %v168 = vpop.f32.mrb[0].mxu0
    %v169 = vpop.f32.mrb[0].mxu0
    %v170 = vadd.f32 0.0, %v169
    %v171 = vpop.f32.mrb[0].mxu0
    %172 = vmatprep.mubr.bf16.mxu0 0
    %173 = vmatmul.mubr.bf16.gmra.mrb[0].mxu0 %v93
    %v174 = vpop.f32.mrb[0].mxu0
    %v175 = vadd.f32 0.0, %v174
    %v176 = vpop.f32.mrb[0].mxu0
    %v177 = vpop.f32.mrb[0].mxu0
    %v178 = vadd.f32 0.0, %v177
    %v179 = vpop.f32.mrb[0].mxu0
    %180 = vmatprep.mubr.bf16.mxu0 0
    %181 = vmatmul.mubr.bf16.gmra.mrb[0].mxu0 %v96
    %v182 = vpop.f32.mrb[0].mxu0
    %v183 = vadd.f32 0.0, %v182
    %v184 = vpop.f32.mrb[0].mxu0
    %v185 = vpop.f32.mrb[0].mxu0
    %v186 = vadd.f32 0.0, %v185
    %v187 = vpop.f32.mrb[0].mxu0
    %188 = vmatprep.mubr.bf16.mxu0 0
    %189 = vmatmul.mubr.bf16.gmra.mrb[0].mxu0 %v99
    %v190 = vpop.f32.mrb[0].mxu0
    %v191 = vadd.f32 0.0, %v190
    %v192 = vpop.f32.mrb[0].mxu0
    %v193 = vpop.f32.mrb[0].mxu0
    %v194 = vadd.f32 0.0, %v193
    %v195 = vpop.f32.mrb[0].mxu0
    %196 = vmatprep.mubr.bf16.mxu0 0
    %197 = vmatmul.mubr.bf16.gmra.mrb[0].mxu0 %v102
    %v198 = vpop.f32.mrb[0].mxu0
    %v199 = vadd.f32 0.0, %v198
    %v200 = vpop.f32.mrb[0].mxu0
    %v201 = vpop.f32.mrb[0].mxu0
    %v202 = vadd.f32 0.0, %v201
    %v203 = vpop.f32.mrb[0].mxu0
    %204 = vdwg.mxu0
    %v205 = vld [vmem:[%s2] sm:$0x1]
    %v207 = vlaneseq
    %v208 = vshrl.u32 %v207, 7
    %v209 = vsub.s32 0, %v208
    %v210 = vrot.slane %v205, %v209
    %v212 = vmul.f32 %v143, %v210
    %v213 = vmul.f32 %v146, %v210
    %v214 = vmul.f32 %v151, %v210
    %v215 = vmul.f32 %v154, %v210
    %v216 = vmul.f32 %v159, %v210
    %v217 = vmul.f32 %v162, %v210
    %v218 = vmul.f32 %v167, %v210
    %v219 = vmul.f32 %v170, %v210
    %v220 = vmul.f32 %v175, %v210
    %v221 = vmul.f32 %v178, %v210
    %v222 = vmul.f32 %v183, %v210
    %v223 = vmul.f32 %v186, %v210
    %v224 = vmul.f32 %v191, %v210
    %v225 = vmul.f32 %v194, %v210
    %v226 = vmul.f32 %v199, %v210
    %v227 = vmul.f32 %v202, %v210
    %v228 = vld [vmem:[%s3] sm:$0x1]
    %v230 = vlaneseq
    %v231 = vshrl.u32 %v230, 7
    %v232 = vsub.s32 0, %v231
    %v233 = vrot.slane %v228, %v232
    %v235 = vadd.f32 %v212, %v233
    %v236 = vadd.f32 %v213, %v233
    %v237 = vadd.f32 %v214, %v233
    %v238 = vadd.f32 %v215, %v233
    %v239 = vadd.f32 %v216, %v233
    %v240 = vadd.f32 %v217, %v233
    %v241 = vadd.f32 %v218, %v233
    %v242 = vadd.f32 %v219, %v233
    %v243 = vadd.f32 %v220, %v233
    %v244 = vadd.f32 %v221, %v233
    %v245 = vadd.f32 %v222, %v233
    %v246 = vadd.f32 %v223, %v233
    %v247 = vadd.f32 %v224, %v233
    %v248 = vadd.f32 %v225, %v233
    %v249 = vadd.f32 %v226, %v233
    %v250 = vadd.f32 %v227, %v233
    %v251 = vld [vmem:[%s4] sm:$0xf]
    %v252 = vld [vmem:[%s4 + $0x4] sm:$0xf]
    %v253 = vld [vmem:[%s4 + $0x8] sm:$0xf]
    %v254 = vld [vmem:[%s4 + $0xc] sm:$0xf]
    %v255 = vld [vmem:[%s4 + $0x10] sm:$0xf]
    %v256 = vld [vmem:[%s4 + $0x14] sm:$0xf]
    %v257 = vld [vmem:[%s4 + $0x18] sm:$0xf]
    %v258 = vld [vmem:[%s4 + $0x1c] sm:$0xf]
    %v259 = vld [vmem:[%s4 + $0x20] sm:$0xf]
    %v260 = vld [vmem:[%s4 + $0x24] sm:$0xf]
    %v261 = vld [vmem:[%s4 + $0x28] sm:$0xf]
    %v262 = vld [vmem:[%s4 + $0x2c] sm:$0xf]
    %v263 = vld [vmem:[%s4 + $0x30] sm:$0xf]
    %v264 = vld [vmem:[%s4 + $0x34] sm:$0xf]
    %v265 = vld [vmem:[%s4 + $0x38] sm:$0xf]
    %v266 = vld [vmem:[%s4 + $0x3c] sm:$0xf]
    %v267 = vunpack.c.l.bf16 %v251
    %v268 = vunpack.c.l.bf16 %v252
    %v269 = vunpack.c.l.bf16 %v253
    %v270 = vunpack.c.l.bf16 %v254
    %v271 = vunpack.c.l.bf16 %v255
    %v272 = vunpack.c.l.bf16 %v256
    %v273 = vunpack.c.l.bf16 %v257
    %v274 = vunpack.c.l.bf16 %v258
    %v275 = vunpack.c.l.bf16 %v259
    %v276 = vunpack.c.l.bf16 %v260
    %v277 = vunpack.c.l.bf16 %v261
    %v278 = vunpack.c.l.bf16 %v262
    %v279 = vunpack.c.l.bf16 %v263
    %v280 = vunpack.c.l.bf16 %v264
    %v281 = vunpack.c.l.bf16 %v265
    %v282 = vunpack.c.l.bf16 %v266
    %v283 = vadd.f32 %v235, %v267
    %v284 = vadd.f32 %v236, %v268
    %v285 = vadd.f32 %v237, %v269
    %v286 = vadd.f32 %v238, %v270
    %v287 = vadd.f32 %v239, %v271
    %v288 = vadd.f32 %v240, %v272
    %v289 = vadd.f32 %v241, %v273
    %v290 = vadd.f32 %v242, %v274
    %v291 = vadd.f32 %v243, %v275
    %v292 = vadd.f32 %v244, %v276
    %v293 = vadd.f32 %v245, %v277
    %v294 = vadd.f32 %v246, %v278
    %v295 = vadd.f32 %v247, %v279
    %v296 = vadd.f32 %v248, %v280
    %v297 = vadd.f32 %v249, %v281
    %v298 = vadd.f32 %v250, %v282
    %v299 = vmax.f32 %v283, 0.0
    %v300 = vmax.f32 %v284, 0.0
    %v301 = vmax.f32 %v285, 0.0
    %v302 = vmax.f32 %v286, 0.0
    %v303 = vmax.f32 %v287, 0.0
    %v304 = vmax.f32 %v288, 0.0
    %v305 = vmax.f32 %v289, 0.0
    %v306 = vmax.f32 %v290, 0.0
    %v307 = vmax.f32 %v291, 0.0
    %v308 = vmax.f32 %v292, 0.0
    %v309 = vmax.f32 %v293, 0.0
    %v310 = vmax.f32 %v294, 0.0
    %v311 = vmax.f32 %v295, 0.0
    %v312 = vmax.f32 %v296, 0.0
    %v313 = vmax.f32 %v297, 0.0
    %v314 = vmax.f32 %v298, 0.0
    %vm315 = vcmask 261120
    %316 = vst.msk [vmem:[#allocation2] sm:$0xff] %vm315, %v299
    %317 = vst.msk [vmem:[#allocation2 + $0x8] sm:$0xff] %vm315, %v300
    %318 = vst.msk [vmem:[#allocation2 + $0x10] sm:$0xff] %vm315, %v301
    %319 = vst.msk [vmem:[#allocation2 + $0x18] sm:$0xff] %vm315, %v302
    %320 = vst.msk [vmem:[#allocation2 + $0x20] sm:$0xff] %vm315, %v303
    %321 = vst.msk [vmem:[#allocation2 + $0x28] sm:$0xff] %vm315, %v304
    %322 = vst.msk [vmem:[#allocation2 + $0x30] sm:$0xff] %vm315, %v305
    %323 = vst.msk [vmem:[#allocation2 + $0x38] sm:$0xff] %vm315, %v306
    %324 = vst.msk [vmem:[#allocation2 + $0x40] sm:$0xff] %vm315, %v307
    %325 = vst.msk [vmem:[#allocation2 + $0x48] sm:$0xff] %vm315, %v308
    %326 = vst.msk [vmem:[#allocation2 + $0x50] sm:$0xff] %vm315, %v309
    %327 = vst.msk [vmem:[#allocation2 + $0x58] sm:$0xff] %vm315, %v310
    %328 = vst.msk [vmem:[#allocation2 + $0x60] sm:$0xff] %vm315, %v311
    %329 = vst.msk [vmem:[#allocation2 + $0x68] sm:$0xff] %vm315, %v312
    %330 = vst.msk [vmem:[#allocation2 + $0x70] sm:$0xff] %vm315, %v313
    %331 = vst.msk [vmem:[#allocation2 + $0x78] sm:$0xff] %vm315, %v314
    // Predicated region
    $region22: #{bottleneck_forward.7} parent=1 // pred_check
      _
    $region23: #{bottleneck_forward.7} parent=1 // pred_check_branch
      %333 = sbr.rel (0) target = $region25
    $region24: #{bottleneck_forward.7} parent=1 // pred_region
      %s335 = ssub.s32 2048, 2048
      %336 = vsyncadd [#allocation3], %s335
      %s337 = sshll.u32 [#allocation2], 4
      %s338 = int_to_ptr.vmem [resolvable:$true] %s337
      %343 = dma.vmem_to_hbm [thread:$0]  %s338, 2048, %s5, [#allocation3], 128, 128, 8
    $region25: #{bottleneck_forward.7} parent=1 // pred_fallthru
      _
    // Predicated region
    $region26: #{bottleneck_forward.7} parent=1 // pred_check
      _
    $region27: #{bottleneck_forward.7} parent=1 // pred_check_branch
      %345 = sbr.rel (0) target = $region29
    $region28: #{bottleneck_forward.7} parent=1 // pred_region
      %346 = dma.done [#allocation3], 2048
    $region29: #{bottleneck_forward.7} parent=1 // pred_fallthru
      _
    %347 = vsyncpa [#allocation3], 1

</llo_original>
